<compile_context>
chip_gen: v7x
topology: tpu7x:2x2x1
jax: 0.10.0
libtpu: 0.0.40
codegen_flags: <defaults>
</compile_context>

<pallas_src>
import functools

import jax
import jax.numpy as jnp
import numpy as np
from jax.experimental import pallas as pl
from jax.experimental.pallas import tpu as pltpu

RATES = [(1, 6), (18, 15), (6, 21), (1, 1), (6, 3)]  # output_stride == 16
BN_EPS = 1e-5


def _dpc_kernel(x_ref, wa_ref, wr_ref, scale_ref, bias_ref, o_ref, *,
                H, W, Cout, rates):
    """Fused DPC forward for one batch element.

    x_ref:     (1, Cin, H*W)        input, flattened spatial on lanes
    wa_ref:    (9, Cout, Cin)       branch 'a' weights, tap-major (kh*3+kw)
    wr_ref:    (4, 9, Cout, Cout)   branch b/c/d/e weights
    scale_ref: (5, Cout, 1)         folded BN scales (a..e)
    bias_ref:  (5, Cout, 1)         folded BN biases (a..e)
    o_ref:     (1, 5*Cout, H*W)     concatenated output (a,b,c,d,e)
    """
    HW = H * W
    idx = jax.lax.broadcasted_iota(jnp.int32, (1, HW), 1)
    if W & (W - 1) == 0:                       # power-of-two fast path
        row = idx >> (W.bit_length() - 1)
        col = idx & (W - 1)
    else:
        row = idx // W
        col = idx % W

    def conv_bn_relu(x, w_taps, scale, bias, dil):
        """x: (Cin, HW); w_taps: (9, Cout, Cin); scale/bias: (Cout, 1)."""
        dh, dw = dil
        acc = jnp.zeros((Cout, HW), jnp.float32)
        for kh in range(3):
            if dh >= H and kh != 1:
                continue                        # tap window entirely in zero padding
            oh = (kh - 1) * dh
            for kw in range(3):
                if dw >= W and kw != 1:
                    continue                    # tap window entirely in zero padding
                ow = (kw - 1) * dw
                shift = (-(oh * W + ow)) % HW   # patch[p] = x[p + oh*W + ow]
                patch = x if shift == 0 else pltpu.roll(x, shift=shift, axis=1)
                # Zero positions whose source pixel is out of the HxW range
                # (handles image borders and row-wrap of the flat roll).
                mask = None
                if oh < 0:
                    mask = row >= -oh
                elif oh > 0:
                    mask = row < (H - oh)
                if ow < 0:
                    cm = col >= -ow
                    mask = cm if mask is None else jnp.logical_and(mask, cm)
                elif ow > 0:
                    cm = col < (W - ow)
                    mask = cm if mask is None else jnp.logical_and(mask, cm)
                if mask is not None:
                    patch = jnp.where(mask, patch, 0.0)
                acc = acc + jnp.dot(w_taps[kh * 3 + kw], patch,
                                    preferred_element_type=jnp.float32)
        return jnp.maximum(acc * scale + bias, 0.0)

    x = x_ref[0].astype(jnp.float32)            # (Cin, HW)
    wr = wr_ref[...]                            # (4, 9, Cout, Cout)

    a = conv_bn_relu(x, wa_ref[...], scale_ref[0], bias_ref[0], rates[0])
    b = conv_bn_relu(a, wr[0], scale_ref[1], bias_ref[1], rates[1])
    c = conv_bn_relu(a, wr[1], scale_ref[2], bias_ref[2], rates[2])
    d = conv_bn_relu(a, wr[2], scale_ref[3], bias_ref[3], rates[3])
    e = conv_bn_relu(b, wr[3], scale_ref[4], bias_ref[4], rates[4])

    o_ref[0, 0 * Cout:1 * Cout, :] = a.astype(o_ref.dtype)
    o_ref[0, 1 * Cout:2 * Cout, :] = b.astype(o_ref.dtype)
    o_ref[0, 2 * Cout:3 * Cout, :] = c.astype(o_ref.dtype)
    o_ref[0, 3 * Cout:4 * Cout, :] = d.astype(o_ref.dtype)
    o_ref[0, 4 * Cout:5 * Cout, :] = e.astype(o_ref.dtype)


def dpc_forward(x_nchw, params):
    """DPC forward (NCHW in, NCHW out) via one fused Pallas call."""
    B, Cin, H, W = x_nchw.shape
    Cout = params["a"][0].shape[-1]
    HW = H * W

    # Pack weights for the kernel: (3,3,Cin,Cout) HWIO -> (9, Cout, Cin).
    wa = jnp.transpose(params["a"][0], (0, 1, 3, 2)).reshape(9, Cout, Cin)
    wr = jnp.stack([
        jnp.transpose(params[k][0], (0, 1, 3, 2)) for k in ("b", "c", "d", "e")
    ]).reshape(4, 9, Cout, Cout)
    scales = jnp.stack([params[k][1] for k in ("a", "b", "c", "d", "e")])[:, :, None]
    biases = jnp.stack([params[k][2] for k in ("a", "b", "c", "d", "e")])[:, :, None]

    x_flat = x_nchw.reshape(B, Cin, HW)

    kernel = functools.partial(
        _dpc_kernel, H=H, W=W, Cout=Cout,
        rates=tuple(tuple(r) for r in RATES))

    out_flat = pl.pallas_call(
        kernel,
        out_shape=jax.ShapeDtypeStruct((B, 5 * Cout, HW), x_nchw.dtype),
        grid=(B,),
        in_specs=[
            pl.BlockSpec((1, Cin, HW), lambda n: (n, 0, 0)),
            pl.BlockSpec((9, Cout, Cin), lambda n: (0, 0, 0)),
            pl.BlockSpec((4, 9, Cout, Cout), lambda n: (0, 0, 0, 0)),
            pl.BlockSpec((5, Cout, 1), lambda n: (0, 0, 0)),
            pl.BlockSpec((5, Cout, 1), lambda n: (0, 0, 0)),
        ],
        out_specs=pl.BlockSpec((1, 5 * Cout, HW), lambda n: (n, 0, 0)),
        compiler_params=pltpu.CompilerParams(
            dimension_semantics=("parallel",)),
    )(x_flat, wa, wr, scales, biases)

    return out_flat.reshape(B, 5 * Cout, H, W)


def init_branch_params(key, cin, cout):
    """Deterministic synthetic weights; BN running stats folded into scale/bias."""
    kw_, kg, kb, km, kv = jax.random.split(key, 5)
    fan_in = cin * 9
    w = jax.random.normal(kw_, (3, 3, cin, cout), jnp.float32) * (1.0 / fan_in) ** 0.5
    gamma = 1.0 + 0.1 * jax.random.normal(kg, (cout,), jnp.float32)
    beta = 0.1 * jax.random.normal(kb, (cout,), jnp.float32)
    mean = 0.1 * jax.random.normal(km, (cout,), jnp.float32)
    var = jax.random.uniform(kv, (cout,), jnp.float32, minval=0.5, maxval=1.5)
    scale = gamma / jnp.sqrt(var + BN_EPS)
    bias = beta - mean * scale
    return (w, scale, bias)


# ---------------- pure-JAX reference (for correctness check) ----------------
def _ref_branch(x_nchw, w_hwio, scale, bias, dil):
    dh, dw = dil
    y = jax.lax.conv_general_dilated(
        x_nchw, w_hwio, window_strides=(1, 1),
        padding=((dh, dh), (dw, dw)), rhs_dilation=(dh, dw),
        dimension_numbers=("NCHW", "HWIO", "NCHW"))
    return jnp.maximum(y * scale[None, :, None, None] + bias[None, :, None, None], 0.0)


def _ref_dpc(x_nchw, params):
    a = _ref_branch(x_nchw, *params["a"], RATES[0])
    b = _ref_branch(a, *params["b"], RATES[1])
    c = _ref_branch(a, *params["c"], RATES[2])
    d = _ref_branch(a, *params["d"], RATES[3])
    e = _ref_branch(b, *params["e"], RATES[4])
    return jnp.concatenate([a, b, c, d, e], axis=1)


if __name__ == "__main__":
    B, in_dim, Hs, Ws = 2, 4, 16, 16
    reduction_dim = 8

    key = jax.random.PRNGKey(0)
    kx, ka, kb, kc, kd, ke = jax.random.split(key, 6)
    x = jax.random.normal(kx, (B, in_dim, Hs, Ws), jnp.float32)  # NCHW input

    params = {
        "a": init_branch_params(ka, in_dim, reduction_dim),
        "b": init_branch_params(kb, reduction_dim, reduction_dim),
        "c": init_branch_params(kc, reduction_dim, reduction_dim),
        "d": init_branch_params(kd, reduction_dim, reduction_dim),
        "e": init_branch_params(ke, reduction_dim, reduction_dim),
    }

    out = jax.block_until_ready(dpc_forward(x, params))
    assert out.shape == (B, 5 * reduction_dim, Hs, Ws), out.shape

    ref = jax.block_until_ready(_ref_dpc(x, params))
    np.testing.assert_allclose(np.asarray(out), np.asarray(ref),
                               rtol=1e-4, atol=1e-4)

    print("KERNEL_OK")
</pallas_src>

<mosaic_0001>
module attributes {stable_mosaic.version = 11 : i64} {
  func.func @_dpc_kernel(%arg0: i32, %arg1: memref<1x4x256xf32, #tpu.memory_space<vmem>>, %arg2: memref<9x8x4xf32, #tpu.memory_space<vmem>>, %arg3: memref<4x9x8x8xf32, #tpu.memory_space<vmem>>, %arg4: memref<5x8x1xf32, #tpu.memory_space<vmem>>, %arg5: memref<5x8x1xf32, #tpu.memory_space<vmem>>, %arg6: memref<1x40x256xf32, #tpu.memory_space<vmem>>) attributes {dimension_semantics = [#tpu.dimension_semantics<parallel>], iteration_bounds = array<i64: 2>, scalar_prefetch = 0 : i64, scratch_operands = 0 : i64, tpu.core_type = #tpu.core_type<tc>, window_params = [{transform_indices = @transform_0, window_bounds = array<i64: 1, 4, 256>}, {pipeline_mode = #tpu.pipeline_mode<synchronous>, transform_indices = @transform_1, window_bounds = array<i64: 9, 8, 4>}, {pipeline_mode = #tpu.pipeline_mode<synchronous>, transform_indices = @transform_2, window_bounds = array<i64: 4, 9, 8, 8>}, {pipeline_mode = #tpu.pipeline_mode<synchronous>, transform_indices = @transform_3, window_bounds = array<i64: 5, 8, 1>}, {pipeline_mode = #tpu.pipeline_mode<synchronous>, transform_indices = @transform_4, window_bounds = array<i64: 5, 8, 1>}, {transform_indices = @transform_5, window_bounds = array<i64: 1, 40, 256>}]} {
    %0 = tpu.iota {dimensions = array<i32: 1>} : vector<1x256xi32>
    %c4_i32 = arith.constant 4 : i32
    %1 = vector.broadcast %c4_i32 : i32 to vector<1x256xi32>
    %2 = arith.shrsi %0, %1 : vector<1x256xi32>
    %c15_i32 = arith.constant 15 : i32
    %3 = vector.broadcast %c15_i32 : i32 to vector<1x256xi32>
    %4 = arith.andi %0, %3 : vector<1x256xi32>
    %c0 = arith.constant 0 : index
    %c0_0 = arith.constant 0 : index
    %c0_1 = arith.constant 0 : index
    %5 = vector.load %arg1[%c0, %c0_0, %c0_1] : memref<1x4x256xf32, #tpu.memory_space<vmem>>, vector<1x4x256xf32>
    %6 = vector.shape_cast %5 : vector<1x4x256xf32> to vector<4x256xf32>
    %c0_2 = arith.constant 0 : index
    %c0_3 = arith.constant 0 : index
    %c0_4 = arith.constant 0 : index
    %c0_5 = arith.constant 0 : index
    %7 = vector.load %arg3[%c0_2, %c0_3, %c0_4, %c0_5] : memref<4x9x8x8xf32, #tpu.memory_space<vmem>>, vector<4x9x8x8xf32>
    %c0_6 = arith.constant 0 : index
    %c0_7 = arith.constant 0 : index
    %c0_8 = arith.constant 0 : index
    %8 = vector.load %arg2[%c0_6, %c0_7, %c0_8] : memref<9x8x4xf32, #tpu.memory_space<vmem>>, vector<9x8x4xf32>
    %c0_9 = arith.constant 0 : index
    %c0_10 = arith.constant 0 : index
    %c0_11 = arith.constant 0 : index
    %9 = vector.load %arg4[%c0_9, %c0_10, %c0_11] : memref<5x8x1xf32, #tpu.memory_space<vmem>>, vector<1x8x1xf32>
    %10 = vector.shape_cast %9 : vector<1x8x1xf32> to vector<8x1xf32>
    %c0_12 = arith.constant 0 : index
    %c0_13 = arith.constant 0 : index
    %c0_14 = arith.constant 0 : index
    %11 = vector.load %arg5[%c0_12, %c0_13, %c0_14] : memref<5x8x1xf32, #tpu.memory_space<vmem>>, vector<1x8x1xf32>
    %12 = vector.shape_cast %11 : vector<1x8x1xf32> to vector<8x1xf32>
    %cst = arith.constant 0.000000e+00 : f32
    %13 = vector.broadcast %cst : f32 to vector<8x256xf32>
    %c22_i32 = arith.constant 22 : i32
    %14 = tpu.dynamic_rotate %6 by %c22_i32 dim 1 : vector<4x256xf32>, i32 -> vector<4x256xf32>
    %c1_i32 = arith.constant 1 : i32
    %15 = vector.broadcast %c1_i32 : i32 to vector<1x256xi32>
    %16 = arith.cmpi sge, %2, %15 : vector<1x256xi32>
    %c6_i32 = arith.constant 6 : i32
    %17 = vector.broadcast %c6_i32 : i32 to vector<1x256xi32>
    %18 = arith.cmpi sge, %4, %17 : vector<1x256xi32>
    %19 = arith.andi %16, %18 : vector<1x256xi1>
    %cst_15 = arith.constant 0.000000e+00 : f32
    %20 = vector.shape_cast %19 : vector<1x256xi1> to vector<1x256xi1>
    %21 = vector.broadcast %20 : vector<1x256xi1> to vector<4x256xi1>
    %22 = vector.broadcast %cst_15 : f32 to vector<4x256xf32>
    %23 = arith.select %21, %14, %22 : vector<4x256xi1>, vector<4x256xf32>
    %24 = vector.extract_strided_slice %8 {offsets = [0, 0, 0], sizes = [1, 8, 4], strides = [1, 1, 1]} : vector<9x8x4xf32> to vector<1x8x4xf32>
    %25 = vector.shape_cast %24 : vector<1x8x4xf32> to vector<8x4xf32>
    %cst_16 = arith.constant dense<0.000000e+00> : vector<8x256xf32>
    %26 = tpu.matmul %25, %23, %cst_16 {dimension_numbers = #tpu.dot_dimension_numbers<[1], [0], [0], [1], [0, 0, 1, 1], [], []>} : vector<8x4xf32>, vector<4x256xf32>, vector<8x256xf32> -> vector<8x256xf32>
    %27 = arith.addf %13, %26 : vector<8x256xf32>
    %c16_i32 = arith.constant 16 : i32
    %28 = tpu.dynamic_rotate %6 by %c16_i32 dim 1 : vector<4x256xf32>, i32 -> vector<4x256xf32>
    %c1_i32_17 = arith.constant 1 : i32
    %29 = vector.broadcast %c1_i32_17 : i32 to vector<1x256xi32>
    %30 = arith.cmpi sge, %2, %29 : vector<1x256xi32>
    %cst_18 = arith.constant 0.000000e+00 : f32
    %31 = vector.shape_cast %30 : vector<1x256xi1> to vector<1x256xi1>
    %32 = vector.broadcast %31 : vector<1x256xi1> to vector<4x256xi1>
    %33 = vector.broadcast %cst_18 : f32 to vector<4x256xf32>
    %34 = arith.select %32, %28, %33 : vector<4x256xi1>, vector<4x256xf32>
    %35 = vector.extract_strided_slice %8 {offsets = [1, 0, 0], sizes = [1, 8, 4], strides = [1, 1, 1]} : vector<9x8x4xf32> to vector<1x8x4xf32>
    %36 = vector.shape_cast %35 : vector<1x8x4xf32> to vector<8x4xf32>
    %cst_19 = arith.constant dense<0.000000e+00> : vector<8x256xf32>
    %37 = tpu.matmul %36, %34, %cst_19 {dimension_numbers = #tpu.dot_dimension_numbers<[1], [0], [0], [1], [0, 0, 1, 1], [], []>} : vector<8x4xf32>, vector<4x256xf32>, vector<8x256xf32> -> vector<8x256xf32>
    %38 = arith.addf %27, %37 : vector<8x256xf32>
    %c10_i32 = arith.constant 10 : i32
    %39 = tpu.dynamic_rotate %6 by %c10_i32 dim 1 : vector<4x256xf32>, i32 -> vector<4x256xf32>
    %c1_i32_20 = arith.constant 1 : i32
    %40 = vector.broadcast %c1_i32_20 : i32 to vector<1x256xi32>
    %41 = arith.cmpi sge, %2, %40 : vector<1x256xi32>
    %c10_i32_21 = arith.constant 10 : i32
    %42 = vector.broadcast %c10_i32_21 : i32 to vector<1x256xi32>
    %43 = arith.cmpi slt, %4, %42 : vector<1x256xi32>
    %44 = arith.andi %41, %43 : vector<1x256xi1>
    %cst_22 = arith.constant 0.000000e+00 : f32
    %45 = vector.shape_cast %44 : vector<1x256xi1> to vector<1x256xi1>
    %46 = vector.broadcast %45 : vector<1x256xi1> to vector<4x256xi1>
    %47 = vector.broadcast %cst_22 : f32 to vector<4x256xf32>
    %48 = arith.select %46, %39, %47 : vector<4x256xi1>, vector<4x256xf32>
    %49 = vector.extract_strided_slice %8 {offsets = [2, 0, 0], sizes = [1, 8, 4], strides = [1, 1, 1]} : vector<9x8x4xf32> to vector<1x8x4xf32>
    %50 = vector.shape_cast %49 : vector<1x8x4xf32> to vector<8x4xf32>
    %cst_23 = arith.constant dense<0.000000e+00> : vector<8x256xf32>
    %51 = tpu.matmul %50, %48, %cst_23 {dimension_numbers = #tpu.dot_dimension_numbers<[1], [0], [0], [1], [0, 0, 1, 1], [], []>} : vector<8x4xf32>, vector<4x256xf32>, vector<8x256xf32> -> vector<8x256xf32>
    %52 = arith.addf %38, %51 : vector<8x256xf32>
    %c6_i32_24 = arith.constant 6 : i32
    %53 = tpu.dynamic_rotate %6 by %c6_i32_24 dim 1 : vector<4x256xf32>, i32 -> vector<4x256xf32>
    %c6_i32_25 = arith.constant 6 : i32
    %54 = vector.broadcast %c6_i32_25 : i32 to vector<1x256xi32>
    %55 = arith.cmpi sge, %4, %54 : vector<1x256xi32>
    %cst_26 = arith.constant 0.000000e+00 : f32
    %56 = vector.shape_cast %55 : vector<1x256xi1> to vector<1x256xi1>
    %57 = vector.broadcast %56 : vector<1x256xi1> to vector<4x256xi1>
    %58 = vector.broadcast %cst_26 : f32 to vector<4x256xf32>
    %59 = arith.select %57, %53, %58 : vector<4x256xi1>, vector<4x256xf32>
    %60 = vector.extract_strided_slice %8 {offsets = [3, 0, 0], sizes = [1, 8, 4], strides = [1, 1, 1]} : vector<9x8x4xf32> to vector<1x8x4xf32>
    %61 = vector.shape_cast %60 : vector<1x8x4xf32> to vector<8x4xf32>
    %cst_27 = arith.constant dense<0.000000e+00> : vector<8x256xf32>
    %62 = tpu.matmul %61, %59, %cst_27 {dimension_numbers = #tpu.dot_dimension_numbers<[1], [0], [0], [1], [0, 0, 1, 1], [], []>} : vector<8x4xf32>, vector<4x256xf32>, vector<8x256xf32> -> vector<8x256xf32>
    %63 = arith.addf %52, %62 : vector<8x256xf32>
    %64 = vector.extract_strided_slice %8 {offsets = [4, 0, 0], sizes = [1, 8, 4], strides = [1, 1, 1]} : vector<9x8x4xf32> to vector<1x8x4xf32>
    %65 = vector.shape_cast %64 : vector<1x8x4xf32> to vector<8x4xf32>
    %cst_28 = arith.constant dense<0.000000e+00> : vector<8x256xf32>
    %66 = tpu.matmul %65, %6, %cst_28 {dimension_numbers = #tpu.dot_dimension_numbers<[1], [0], [0], [1], [0, 0, 1, 1], [], []>} : vector<8x4xf32>, vector<4x256xf32>, vector<8x256xf32> -> vector<8x256xf32>
    %67 = arith.addf %63, %66 : vector<8x256xf32>
    %c250_i32 = arith.constant 250 : i32
    %68 = tpu.dynamic_rotate %6 by %c250_i32 dim 1 : vector<4x256xf32>, i32 -> vector<4x256xf32>
    %c10_i32_29 = arith.constant 10 : i32
    %69 = vector.broadcast %c10_i32_29 : i32 to vector<1x256xi32>
    %70 = arith.cmpi slt, %4, %69 : vector<1x256xi32>
    %cst_30 = arith.constant 0.000000e+00 : f32
    %71 = vector.shape_cast %70 : vector<1x256xi1> to vector<1x256xi1>
    %72 = vector.broadcast %71 : vector<1x256xi1> to vector<4x256xi1>
    %73 = vector.broadcast %cst_30 : f32 to vector<4x256xf32>
    %74 = arith.select %72, %68, %73 : vector<4x256xi1>, vector<4x256xf32>
    %75 = vector.extract_strided_slice %8 {offsets = [5, 0, 0], sizes = [1, 8, 4], strides = [1, 1, 1]} : vector<9x8x4xf32> to vector<1x8x4xf32>
    %76 = vector.shape_cast %75 : vector<1x8x4xf32> to vector<8x4xf32>
    %cst_31 = arith.constant dense<0.000000e+00> : vector<8x256xf32>
    %77 = tpu.matmul %76, %74, %cst_31 {dimension_numbers = #tpu.dot_dimension_numbers<[1], [0], [0], [1], [0, 0, 1, 1], [], []>} : vector<8x4xf32>, vector<4x256xf32>, vector<8x256xf32> -> vector<8x256xf32>
    %78 = arith.addf %67, %77 : vector<8x256xf32>
    %c246_i32 = arith.constant 246 : i32
    %79 = tpu.dynamic_rotate %6 by %c246_i32 dim 1 : vector<4x256xf32>, i32 -> vector<4x256xf32>
    %c15_i32_32 = arith.constant 15 : i32
    %80 = vector.broadcast %c15_i32_32 : i32 to vector<1x256xi32>
    %81 = arith.cmpi slt, %2, %80 : vector<1x256xi32>
    %c6_i32_33 = arith.constant 6 : i32
    %82 = vector.broadcast %c6_i32_33 : i32 to vector<1x256xi32>
    %83 = arith.cmpi sge, %4, %82 : vector<1x256xi32>
    %84 = arith.andi %81, %83 : vector<1x256xi1>
    %cst_34 = arith.constant 0.000000e+00 : f32
    %85 = vector.shape_cast %84 : vector<1x256xi1> to vector<1x256xi1>
    %86 = vector.broadcast %85 : vector<1x256xi1> to vector<4x256xi1>
    %87 = vector.broadcast %cst_34 : f32 to vector<4x256xf32>
    %88 = arith.select %86, %79, %87 : vector<4x256xi1>, vector<4x256xf32>
    %89 = vector.extract_strided_slice %8 {offsets = [6, 0, 0], sizes = [1, 8, 4], strides = [1, 1, 1]} : vector<9x8x4xf32> to vector<1x8x4xf32>
    %90 = vector.shape_cast %89 : vector<1x8x4xf32> to vector<8x4xf32>
    %cst_35 = arith.constant dense<0.000000e+00> : vector<8x256xf32>
    %91 = tpu.matmul %90, %88, %cst_35 {dimension_numbers = #tpu.dot_dimension_numbers<[1], [0], [0], [1], [0, 0, 1, 1], [], []>} : vector<8x4xf32>, vector<4x256xf32>, vector<8x256xf32> -> vector<8x256xf32>
    %92 = arith.addf %78, %91 : vector<8x256xf32>
    %c240_i32 = arith.constant 240 : i32
    %93 = tpu.dynamic_rotate %6 by %c240_i32 dim 1 : vector<4x256xf32>, i32 -> vector<4x256xf32>
    %c15_i32_36 = arith.constant 15 : i32
    %94 = vector.broadcast %c15_i32_36 : i32 to vector<1x256xi32>
    %95 = arith.cmpi slt, %2, %94 : vector<1x256xi32>
    %cst_37 = arith.constant 0.000000e+00 : f32
    %96 = vector.shape_cast %95 : vector<1x256xi1> to vector<1x256xi1>
    %97 = vector.broadcast %96 : vector<1x256xi1> to vector<4x256xi1>
    %98 = vector.broadcast %cst_37 : f32 to vector<4x256xf32>
    %99 = arith.select %97, %93, %98 : vector<4x256xi1>, vector<4x256xf32>
    %100 = vector.extract_strided_slice %8 {offsets = [7, 0, 0], sizes = [1, 8, 4], strides = [1, 1, 1]} : vector<9x8x4xf32> to vector<1x8x4xf32>
    %101 = vector.shape_cast %100 : vector<1x8x4xf32> to vector<8x4xf32>
    %cst_38 = arith.constant dense<0.000000e+00> : vector<8x256xf32>
    %102 = tpu.matmul %101, %99, %cst_38 {dimension_numbers = #tpu.dot_dimension_numbers<[1], [0], [0], [1], [0, 0, 1, 1], [], []>} : vector<8x4xf32>, vector<4x256xf32>, vector<8x256xf32> -> vector<8x256xf32>
    %103 = arith.addf %92, %102 : vector<8x256xf32>
    %c234_i32 = arith.constant 234 : i32
    %104 = tpu.dynamic_rotate %6 by %c234_i32 dim 1 : vector<4x256xf32>, i32 -> vector<4x256xf32>
    %c15_i32_39 = arith.constant 15 : i32
    %105 = vector.broadcast %c15_i32_39 : i32 to vector<1x256xi32>
    %106 = arith.cmpi slt, %2, %105 : vector<1x256xi32>
    %c10_i32_40 = arith.constant 10 : i32
    %107 = vector.broadcast %c10_i32_40 : i32 to vector<1x256xi32>
    %108 = arith.cmpi slt, %4, %107 : vector<1x256xi32>
    %109 = arith.andi %106, %108 : vector<1x256xi1>
    %cst_41 = arith.constant 0.000000e+00 : f32
    %110 = vector.shape_cast %109 : vector<1x256xi1> to vector<1x256xi1>
    %111 = vector.broadcast %110 : vector<1x256xi1> to vector<4x256xi1>
    %112 = vector.broadcast %cst_41 : f32 to vector<4x256xf32>
    %113 = arith.select %111, %104, %112 : vector<4x256xi1>, vector<4x256xf32>
    %114 = vector.extract_strided_slice %8 {offsets = [8, 0, 0], sizes = [1, 8, 4], strides = [1, 1, 1]} : vector<9x8x4xf32> to vector<1x8x4xf32>
    %115 = vector.shape_cast %114 : vector<1x8x4xf32> to vector<8x4xf32>
    %cst_42 = arith.constant dense<0.000000e+00> : vector<8x256xf32>
    %116 = tpu.matmul %115, %113, %cst_42 {dimension_numbers = #tpu.dot_dimension_numbers<[1], [0], [0], [1], [0, 0, 1, 1], [], []>} : vector<8x4xf32>, vector<4x256xf32>, vector<8x256xf32> -> vector<8x256xf32>
    %117 = arith.addf %103, %116 : vector<8x256xf32>
    %118 = vector.broadcast %10 : vector<8x1xf32> to vector<8x256xf32>
    %119 = arith.mulf %117, %118 : vector<8x256xf32>
    %120 = vector.broadcast %12 : vector<8x1xf32> to vector<8x256xf32>
    %121 = arith.addf %119, %120 : vector<8x256xf32>
    %cst_43 = arith.constant 0.000000e+00 : f32
    %122 = vector.broadcast %cst_43 : f32 to vector<8x256xf32>
    %123 = arith.maximumf %121, %122 : vector<8x256xf32>
    %124 = vector.extract_strided_slice %7 {offsets = [0, 0, 0, 0], sizes = [1, 9, 8, 8], strides = [1, 1, 1, 1]} : vector<4x9x8x8xf32> to vector<1x9x8x8xf32>
    %125 = vector.shape_cast %124 : vector<1x9x8x8xf32> to vector<9x8x8xf32>
    %c1 = arith.constant 1 : index
    %c0_44 = arith.constant 0 : index
    %c0_45 = arith.constant 0 : index
    %126 = vector.load %arg4[%c1, %c0_44, %c0_45] : memref<5x8x1xf32, #tpu.memory_space<vmem>>, vector<1x8x1xf32>
    %127 = vector.shape_cast %126 : vector<1x8x1xf32> to vector<8x1xf32>
    %c1_46 = arith.constant 1 : index
    %c0_47 = arith.constant 0 : index
    %c0_48 = arith.constant 0 : index
    %128 = vector.load %arg5[%c1_46, %c0_47, %c0_48] : memref<5x8x1xf32, #tpu.memory_space<vmem>>, vector<1x8x1xf32>
    %129 = vector.shape_cast %128 : vector<1x8x1xf32> to vector<8x1xf32>
    %cst_49 = arith.constant 0.000000e+00 : f32
    %130 = vector.broadcast %cst_49 : f32 to vector<8x256xf32>
    %c15_i32_50 = arith.constant 15 : i32
    %131 = tpu.dynamic_rotate %123 by %c15_i32_50 dim 1 : vector<8x256xf32>, i32 -> vector<8x256xf32>
    %c15_i32_51 = arith.constant 15 : i32
    %132 = vector.broadcast %c15_i32_51 : i32 to vector<1x256xi32>
    %133 = arith.cmpi sge, %4, %132 : vector<1x256xi32>
    %cst_52 = arith.constant 0.000000e+00 : f32
    %134 = vector.shape_cast %133 : vector<1x256xi1> to vector<1x256xi1>
    %135 = vector.broadcast %134 : vector<1x256xi1> to vector<8x256xi1>
    %136 = vector.broadcast %cst_52 : f32 to vector<8x256xf32>
    %137 = arith.select %135, %131, %136 : vector<8x256xi1>, vector<8x256xf32>
    %138 = vector.extract_strided_slice %125 {offsets = [3, 0, 0], sizes = [1, 8, 8], strides = [1, 1, 1]} : vector<9x8x8xf32> to vector<1x8x8xf32>
    %139 = vector.shape_cast %138 : vector<1x8x8xf32> to vector<8x8xf32>
    %cst_53 = arith.constant dense<0.000000e+00> : vector<8x256xf32>
    %140 = tpu.matmul %139, %137, %cst_53 {dimension_numbers = #tpu.dot_dimension_numbers<[1], [0], [0], [1], [0, 0, 1, 1], [], []>} : vector<8x8xf32>, vector<8x256xf32>, vector<8x256xf32> -> vector<8x256xf32>
    %141 = arith.addf %130, %140 : vector<8x256xf32>
    %142 = vector.extract_strided_slice %125 {offsets = [4, 0, 0], sizes = [1, 8, 8], strides = [1, 1, 1]} : vector<9x8x8xf32> to vector<1x8x8xf32>
    %143 = vector.shape_cast %142 : vector<1x8x8xf32> to vector<8x8xf32>
    %cst_54 = arith.constant dense<0.000000e+00> : vector<8x256xf32>
    %144 = tpu.matmul %143, %123, %cst_54 {dimension_numbers = #tpu.dot_dimension_numbers<[1], [0], [0], [1], [0, 0, 1, 1], [], []>} : vector<8x8xf32>, vector<8x256xf32>, vector<8x256xf32> -> vector<8x256xf32>
    %145 = arith.addf %141, %144 : vector<8x256xf32>
    %c241_i32 = arith.constant 241 : i32
    %146 = tpu.dynamic_rotate %123 by %c241_i32 dim 1 : vector<8x256xf32>, i32 -> vector<8x256xf32>
    %c1_i32_55 = arith.constant 1 : i32
    %147 = vector.broadcast %c1_i32_55 : i32 to vector<1x256xi32>
    %148 = arith.cmpi slt, %4, %147 : vector<1x256xi32>
    %cst_56 = arith.constant 0.000000e+00 : f32
    %149 = vector.shape_cast %148 : vector<1x256xi1> to vector<1x256xi1>
    %150 = vector.broadcast %149 : vector<1x256xi1> to vector<8x256xi1>
    %151 = vector.broadcast %cst_56 : f32 to vector<8x256xf32>
    %152 = arith.select %150, %146, %151 : vector<8x256xi1>, vector<8x256xf32>
    %153 = vector.extract_strided_slice %125 {offsets = [5, 0, 0], sizes = [1, 8, 8], strides = [1, 1, 1]} : vector<9x8x8xf32> to vector<1x8x8xf32>
    %154 = vector.shape_cast %153 : vector<1x8x8xf32> to vector<8x8xf32>
    %cst_57 = arith.constant dense<0.000000e+00> : vector<8x256xf32>
    %155 = tpu.matmul %154, %152, %cst_57 {dimension_numbers = #tpu.dot_dimension_numbers<[1], [0], [0], [1], [0, 0, 1, 1], [], []>} : vector<8x8xf32>, vector<8x256xf32>, vector<8x256xf32> -> vector<8x256xf32>
    %156 = arith.addf %145, %155 : vector<8x256xf32>
    %157 = vector.broadcast %127 : vector<8x1xf32> to vector<8x256xf32>
    %158 = arith.mulf %156, %157 : vector<8x256xf32>
    %159 = vector.broadcast %129 : vector<8x1xf32> to vector<8x256xf32>
    %160 = arith.addf %158, %159 : vector<8x256xf32>
    %cst_58 = arith.constant 0.000000e+00 : f32
    %161 = vector.broadcast %cst_58 : f32 to vector<8x256xf32>
    %162 = arith.maximumf %160, %161 : vector<8x256xf32>
    %163 = vector.extract_strided_slice %7 {offsets = [1, 0, 0, 0], sizes = [1, 9, 8, 8], strides = [1, 1, 1, 1]} : vector<4x9x8x8xf32> to vector<1x9x8x8xf32>
    %164 = vector.shape_cast %163 : vector<1x9x8x8xf32> to vector<9x8x8xf32>
    %c2 = arith.constant 2 : index
    %c0_59 = arith.constant 0 : index
    %c0_60 = arith.constant 0 : index
    %165 = vector.load %arg4[%c2, %c0_59, %c0_60] : memref<5x8x1xf32, #tpu.memory_space<vmem>>, vector<1x8x1xf32>
    %166 = vector.shape_cast %165 : vector<1x8x1xf32> to vector<8x1xf32>
    %c2_61 = arith.constant 2 : index
    %c0_62 = arith.constant 0 : index
    %c0_63 = arith.constant 0 : index
    %167 = vector.load %arg5[%c2_61, %c0_62, %c0_63] : memref<5x8x1xf32, #tpu.memory_space<vmem>>, vector<1x8x1xf32>
    %168 = vector.shape_cast %167 : vector<1x8x1xf32> to vector<8x1xf32>
    %cst_64 = arith.constant 0.000000e+00 : f32
    %169 = vector.broadcast %cst_64 : f32 to vector<8x256xf32>
    %c96_i32 = arith.constant 96 : i32
    %170 = tpu.dynamic_rotate %123 by %c96_i32 dim 1 : vector<8x256xf32>, i32 -> vector<8x256xf32>
    %c6_i32_65 = arith.constant 6 : i32
    %171 = vector.broadcast %c6_i32_65 : i32 to vector<1x256xi32>
    %172 = arith.cmpi sge, %2, %171 : vector<1x256xi32>
    %cst_66 = arith.constant 0.000000e+00 : f32
    %173 = vector.shape_cast %172 : vector<1x256xi1> to vector<1x256xi1>
    %174 = vector.broadcast %173 : vector<1x256xi1> to vector<8x256xi1>
    %175 = vector.broadcast %cst_66 : f32 to vector<8x256xf32>
    %176 = arith.select %174, %170, %175 : vector<8x256xi1>, vector<8x256xf32>
    %177 = vector.extract_strided_slice %164 {offsets = [1, 0, 0], sizes = [1, 8, 8], strides = [1, 1, 1]} : vector<9x8x8xf32> to vector<1x8x8xf32>
    %178 = vector.shape_cast %177 : vector<1x8x8xf32> to vector<8x8xf32>
    %cst_67 = arith.constant dense<0.000000e+00> : vector<8x256xf32>
    %179 = tpu.matmul %178, %176, %cst_67 {dimension_numbers = #tpu.dot_dimension_numbers<[1], [0], [0], [1], [0, 0, 1, 1], [], []>} : vector<8x8xf32>, vector<8x256xf32>, vector<8x256xf32> -> vector<8x256xf32>
    %180 = arith.addf %169, %179 : vector<8x256xf32>
    %181 = vector.extract_strided_slice %164 {offsets = [4, 0, 0], sizes = [1, 8, 8], strides = [1, 1, 1]} : vector<9x8x8xf32> to vector<1x8x8xf32>
    %182 = vector.shape_cast %181 : vector<1x8x8xf32> to vector<8x8xf32>
    %cst_68 = arith.constant dense<0.000000e+00> : vector<8x256xf32>
    %183 = tpu.matmul %182, %123, %cst_68 {dimension_numbers = #tpu.dot_dimension_numbers<[1], [0], [0], [1], [0, 0, 1, 1], [], []>} : vector<8x8xf32>, vector<8x256xf32>, vector<8x256xf32> -> vector<8x256xf32>
    %184 = arith.addf %180, %183 : vector<8x256xf32>
    %c160_i32 = arith.constant 160 : i32
    %185 = tpu.dynamic_rotate %123 by %c160_i32 dim 1 : vector<8x256xf32>, i32 -> vector<8x256xf32>
    %c10_i32_69 = arith.constant 10 : i32
    %186 = vector.broadcast %c10_i32_69 : i32 to vector<1x256xi32>
    %187 = arith.cmpi slt, %2, %186 : vector<1x256xi32>
    %cst_70 = arith.constant 0.000000e+00 : f32
    %188 = vector.shape_cast %187 : vector<1x256xi1> to vector<1x256xi1>
    %189 = vector.broadcast %188 : vector<1x256xi1> to vector<8x256xi1>
    %190 = vector.broadcast %cst_70 : f32 to vector<8x256xf32>
    %191 = arith.select %189, %185, %190 : vector<8x256xi1>, vector<8x256xf32>
    %192 = vector.extract_strided_slice %164 {offsets = [7, 0, 0], sizes = [1, 8, 8], strides = [1, 1, 1]} : vector<9x8x8xf32> to vector<1x8x8xf32>
    %193 = vector.shape_cast %192 : vector<1x8x8xf32> to vector<8x8xf32>
    %cst_71 = arith.constant dense<0.000000e+00> : vector<8x256xf32>
    %194 = tpu.matmul %193, %191, %cst_71 {dimension_numbers = #tpu.dot_dimension_numbers<[1], [0], [0], [1], [0, 0, 1, 1], [], []>} : vector<8x8xf32>, vector<8x256xf32>, vector<8x256xf32> -> vector<8x256xf32>
    %195 = arith.addf %184, %194 : vector<8x256xf32>
    %196 = vector.broadcast %166 : vector<8x1xf32> to vector<8x256xf32>
    %197 = arith.mulf %195, %196 : vector<8x256xf32>
    %198 = vector.broadcast %168 : vector<8x1xf32> to vector<8x256xf32>
    %199 = arith.addf %197, %198 : vector<8x256xf32>
    %cst_72 = arith.constant 0.000000e+00 : f32
    %200 = vector.broadcast %cst_72 : f32 to vector<8x256xf32>
    %201 = arith.maximumf %199, %200 : vector<8x256xf32>
    %202 = vector.extract_strided_slice %7 {offsets = [2, 0, 0, 0], sizes = [1, 9, 8, 8], strides = [1, 1, 1, 1]} : vector<4x9x8x8xf32> to vector<1x9x8x8xf32>
    %203 = vector.shape_cast %202 : vector<1x9x8x8xf32> to vector<9x8x8xf32>
    %c3 = arith.constant 3 : index
    %c0_73 = arith.constant 0 : index
    %c0_74 = arith.constant 0 : index
    %204 = vector.load %arg4[%c3, %c0_73, %c0_74] : memref<5x8x1xf32, #tpu.memory_space<vmem>>, vector<1x8x1xf32>
    %205 = vector.shape_cast %204 : vector<1x8x1xf32> to vector<8x1xf32>
    %c3_75 = arith.constant 3 : index
    %c0_76 = arith.constant 0 : index
    %c0_77 = arith.constant 0 : index
    %206 = vector.load %arg5[%c3_75, %c0_76, %c0_77] : memref<5x8x1xf32, #tpu.memory_space<vmem>>, vector<1x8x1xf32>
    %207 = vector.shape_cast %206 : vector<1x8x1xf32> to vector<8x1xf32>
    %cst_78 = arith.constant 0.000000e+00 : f32
    %208 = vector.broadcast %cst_78 : f32 to vector<8x256xf32>
    %c17_i32 = arith.constant 17 : i32
    %209 = tpu.dynamic_rotate %123 by %c17_i32 dim 1 : vector<8x256xf32>, i32 -> vector<8x256xf32>
    %c1_i32_79 = arith.constant 1 : i32
    %210 = vector.broadcast %c1_i32_79 : i32 to vector<1x256xi32>
    %211 = arith.cmpi sge, %2, %210 : vector<1x256xi32>
    %c1_i32_80 = arith.constant 1 : i32
    %212 = vector.broadcast %c1_i32_80 : i32 to vector<1x256xi32>
    %213 = arith.cmpi sge, %4, %212 : vector<1x256xi32>
    %214 = arith.andi %211, %213 : vector<1x256xi1>
    %cst_81 = arith.constant 0.000000e+00 : f32
    %215 = vector.shape_cast %214 : vector<1x256xi1> to vector<1x256xi1>
    %216 = vector.broadcast %215 : vector<1x256xi1> to vector<8x256xi1>
    %217 = vector.broadcast %cst_81 : f32 to vector<8x256xf32>
    %218 = arith.select %216, %209, %217 : vector<8x256xi1>, vector<8x256xf32>
    %219 = vector.extract_strided_slice %203 {offsets = [0, 0, 0], sizes = [1, 8, 8], strides = [1, 1, 1]} : vector<9x8x8xf32> to vector<1x8x8xf32>
    %220 = vector.shape_cast %219 : vector<1x8x8xf32> to vector<8x8xf32>
    %cst_82 = arith.constant dense<0.000000e+00> : vector<8x256xf32>
    %221 = tpu.matmul %220, %218, %cst_82 {dimension_numbers = #tpu.dot_dimension_numbers<[1], [0], [0], [1], [0, 0, 1, 1], [], []>} : vector<8x8xf32>, vector<8x256xf32>, vector<8x256xf32> -> vector<8x256xf32>
    %222 = arith.addf %208, %221 : vector<8x256xf32>
    %c16_i32_83 = arith.constant 16 : i32
    %223 = tpu.dynamic_rotate %123 by %c16_i32_83 dim 1 : vector<8x256xf32>, i32 -> vector<8x256xf32>
    %c1_i32_84 = arith.constant 1 : i32
    %224 = vector.broadcast %c1_i32_84 : i32 to vector<1x256xi32>
    %225 = arith.cmpi sge, %2, %224 : vector<1x256xi32>
    %cst_85 = arith.constant 0.000000e+00 : f32
    %226 = vector.shape_cast %225 : vector<1x256xi1> to vector<1x256xi1>
    %227 = vector.broadcast %226 : vector<1x256xi1> to vector<8x256xi1>
    %228 = vector.broadcast %cst_85 : f32 to vector<8x256xf32>
    %229 = arith.select %227, %223, %228 : vector<8x256xi1>, vector<8x256xf32>
    %230 = vector.extract_strided_slice %203 {offsets = [1, 0, 0], sizes = [1, 8, 8], strides = [1, 1, 1]} : vector<9x8x8xf32> to vector<1x8x8xf32>
    %231 = vector.shape_cast %230 : vector<1x8x8xf32> to vector<8x8xf32>
    %cst_86 = arith.constant dense<0.000000e+00> : vector<8x256xf32>
    %232 = tpu.matmul %231, %229, %cst_86 {dimension_numbers = #tpu.dot_dimension_numbers<[1], [0], [0], [1], [0, 0, 1, 1], [], []>} : vector<8x8xf32>, vector<8x256xf32>, vector<8x256xf32> -> vector<8x256xf32>
    %233 = arith.addf %222, %232 : vector<8x256xf32>
    %c15_i32_87 = arith.constant 15 : i32
    %234 = tpu.dynamic_rotate %123 by %c15_i32_87 dim 1 : vector<8x256xf32>, i32 -> vector<8x256xf32>
    %c1_i32_88 = arith.constant 1 : i32
    %235 = vector.broadcast %c1_i32_88 : i32 to vector<1x256xi32>
    %236 = arith.cmpi sge, %2, %235 : vector<1x256xi32>
    %c15_i32_89 = arith.constant 15 : i32
    %237 = vector.broadcast %c15_i32_89 : i32 to vector<1x256xi32>
    %238 = arith.cmpi slt, %4, %237 : vector<1x256xi32>
    %239 = arith.andi %236, %238 : vector<1x256xi1>
    %cst_90 = arith.constant 0.000000e+00 : f32
    %240 = vector.shape_cast %239 : vector<1x256xi1> to vector<1x256xi1>
    %241 = vector.broadcast %240 : vector<1x256xi1> to vector<8x256xi1>
    %242 = vector.broadcast %cst_90 : f32 to vector<8x256xf32>
    %243 = arith.select %241, %234, %242 : vector<8x256xi1>, vector<8x256xf32>
    %244 = vector.extract_strided_slice %203 {offsets = [2, 0, 0], sizes = [1, 8, 8], strides = [1, 1, 1]} : vector<9x8x8xf32> to vector<1x8x8xf32>
    %245 = vector.shape_cast %244 : vector<1x8x8xf32> to vector<8x8xf32>
    %cst_91 = arith.constant dense<0.000000e+00> : vector<8x256xf32>
    %246 = tpu.matmul %245, %243, %cst_91 {dimension_numbers = #tpu.dot_dimension_numbers<[1], [0], [0], [1], [0, 0, 1, 1], [], []>} : vector<8x8xf32>, vector<8x256xf32>, vector<8x256xf32> -> vector<8x256xf32>
    %247 = arith.addf %233, %246 : vector<8x256xf32>
    %c1_i32_92 = arith.constant 1 : i32
    %248 = tpu.dynamic_rotate %123 by %c1_i32_92 dim 1 : vector<8x256xf32>, i32 -> vector<8x256xf32>
    %c1_i32_93 = arith.constant 1 : i32
    %249 = vector.broadcast %c1_i32_93 : i32 to vector<1x256xi32>
    %250 = arith.cmpi sge, %4, %249 : vector<1x256xi32>
    %cst_94 = arith.constant 0.000000e+00 : f32
    %251 = vector.shape_cast %250 : vector<1x256xi1> to vector<1x256xi1>
    %252 = vector.broadcast %251 : vector<1x256xi1> to vector<8x256xi1>
    %253 = vector.broadcast %cst_94 : f32 to vector<8x256xf32>
    %254 = arith.select %252, %248, %253 : vector<8x256xi1>, vector<8x256xf32>
    %255 = vector.extract_strided_slice %203 {offsets = [3, 0, 0], sizes = [1, 8, 8], strides = [1, 1, 1]} : vector<9x8x8xf32> to vector<1x8x8xf32>
    %256 = vector.shape_cast %255 : vector<1x8x8xf32> to vector<8x8xf32>
    %cst_95 = arith.constant dense<0.000000e+00> : vector<8x256xf32>
    %257 = tpu.matmul %256, %254, %cst_95 {dimension_numbers = #tpu.dot_dimension_numbers<[1], [0], [0], [1], [0, 0, 1, 1], [], []>} : vector<8x8xf32>, vector<8x256xf32>, vector<8x256xf32> -> vector<8x256xf32>
    %258 = arith.addf %247, %257 : vector<8x256xf32>
    %259 = vector.extract_strided_slice %203 {offsets = [4, 0, 0], sizes = [1, 8, 8], strides = [1, 1, 1]} : vector<9x8x8xf32> to vector<1x8x8xf32>
    %260 = vector.shape_cast %259 : vector<1x8x8xf32> to vector<8x8xf32>
    %cst_96 = arith.constant dense<0.000000e+00> : vector<8x256xf32>
    %261 = tpu.matmul %260, %123, %cst_96 {dimension_numbers = #tpu.dot_dimension_numbers<[1], [0], [0], [1], [0, 0, 1, 1], [], []>} : vector<8x8xf32>, vector<8x256xf32>, vector<8x256xf32> -> vector<8x256xf32>
    %262 = arith.addf %258, %261 : vector<8x256xf32>
    %c255_i32 = arith.constant 255 : i32
    %263 = tpu.dynamic_rotate %123 by %c255_i32 dim 1 : vector<8x256xf32>, i32 -> vector<8x256xf32>
    %c15_i32_97 = arith.constant 15 : i32
    %264 = vector.broadcast %c15_i32_97 : i32 to vector<1x256xi32>
    %265 = arith.cmpi slt, %4, %264 : vector<1x256xi32>
    %cst_98 = arith.constant 0.000000e+00 : f32
    %266 = vector.shape_cast %265 : vector<1x256xi1> to vector<1x256xi1>
    %267 = vector.broadcast %266 : vector<1x256xi1> to vector<8x256xi1>
    %268 = vector.broadcast %cst_98 : f32 to vector<8x256xf32>
    %269 = arith.select %267, %263, %268 : vector<8x256xi1>, vector<8x256xf32>
    %270 = vector.extract_strided_slice %203 {offsets = [5, 0, 0], sizes = [1, 8, 8], strides = [1, 1, 1]} : vector<9x8x8xf32> to vector<1x8x8xf32>
    %271 = vector.shape_cast %270 : vector<1x8x8xf32> to vector<8x8xf32>
    %cst_99 = arith.constant dense<0.000000e+00> : vector<8x256xf32>
    %272 = tpu.matmul %271, %269, %cst_99 {dimension_numbers = #tpu.dot_dimension_numbers<[1], [0], [0], [1], [0, 0, 1, 1], [], []>} : vector<8x8xf32>, vector<8x256xf32>, vector<8x256xf32> -> vector<8x256xf32>
    %273 = arith.addf %262, %272 : vector<8x256xf32>
    %c241_i32_100 = arith.constant 241 : i32
    %274 = tpu.dynamic_rotate %123 by %c241_i32_100 dim 1 : vector<8x256xf32>, i32 -> vector<8x256xf32>
    %c15_i32_101 = arith.constant 15 : i32
    %275 = vector.broadcast %c15_i32_101 : i32 to vector<1x256xi32>
    %276 = arith.cmpi slt, %2, %275 : vector<1x256xi32>
    %c1_i32_102 = arith.constant 1 : i32
    %277 = vector.broadcast %c1_i32_102 : i32 to vector<1x256xi32>
    %278 = arith.cmpi sge, %4, %277 : vector<1x256xi32>
    %279 = arith.andi %276, %278 : vector<1x256xi1>
    %cst_103 = arith.constant 0.000000e+00 : f32
    %280 = vector.shape_cast %279 : vector<1x256xi1> to vector<1x256xi1>
    %281 = vector.broadcast %280 : vector<1x256xi1> to vector<8x256xi1>
    %282 = vector.broadcast %cst_103 : f32 to vector<8x256xf32>
    %283 = arith.select %281, %274, %282 : vector<8x256xi1>, vector<8x256xf32>
    %284 = vector.extract_strided_slice %203 {offsets = [6, 0, 0], sizes = [1, 8, 8], strides = [1, 1, 1]} : vector<9x8x8xf32> to vector<1x8x8xf32>
    %285 = vector.shape_cast %284 : vector<1x8x8xf32> to vector<8x8xf32>
    %cst_104 = arith.constant dense<0.000000e+00> : vector<8x256xf32>
    %286 = tpu.matmul %285, %283, %cst_104 {dimension_numbers = #tpu.dot_dimension_numbers<[1], [0], [0], [1], [0, 0, 1, 1], [], []>} : vector<8x8xf32>, vector<8x256xf32>, vector<8x256xf32> -> vector<8x256xf32>
    %287 = arith.addf %273, %286 : vector<8x256xf32>
    %c240_i32_105 = arith.constant 240 : i32
    %288 = tpu.dynamic_rotate %123 by %c240_i32_105 dim 1 : vector<8x256xf32>, i32 -> vector<8x256xf32>
    %c15_i32_106 = arith.constant 15 : i32
    %289 = vector.broadcast %c15_i32_106 : i32 to vector<1x256xi32>
    %290 = arith.cmpi slt, %2, %289 : vector<1x256xi32>
    %cst_107 = arith.constant 0.000000e+00 : f32
    %291 = vector.shape_cast %290 : vector<1x256xi1> to vector<1x256xi1>
    %292 = vector.broadcast %291 : vector<1x256xi1> to vector<8x256xi1>
    %293 = vector.broadcast %cst_107 : f32 to vector<8x256xf32>
    %294 = arith.select %292, %288, %293 : vector<8x256xi1>, vector<8x256xf32>
    %295 = vector.extract_strided_slice %203 {offsets = [7, 0, 0], sizes = [1, 8, 8], strides = [1, 1, 1]} : vector<9x8x8xf32> to vector<1x8x8xf32>
    %296 = vector.shape_cast %295 : vector<1x8x8xf32> to vector<8x8xf32>
    %cst_108 = arith.constant dense<0.000000e+00> : vector<8x256xf32>
    %297 = tpu.matmul %296, %294, %cst_108 {dimension_numbers = #tpu.dot_dimension_numbers<[1], [0], [0], [1], [0, 0, 1, 1], [], []>} : vector<8x8xf32>, vector<8x256xf32>, vector<8x256xf32> -> vector<8x256xf32>
    %298 = arith.addf %287, %297 : vector<8x256xf32>
    %c239_i32 = arith.constant 239 : i32
    %299 = tpu.dynamic_rotate %123 by %c239_i32 dim 1 : vector<8x256xf32>, i32 -> vector<8x256xf32>
    %c15_i32_109 = arith.constant 15 : i32
    %300 = vector.broadcast %c15_i32_109 : i32 to vector<1x256xi32>
    %301 = arith.cmpi slt, %2, %300 : vector<1x256xi32>
    %c15_i32_110 = arith.constant 15 : i32
    %302 = vector.broadcast %c15_i32_110 : i32 to vector<1x256xi32>
    %303 = arith.cmpi slt, %4, %302 : vector<1x256xi32>
    %304 = arith.andi %301, %303 : vector<1x256xi1>
    %cst_111 = arith.constant 0.000000e+00 : f32
    %305 = vector.shape_cast %304 : vector<1x256xi1> to vector<1x256xi1>
    %306 = vector.broadcast %305 : vector<1x256xi1> to vector<8x256xi1>
    %307 = vector.broadcast %cst_111 : f32 to vector<8x256xf32>
    %308 = arith.select %306, %299, %307 : vector<8x256xi1>, vector<8x256xf32>
    %309 = vector.extract_strided_slice %203 {offsets = [8, 0, 0], sizes = [1, 8, 8], strides = [1, 1, 1]} : vector<9x8x8xf32> to vector<1x8x8xf32>
    %310 = vector.shape_cast %309 : vector<1x8x8xf32> to vector<8x8xf32>
    %cst_112 = arith.constant dense<0.000000e+00> : vector<8x256xf32>
    %311 = tpu.matmul %310, %308, %cst_112 {dimension_numbers = #tpu.dot_dimension_numbers<[1], [0], [0], [1], [0, 0, 1, 1], [], []>} : vector<8x8xf32>, vector<8x256xf32>, vector<8x256xf32> -> vector<8x256xf32>
    %312 = arith.addf %298, %311 : vector<8x256xf32>
    %313 = vector.broadcast %205 : vector<8x1xf32> to vector<8x256xf32>
    %314 = arith.mulf %312, %313 : vector<8x256xf32>
    %315 = vector.broadcast %207 : vector<8x1xf32> to vector<8x256xf32>
    %316 = arith.addf %314, %315 : vector<8x256xf32>
    %cst_113 = arith.constant 0.000000e+00 : f32
    %317 = vector.broadcast %cst_113 : f32 to vector<8x256xf32>
    %318 = arith.maximumf %316, %317 : vector<8x256xf32>
    %319 = vector.extract_strided_slice %7 {offsets = [3, 0, 0, 0], sizes = [1, 9, 8, 8], strides = [1, 1, 1, 1]} : vector<4x9x8x8xf32> to vector<1x9x8x8xf32>
    %320 = vector.shape_cast %319 : vector<1x9x8x8xf32> to vector<9x8x8xf32>
    %c4 = arith.constant 4 : index
    %c0_114 = arith.constant 0 : index
    %c0_115 = arith.constant 0 : index
    %321 = vector.load %arg4[%c4, %c0_114, %c0_115] : memref<5x8x1xf32, #tpu.memory_space<vmem>>, vector<1x8x1xf32>
    %322 = vector.shape_cast %321 : vector<1x8x1xf32> to vector<8x1xf32>
    %c4_116 = arith.constant 4 : index
    %c0_117 = arith.constant 0 : index
    %c0_118 = arith.constant 0 : index
    %323 = vector.load %arg5[%c4_116, %c0_117, %c0_118] : memref<5x8x1xf32, #tpu.memory_space<vmem>>, vector<1x8x1xf32>
    %324 = vector.shape_cast %323 : vector<1x8x1xf32> to vector<8x1xf32>
    %cst_119 = arith.constant 0.000000e+00 : f32
    %325 = vector.broadcast %cst_119 : f32 to vector<8x256xf32>
    %c99_i32 = arith.constant 99 : i32
    %326 = tpu.dynamic_rotate %162 by %c99_i32 dim 1 : vector<8x256xf32>, i32 -> vector<8x256xf32>
    %c6_i32_120 = arith.constant 6 : i32
    %327 = vector.broadcast %c6_i32_120 : i32 to vector<1x256xi32>
    %328 = arith.cmpi sge, %2, %327 : vector<1x256xi32>
    %c3_i32 = arith.constant 3 : i32
    %329 = vector.broadcast %c3_i32 : i32 to vector<1x256xi32>
    %330 = arith.cmpi sge, %4, %329 : vector<1x256xi32>
    %331 = arith.andi %328, %330 : vector<1x256xi1>
    %cst_121 = arith.constant 0.000000e+00 : f32
    %332 = vector.shape_cast %331 : vector<1x256xi1> to vector<1x256xi1>
    %333 = vector.broadcast %332 : vector<1x256xi1> to vector<8x256xi1>
    %334 = vector.broadcast %cst_121 : f32 to vector<8x256xf32>
    %335 = arith.select %333, %326, %334 : vector<8x256xi1>, vector<8x256xf32>
    %336 = vector.extract_strided_slice %320 {offsets = [0, 0, 0], sizes = [1, 8, 8], strides = [1, 1, 1]} : vector<9x8x8xf32> to vector<1x8x8xf32>
    %337 = vector.shape_cast %336 : vector<1x8x8xf32> to vector<8x8xf32>
    %cst_122 = arith.constant dense<0.000000e+00> : vector<8x256xf32>
    %338 = tpu.matmul %337, %335, %cst_122 {dimension_numbers = #tpu.dot_dimension_numbers<[1], [0], [0], [1], [0, 0, 1, 1], [], []>} : vector<8x8xf32>, vector<8x256xf32>, vector<8x256xf32> -> vector<8x256xf32>
    %339 = arith.addf %325, %338 : vector<8x256xf32>
    %c96_i32_123 = arith.constant 96 : i32
    %340 = tpu.dynamic_rotate %162 by %c96_i32_123 dim 1 : vector<8x256xf32>, i32 -> vector<8x256xf32>
    %c6_i32_124 = arith.constant 6 : i32
    %341 = vector.broadcast %c6_i32_124 : i32 to vector<1x256xi32>
    %342 = arith.cmpi sge, %2, %341 : vector<1x256xi32>
    %cst_125 = arith.constant 0.000000e+00 : f32
    %343 = vector.shape_cast %342 : vector<1x256xi1> to vector<1x256xi1>
    %344 = vector.broadcast %343 : vector<1x256xi1> to vector<8x256xi1>
    %345 = vector.broadcast %cst_125 : f32 to vector<8x256xf32>
    %346 = arith.select %344, %340, %345 : vector<8x256xi1>, vector<8x256xf32>
    %347 = vector.extract_strided_slice %320 {offsets = [1, 0, 0], sizes = [1, 8, 8], strides = [1, 1, 1]} : vector<9x8x8xf32> to vector<1x8x8xf32>
    %348 = vector.shape_cast %347 : vector<1x8x8xf32> to vector<8x8xf32>
    %cst_126 = arith.constant dense<0.000000e+00> : vector<8x256xf32>
    %349 = tpu.matmul %348, %346, %cst_126 {dimension_numbers = #tpu.dot_dimension_numbers<[1], [0], [0], [1], [0, 0, 1, 1], [], []>} : vector<8x8xf32>, vector<8x256xf32>, vector<8x256xf32> -> vector<8x256xf32>
    %350 = arith.addf %339, %349 : vector<8x256xf32>
    %c93_i32 = arith.constant 93 : i32
    %351 = tpu.dynamic_rotate %162 by %c93_i32 dim 1 : vector<8x256xf32>, i32 -> vector<8x256xf32>
    %c6_i32_127 = arith.constant 6 : i32
    %352 = vector.broadcast %c6_i32_127 : i32 to vector<1x256xi32>
    %353 = arith.cmpi sge, %2, %352 : vector<1x256xi32>
    %c13_i32 = arith.constant 13 : i32
    %354 = vector.broadcast %c13_i32 : i32 to vector<1x256xi32>
    %355 = arith.cmpi slt, %4, %354 : vector<1x256xi32>
    %356 = arith.andi %353, %355 : vector<1x256xi1>
    %cst_128 = arith.constant 0.000000e+00 : f32
    %357 = vector.shape_cast %356 : vector<1x256xi1> to vector<1x256xi1>
    %358 = vector.broadcast %357 : vector<1x256xi1> to vector<8x256xi1>
    %359 = vector.broadcast %cst_128 : f32 to vector<8x256xf32>
    %360 = arith.select %358, %351, %359 : vector<8x256xi1>, vector<8x256xf32>
    %361 = vector.extract_strided_slice %320 {offsets = [2, 0, 0], sizes = [1, 8, 8], strides = [1, 1, 1]} : vector<9x8x8xf32> to vector<1x8x8xf32>
    %362 = vector.shape_cast %361 : vector<1x8x8xf32> to vector<8x8xf32>
    %cst_129 = arith.constant dense<0.000000e+00> : vector<8x256xf32>
    %363 = tpu.matmul %362, %360, %cst_129 {dimension_numbers = #tpu.dot_dimension_numbers<[1], [0], [0], [1], [0, 0, 1, 1], [], []>} : vector<8x8xf32>, vector<8x256xf32>, vector<8x256xf32> -> vector<8x256xf32>
    %364 = arith.addf %350, %363 : vector<8x256xf32>
    %c3_i32_130 = arith.constant 3 : i32
    %365 = tpu.dynamic_rotate %162 by %c3_i32_130 dim 1 : vector<8x256xf32>, i32 -> vector<8x256xf32>
    %c3_i32_131 = arith.constant 3 : i32
    %366 = vector.broadcast %c3_i32_131 : i32 to vector<1x256xi32>
    %367 = arith.cmpi sge, %4, %366 : vector<1x256xi32>
    %cst_132 = arith.constant 0.000000e+00 : f32
    %368 = vector.shape_cast %367 : vector<1x256xi1> to vector<1x256xi1>
    %369 = vector.broadcast %368 : vector<1x256xi1> to vector<8x256xi1>
    %370 = vector.broadcast %cst_132 : f32 to vector<8x256xf32>
    %371 = arith.select %369, %365, %370 : vector<8x256xi1>, vector<8x256xf32>
    %372 = vector.extract_strided_slice %320 {offsets = [3, 0, 0], sizes = [1, 8, 8], strides = [1, 1, 1]} : vector<9x8x8xf32> to vector<1x8x8xf32>
    %373 = vector.shape_cast %372 : vector<1x8x8xf32> to vector<8x8xf32>
    %cst_133 = arith.constant dense<0.000000e+00> : vector<8x256xf32>
    %374 = tpu.matmul %373, %371, %cst_133 {dimension_numbers = #tpu.dot_dimension_numbers<[1], [0], [0], [1], [0, 0, 1, 1], [], []>} : vector<8x8xf32>, vector<8x256xf32>, vector<8x256xf32> -> vector<8x256xf32>
    %375 = arith.addf %364, %374 : vector<8x256xf32>
    %376 = vector.extract_strided_slice %320 {offsets = [4, 0, 0], sizes = [1, 8, 8], strides = [1, 1, 1]} : vector<9x8x8xf32> to vector<1x8x8xf32>
    %377 = vector.shape_cast %376 : vector<1x8x8xf32> to vector<8x8xf32>
    %cst_134 = arith.constant dense<0.000000e+00> : vector<8x256xf32>
    %378 = tpu.matmul %377, %162, %cst_134 {dimension_numbers = #tpu.dot_dimension_numbers<[1], [0], [0], [1], [0, 0, 1, 1], [], []>} : vector<8x8xf32>, vector<8x256xf32>, vector<8x256xf32> -> vector<8x256xf32>
    %379 = arith.addf %375, %378 : vector<8x256xf32>
    %c253_i32 = arith.constant 253 : i32
    %380 = tpu.dynamic_rotate %162 by %c253_i32 dim 1 : vector<8x256xf32>, i32 -> vector<8x256xf32>
    %c13_i32_135 = arith.constant 13 : i32
    %381 = vector.broadcast %c13_i32_135 : i32 to vector<1x256xi32>
    %382 = arith.cmpi slt, %4, %381 : vector<1x256xi32>
    %cst_136 = arith.constant 0.000000e+00 : f32
    %383 = vector.shape_cast %382 : vector<1x256xi1> to vector<1x256xi1>
    %384 = vector.broadcast %383 : vector<1x256xi1> to vector<8x256xi1>
    %385 = vector.broadcast %cst_136 : f32 to vector<8x256xf32>
    %386 = arith.select %384, %380, %385 : vector<8x256xi1>, vector<8x256xf32>
    %387 = vector.extract_strided_slice %320 {offsets = [5, 0, 0], sizes = [1, 8, 8], strides = [1, 1, 1]} : vector<9x8x8xf32> to vector<1x8x8xf32>
    %388 = vector.shape_cast %387 : vector<1x8x8xf32> to vector<8x8xf32>
    %cst_137 = arith.constant dense<0.000000e+00> : vector<8x256xf32>
    %389 = tpu.matmul %388, %386, %cst_137 {dimension_numbers = #tpu.dot_dimension_numbers<[1], [0], [0], [1], [0, 0, 1, 1], [], []>} : vector<8x8xf32>, vector<8x256xf32>, vector<8x256xf32> -> vector<8x256xf32>
    %390 = arith.addf %379, %389 : vector<8x256xf32>
    %c163_i32 = arith.constant 163 : i32
    %391 = tpu.dynamic_rotate %162 by %c163_i32 dim 1 : vector<8x256xf32>, i32 -> vector<8x256xf32>
    %c10_i32_138 = arith.constant 10 : i32
    %392 = vector.broadcast %c10_i32_138 : i32 to vector<1x256xi32>
    %393 = arith.cmpi slt, %2, %392 : vector<1x256xi32>
    %c3_i32_139 = arith.constant 3 : i32
    %394 = vector.broadcast %c3_i32_139 : i32 to vector<1x256xi32>
    %395 = arith.cmpi sge, %4, %394 : vector<1x256xi32>
    %396 = arith.andi %393, %395 : vector<1x256xi1>
    %cst_140 = arith.constant 0.000000e+00 : f32
    %397 = vector.shape_cast %396 : vector<1x256xi1> to vector<1x256xi1>
    %398 = vector.broadcast %397 : vector<1x256xi1> to vector<8x256xi1>
    %399 = vector.broadcast %cst_140 : f32 to vector<8x256xf32>
    %400 = arith.select %398, %391, %399 : vector<8x256xi1>, vector<8x256xf32>
    %401 = vector.extract_strided_slice %320 {offsets = [6, 0, 0], sizes = [1, 8, 8], strides = [1, 1, 1]} : vector<9x8x8xf32> to vector<1x8x8xf32>
    %402 = vector.shape_cast %401 : vector<1x8x8xf32> to vector<8x8xf32>
    %cst_141 = arith.constant dense<0.000000e+00> : vector<8x256xf32>
    %403 = tpu.matmul %402, %400, %cst_141 {dimension_numbers = #tpu.dot_dimension_numbers<[1], [0], [0], [1], [0, 0, 1, 1], [], []>} : vector<8x8xf32>, vector<8x256xf32>, vector<8x256xf32> -> vector<8x256xf32>
    %404 = arith.addf %390, %403 : vector<8x256xf32>
    %c160_i32_142 = arith.constant 160 : i32
    %405 = tpu.dynamic_rotate %162 by %c160_i32_142 dim 1 : vector<8x256xf32>, i32 -> vector<8x256xf32>
    %c10_i32_143 = arith.constant 10 : i32
    %406 = vector.broadcast %c10_i32_143 : i32 to vector<1x256xi32>
    %407 = arith.cmpi slt, %2, %406 : vector<1x256xi32>
    %cst_144 = arith.constant 0.000000e+00 : f32
    %408 = vector.shape_cast %407 : vector<1x256xi1> to vector<1x256xi1>
    %409 = vector.broadcast %408 : vector<1x256xi1> to vector<8x256xi1>
    %410 = vector.broadcast %cst_144 : f32 to vector<8x256xf32>
    %411 = arith.select %409, %405, %410 : vector<8x256xi1>, vector<8x256xf32>
    %412 = vector.extract_strided_slice %320 {offsets = [7, 0, 0], sizes = [1, 8, 8], strides = [1, 1, 1]} : vector<9x8x8xf32> to vector<1x8x8xf32>
    %413 = vector.shape_cast %412 : vector<1x8x8xf32> to vector<8x8xf32>
    %cst_145 = arith.constant dense<0.000000e+00> : vector<8x256xf32>
    %414 = tpu.matmul %413, %411, %cst_145 {dimension_numbers = #tpu.dot_dimension_numbers<[1], [0], [0], [1], [0, 0, 1, 1], [], []>} : vector<8x8xf32>, vector<8x256xf32>, vector<8x256xf32> -> vector<8x256xf32>
    %415 = arith.addf %404, %414 : vector<8x256xf32>
    %c157_i32 = arith.constant 157 : i32
    %416 = tpu.dynamic_rotate %162 by %c157_i32 dim 1 : vector<8x256xf32>, i32 -> vector<8x256xf32>
    %c10_i32_146 = arith.constant 10 : i32
    %417 = vector.broadcast %c10_i32_146 : i32 to vector<1x256xi32>
    %418 = arith.cmpi slt, %2, %417 : vector<1x256xi32>
    %c13_i32_147 = arith.constant 13 : i32
    %419 = vector.broadcast %c13_i32_147 : i32 to vector<1x256xi32>
    %420 = arith.cmpi slt, %4, %419 : vector<1x256xi32>
    %421 = arith.andi %418, %420 : vector<1x256xi1>
    %cst_148 = arith.constant 0.000000e+00 : f32
    %422 = vector.shape_cast %421 : vector<1x256xi1> to vector<1x256xi1>
    %423 = vector.broadcast %422 : vector<1x256xi1> to vector<8x256xi1>
    %424 = vector.broadcast %cst_148 : f32 to vector<8x256xf32>
    %425 = arith.select %423, %416, %424 : vector<8x256xi1>, vector<8x256xf32>
    %426 = vector.extract_strided_slice %320 {offsets = [8, 0, 0], sizes = [1, 8, 8], strides = [1, 1, 1]} : vector<9x8x8xf32> to vector<1x8x8xf32>
    %427 = vector.shape_cast %426 : vector<1x8x8xf32> to vector<8x8xf32>
    %cst_149 = arith.constant dense<0.000000e+00> : vector<8x256xf32>
    %428 = tpu.matmul %427, %425, %cst_149 {dimension_numbers = #tpu.dot_dimension_numbers<[1], [0], [0], [1], [0, 0, 1, 1], [], []>} : vector<8x8xf32>, vector<8x256xf32>, vector<8x256xf32> -> vector<8x256xf32>
    %429 = arith.addf %415, %428 : vector<8x256xf32>
    %430 = vector.broadcast %322 : vector<8x1xf32> to vector<8x256xf32>
    %431 = arith.mulf %429, %430 : vector<8x256xf32>
    %432 = vector.broadcast %324 : vector<8x1xf32> to vector<8x256xf32>
    %433 = arith.addf %431, %432 : vector<8x256xf32>
    %cst_150 = arith.constant 0.000000e+00 : f32
    %434 = vector.broadcast %cst_150 : f32 to vector<8x256xf32>
    %435 = arith.maximumf %433, %434 : vector<8x256xf32>
    %c0_151 = arith.constant 0 : index
    %c0_152 = arith.constant 0 : index
    %c0_153 = arith.constant 0 : index
    %436 = vector.load %arg6[%c0_151, %c0_152, %c0_153] : memref<1x40x256xf32, #tpu.memory_space<vmem>>, vector<1x8x256xf32>
    %437 = vector.shape_cast %436 : vector<1x8x256xf32> to vector<8x256xf32>
    %438 = vector.shape_cast %123 : vector<8x256xf32> to vector<1x8x256xf32>
    tpu.vector_store %arg6[%c0_151, %c0_152, %c0_153], %438 {strides = array<i32>} : memref<1x40x256xf32, #tpu.memory_space<vmem>>, vector<1x8x256xf32>,
    %c0_154 = arith.constant 0 : index
    %c8 = arith.constant 8 : index
    %c0_155 = arith.constant 0 : index
    %439 = vector.load %arg6[%c0_154, %c8, %c0_155] : memref<1x40x256xf32, #tpu.memory_space<vmem>>, vector<1x8x256xf32>
    %440 = vector.shape_cast %439 : vector<1x8x256xf32> to vector<8x256xf32>
    %441 = vector.shape_cast %162 : vector<8x256xf32> to vector<1x8x256xf32>
    tpu.vector_store %arg6[%c0_154, %c8, %c0_155], %441 {strides = array<i32>} : memref<1x40x256xf32, #tpu.memory_space<vmem>>, vector<1x8x256xf32>,
    %c0_156 = arith.constant 0 : index
    %c16 = arith.constant 16 : index
    %c0_157 = arith.constant 0 : index
    %442 = vector.load %arg6[%c0_156, %c16, %c0_157] : memref<1x40x256xf32, #tpu.memory_space<vmem>>, vector<1x8x256xf32>
    %443 = vector.shape_cast %442 : vector<1x8x256xf32> to vector<8x256xf32>
    %444 = vector.shape_cast %201 : vector<8x256xf32> to vector<1x8x256xf32>
    tpu.vector_store %arg6[%c0_156, %c16, %c0_157], %444 {strides = array<i32>} : memref<1x40x256xf32, #tpu.memory_space<vmem>>, vector<1x8x256xf32>,
    %c0_158 = arith.constant 0 : index
    %c24 = arith.constant 24 : index
    %c0_159 = arith.constant 0 : index
    %445 = vector.load %arg6[%c0_158, %c24, %c0_159] : memref<1x40x256xf32, #tpu.memory_space<vmem>>, vector<1x8x256xf32>
    %446 = vector.shape_cast %445 : vector<1x8x256xf32> to vector<8x256xf32>
    %447 = vector.shape_cast %318 : vector<8x256xf32> to vector<1x8x256xf32>
    tpu.vector_store %arg6[%c0_158, %c24, %c0_159], %447 {strides = array<i32>} : memref<1x40x256xf32, #tpu.memory_space<vmem>>, vector<1x8x256xf32>,
    %c0_160 = arith.constant 0 : index
    %c32 = arith.constant 32 : index
    %c0_161 = arith.constant 0 : index
    %448 = vector.load %arg6[%c0_160, %c32, %c0_161] : memref<1x40x256xf32, #tpu.memory_space<vmem>>, vector<1x8x256xf32>
    %449 = vector.shape_cast %448 : vector<1x8x256xf32> to vector<8x256xf32>
    %450 = vector.shape_cast %435 : vector<8x256xf32> to vector<1x8x256xf32>
    tpu.vector_store %arg6[%c0_160, %c32, %c0_161], %450 {strides = array<i32>} : memref<1x40x256xf32, #tpu.memory_space<vmem>>, vector<1x8x256xf32>,
    return
  }
  func.func @transform_0(%arg0: i32) -> (i32, i32, i32) {
    %c0_i32 = arith.constant 0 : i32
    %c0_i32_0 = arith.constant 0 : i32
    %c0_i32_1 = arith.constant 0 : i32
    return %arg0, %c0_i32, %c0_i32_0 : i32, i32, i32
  }
  func.func @transform_1(%arg0: i32) -> (i32, i32, i32) {
    %c0_i32 = arith.constant 0 : i32
    %c0_i32_0 = arith.constant 0 : i32
    %c0_i32_1 = arith.constant 0 : i32
    %c0_i32_2 = arith.constant 0 : i32
    return %c0_i32, %c0_i32_0, %c0_i32_1 : i32, i32, i32
  }
  func.func @transform_2(%arg0: i32) -> (i32, i32, i32, i32) {
    %c0_i32 = arith.constant 0 : i32
    %c0_i32_0 = arith.constant 0 : i32
    %c0_i32_1 = arith.constant 0 : i32
    %c0_i32_2 = arith.constant 0 : i32
    %c0_i32_3 = arith.constant 0 : i32
    return %c0_i32, %c0_i32_0, %c0_i32_1, %c0_i32_2 : i32, i32, i32, i32
  }
  func.func @transform_3(%arg0: i32) -> (i32, i32, i32) {
    %c0_i32 = arith.constant 0 : i32
    %c0_i32_0 = arith.constant 0 : i32
    %c0_i32_1 = arith.constant 0 : i32
    %c0_i32_2 = arith.constant 0 : i32
    return %c0_i32, %c0_i32_0, %c0_i32_1 : i32, i32, i32
  }
  func.func @transform_4(%arg0: i32) -> (i32, i32, i32) {
    %c0_i32 = arith.constant 0 : i32
    %c0_i32_0 = arith.constant 0 : i32
    %c0_i32_1 = arith.constant 0 : i32
    %c0_i32_2 = arith.constant 0 : i32
    return %c0_i32, %c0_i32_0, %c0_i32_1 : i32, i32, i32
  }
  func.func @transform_5(%arg0: i32) -> (i32, i32, i32) {
    %c0_i32 = arith.constant 0 : i32
    %c0_i32_0 = arith.constant 0 : i32
    %c0_i32_1 = arith.constant 0 : i32
    return %arg0, %c0_i32, %c0_i32_0 : i32, i32, i32
  }
}

</mosaic_0001>

<llo_original>
// kernel: tpu_custom_call.1
$region0: #{tpu_custom_call.1}
  #allocation0 [shape = 'u32[]', space=smem, size = 0x4, offset = 0x4, fixed_abs, tag = 'smem constant byte address 0x4 - core index']
  #allocation1 [shape = 'u32[144,128]{1,0:T(1,128)}', space=vmem, size = 0x12000, scoped, tag = 'internal scratch']
  %s0 = inlined_call_operand.vmem [shape: f32[2,4,256], index: 0, kind: input, shape index: {}]
  %s1 = inlined_call_operand.vmem [shape: f32[9,8,4], index: 1, kind: input, shape index: {}]
  %s2 = inlined_call_operand.vmem [shape: f32[4,9,8,8], index: 2, kind: input, shape index: {}]
  %s3 = inlined_call_operand.vmem [shape: f32[5,8,1], index: 3, kind: input, shape index: {}]
  %s4 = inlined_call_operand.vmem [shape: f32[5,8,1], index: 4, kind: input, shape index: {}]
  %s5 = inlined_call_operand.hbm [shape: f32[2,40,256], index: 5, kind: output, shape index: {}]
  %s6 = sld [smem:[#allocation0]]
  $region53: #{tpu_custom_call.1} parent=0
    _
  %s8 = ssub.s32 1, %s6
  %s9 = scalar_select 0, %s8, %s6
  $region1: #{tpu_custom_call.1} parent=0
    #allocation2 [shape = 'u8[81920]{0}', space=vmem, size = 0x14000, scoped, tag = 'output window, operand 0']
    #allocation3 [shape = 's32[2]{0}', space=sflag, size = 0x8, scoped, tag = 'scoped memory for tpu_custom_call.1']
    %10 = vsyncpa [#allocation3], 0
    %s11 = scalar_lea.sflag [#allocation3], 1
    %12 = vsyncpa %s11, 0
    loop: start=0, step=1, limit=4
    $region2: #{tpu_custom_call.1} parent=1 // loop_pre_header
      _
    $region3: #{tpu_custom_call.1} parent=1 // loop_header
      %s14 = sphi 0, %s18
      %p15 = scmp.ge.s32.totalorder %s14, 4
      %s24 = sphi 0, %s26
      %s27 = sphi 0, %s24
      %s28 = sphi 0, %s27
      %s44 = sphi 0, %s28
      %s48 = sphi 0, %s48
      %s50 = sphi 0, %s48
      %s51 = sphi 0, %s50
      %s65 = sphi 0, %s51
      %s69 = sphi 0, %s69
      %s71 = sphi 0, %s69
      %s72 = sphi 0, %s71
      %s86 = sphi 0, %s72
      %s90 = sphi 0, %s90
      %s92 = sphi 0, %s90
      %s93 = sphi 0, %s92
      %s107 = sphi 0, %s93
      %s111 = sphi 0, %s111
      %s113 = sphi 0, %s111
      %s114 = sphi 0, %s113
      %s128 = sphi 0, %s114
      %s134 = sphi 0, %s136
      %s137 = sphi 0, %s134
      %s138 = sphi 0, %s137
      %s154 = sphi 0, %s138
    $region4: #{tpu_custom_call.1} parent=1 // loop_header_branch
      %17 = sbr.rel (%p15) target = $region8
    $region5: #{tpu_custom_call.1} parent=1 // loop_body
      %s19 = ssub.s32 %s14, 1
      %s20 = ssub.s32 %s14, 2
      %s21 = sadd.s32 %s14, 1
      %s22 = ssub.s32 %s14, %s21
      %p23 = scmp.eq.s32.totalorder %s22, 0
      %s25 = sadd.s32 %s24, 1
      %s26 = scalar_select %p23, %s24, %s25
      %p29 = pneg %p23
      %p30 = scmp.eq.s32.totalorder %s14, 1
      %p31 = por %p29, %p30
      %p32 = scmp.ne.s32.totalorder %s24, %s27
      %p33 = scmp.eq.s32.totalorder %s14, 0
      %p34 = por %p32, %p33
      %p35 = scmp.ne.s32.totalorder %s24, %s27
      %p36 = scmp.eq.s32.totalorder %s19, 1
      %p37 = por %p35, %p36
      %p38 = scmp.ne.s32.totalorder %s27, %s28
      %p39 = scmp.eq.s32.totalorder %s19, 0
      %p40 = por %p38, %p39
      %p41 = scmp.ne.s32.totalorder %s27, %s28
      %p42 = scmp.eq.s32.totalorder %s20, 1
      %p43 = por %p41, %p42
      %p45 = scmp.ne.s32.totalorder %s28, %s44
      %p46 = scmp.eq.s32.totalorder %s20, 0
      %p47 = por %p45, %p46
      %s49 = sadd.s32 %s48, 1
      %p52 = scmp.eq.s32.totalorder %s14, 1
      %p53 = scmp.ne.s32.totalorder %s48, %s50
      %p54 = scmp.eq.s32.totalorder %s14, 0
      %p55 = por %p53, %p54
      %p56 = scmp.ne.s32.totalorder %s48, %s50
      %p57 = scmp.eq.s32.totalorder %s19, 1
      %p58 = por %p56, %p57
      %p59 = scmp.ne.s32.totalorder %s50, %s51
      %p60 = scmp.eq.s32.totalorder %s19, 0
      %p61 = por %p59, %p60
      %p62 = scmp.ne.s32.totalorder %s50, %s51
      %p63 = scmp.eq.s32.totalorder %s20, 1
      %p64 = por %p62, %p63
      %p66 = scmp.ne.s32.totalorder %s51, %s65
      %p67 = scmp.eq.s32.totalorder %s20, 0
      %p68 = por %p66, %p67
      %s70 = sadd.s32 %s69, 1
      %p73 = scmp.eq.s32.totalorder %s14, 1
      %p74 = scmp.ne.s32.totalorder %s69, %s71
      %p75 = scmp.eq.s32.totalorder %s14, 0
      %p76 = por %p74, %p75
      %p77 = scmp.ne.s32.totalorder %s69, %s71
      %p78 = scmp.eq.s32.totalorder %s19, 1
      %p79 = por %p77, %p78
      %p80 = scmp.ne.s32.totalorder %s71, %s72
      %p81 = scmp.eq.s32.totalorder %s19, 0
      %p82 = por %p80, %p81
      %p83 = scmp.ne.s32.totalorder %s71, %s72
      %p84 = scmp.eq.s32.totalorder %s20, 1
      %p85 = por %p83, %p84
      %p87 = scmp.ne.s32.totalorder %s72, %s86
      %p88 = scmp.eq.s32.totalorder %s20, 0
      %p89 = por %p87, %p88
      %s91 = sadd.s32 %s90, 1
      %p94 = scmp.eq.s32.totalorder %s14, 1
      %p95 = scmp.ne.s32.totalorder %s90, %s92
      %p96 = scmp.eq.s32.totalorder %s14, 0
      %p97 = por %p95, %p96
      %p98 = scmp.ne.s32.totalorder %s90, %s92
      %p99 = scmp.eq.s32.totalorder %s19, 1
      %p100 = por %p98, %p99
      %p101 = scmp.ne.s32.totalorder %s92, %s93
      %p102 = scmp.eq.s32.totalorder %s19, 0
      %p103 = por %p101, %p102
      %p104 = scmp.ne.s32.totalorder %s92, %s93
      %p105 = scmp.eq.s32.totalorder %s20, 1
      %p106 = por %p104, %p105
      %p108 = scmp.ne.s32.totalorder %s93, %s107
      %p109 = scmp.eq.s32.totalorder %s20, 0
      %p110 = por %p108, %p109
      %s112 = sadd.s32 %s111, 1
      %p115 = scmp.eq.s32.totalorder %s14, 1
      %p116 = scmp.ne.s32.totalorder %s111, %s113
      %p117 = scmp.eq.s32.totalorder %s14, 0
      %p118 = por %p116, %p117
      %p119 = scmp.ne.s32.totalorder %s111, %s113
      %p120 = scmp.eq.s32.totalorder %s19, 1
      %p121 = por %p119, %p120
      %p122 = scmp.ne.s32.totalorder %s113, %s114
      %p123 = scmp.eq.s32.totalorder %s19, 0
      %p124 = por %p122, %p123
      %p125 = scmp.ne.s32.totalorder %s113, %s114
      %p126 = scmp.eq.s32.totalorder %s20, 1
      %p127 = por %p125, %p126
      %p129 = scmp.ne.s32.totalorder %s114, %s128
      %p130 = scmp.eq.s32.totalorder %s20, 0
      %p131 = por %p129, %p130
      %s132 = ssub.s32 %s14, %s21
      %p133 = scmp.eq.s32.totalorder %s132, 0
      %s135 = sadd.s32 %s134, 1
      %s136 = scalar_select %p133, %s134, %s135
      %p139 = pneg %p133
      %p140 = scmp.eq.s32.totalorder %s14, 1
      %p141 = por %p139, %p140
      %p142 = scmp.ne.s32.totalorder %s134, %s137
      %p143 = scmp.eq.s32.totalorder %s14, 0
      %p144 = por %p142, %p143
      %p145 = scmp.ne.s32.totalorder %s134, %s137
      %p146 = scmp.eq.s32.totalorder %s19, 1
      %p147 = por %p145, %p146
      %p148 = scmp.ne.s32.totalorder %s137, %s138
      %p149 = scmp.eq.s32.totalorder %s19, 0
      %p150 = por %p148, %p149
      %p151 = scmp.ne.s32.totalorder %s137, %s138
      %p152 = scmp.eq.s32.totalorder %s20, 1
      %p153 = por %p151, %p152
      %p155 = scmp.ne.s32.totalorder %s138, %s154
      %p156 = scmp.eq.s32.totalorder %s20, 0
      %p157 = por %p155, %p156
      %p158 = scmp.le.s32.totalorder 1, %s14
      %p159 = scmp.lt.s32.totalorder %s14, 3
      %p160 = pnand %p158, %p159
      %p161 = pneg %p160
      // Predicated region
      $region9: #{tpu_custom_call.1} parent=5 // pred_check
        _
      $region10: #{tpu_custom_call.1} parent=5 // pred_check_branch
        %163 = sbr.rel (%p160) target = $region12
      $region11: #{tpu_custom_call.1} parent=5 // pred_region
        %s164 = ssub.s32 %s14, 1
        // Predicated region
        $region13: #{tpu_custom_call.1} parent=11 // pred_check
          %p165 = pneg %p61
        $region14: #{tpu_custom_call.1} parent=11 // pred_check_branch
          %167 = sbr.rel (%p165) target = $region16
        $region15: #{tpu_custom_call.1} parent=11 // pred_region
          _
        $region16: #{tpu_custom_call.1} parent=11 // pred_fallthru
          _
        // Predicated region
        $region17: #{tpu_custom_call.1} parent=11 // pred_check
          %p168 = pneg %p82
        $region18: #{tpu_custom_call.1} parent=11 // pred_check_branch
          %170 = sbr.rel (%p168) target = $region20
        $region19: #{tpu_custom_call.1} parent=11 // pred_region
          _
        $region20: #{tpu_custom_call.1} parent=11 // pred_fallthru
          _
        // Predicated region
        $region21: #{tpu_custom_call.1} parent=11 // pred_check
          %p171 = pneg %p103
        $region22: #{tpu_custom_call.1} parent=11 // pred_check_branch
          %173 = sbr.rel (%p171) target = $region24
        $region23: #{tpu_custom_call.1} parent=11 // pred_region
          _
        $region24: #{tpu_custom_call.1} parent=11 // pred_fallthru
          _
        // Predicated region
        $region25: #{tpu_custom_call.1} parent=11 // pred_check
          %p174 = pneg %p124
        $region26: #{tpu_custom_call.1} parent=11 // pred_check_branch
          %176 = sbr.rel (%p174) target = $region28
        $region27: #{tpu_custom_call.1} parent=11 // pred_region
          _
        $region28: #{tpu_custom_call.1} parent=11 // pred_fallthru
          _
      $region12: #{tpu_custom_call.1} parent=5 // pred_fallthru
        _
      %p177 = scmp.lt.s32.totalorder %s14, 2
      // Predicated region
      $region29: #{tpu_custom_call.1} parent=5 // pred_check
        %p178 = pneg %p177
      $region30: #{tpu_custom_call.1} parent=5 // pred_check_branch
        %180 = sbr.rel (%p178) target = $region32
      $region31: #{tpu_custom_call.1} parent=5 // pred_region
        // Predicated region
        $region33: #{tpu_custom_call.1} parent=31 // pred_check
          %p181 = pneg %p34
        $region34: #{tpu_custom_call.1} parent=31 // pred_check_branch
          %183 = sbr.rel (%p181) target = $region36
        $region35: #{tpu_custom_call.1} parent=31 // pred_region
          %p184 = scmp.lt.s32.totalorder %s14, 1
          %s185 = scalar_select %p184, %s14, 1
          %s186 = smul.addr %s185, 2
          %s187 = smul.addr %s186, 4
          %s188 = scalar_lea.vmem %s0, %s187
        $region36: #{tpu_custom_call.1} parent=31 // pred_fallthru
          _
      $region32: #{tpu_custom_call.1} parent=5 // pred_fallthru
        _
      %p189 = scmp.le.s32.totalorder 1, %s14
      %p190 = scmp.lt.s32.totalorder %s14, 3
      %p191 = pnand %p189, %p190
      %p192 = pneg %p191
      // Predicated region
      $region37: #{tpu_custom_call.1} parent=5 // pred_check
        _
      $region38: #{tpu_custom_call.1} parent=5 // pred_check_branch
        %194 = sbr.rel (%p191) target = $region40
      $region39: #{tpu_custom_call.1} parent=5 // pred_region
        %s195 = ssub.s32 %s14, 1
        %p196 = scmp.lt.s32.totalorder %s19, 1
        %s197 = scalar_select %p196, %s19, 1
        %s198 = smul.addr %s197, 2
        %s199 = smul.addr %s198, 4
        %s200 = scalar_lea.vmem %s0, %s199
        %p201 = pneg %p40
        %p202 = pneg %p37
        %p203 = pneg %p61
        %p204 = pneg %p58
        %p205 = pneg %p82
        %p206 = pneg %p79
        %p207 = pneg %p103
        %p208 = pneg %p100
        %p209 = pneg %p124
        %p210 = pneg %p121
        %p211 = pneg %p150
        %p212 = pneg %p147
        %s213 = sand.u32 %s137, 1
        %s214 = scalar_lea.sflag [#allocation3], %s213
        %s215 = sand.u32 %s137, 1
        %s216 = smul.addr %s215, 80
        %s217 = scalar_lea.vmem [#allocation2], %s216
        %p218 = scmp.lt.s32.totalorder %s19, 1
        %s219 = scalar_select %p218, %s19, 1
        %s220 = smul.addr %s219, 2
        %s221 = smul.addr %s220, 4
        %s222 = scalar_lea.vmem %s0, %s221
        %v223 = vlaneseq
        %v224 = vand.u32 %v223, 127
        %v225 = vadd.s32 %v224, 128
        %v226 = vshra.s32 %v224, 4
        %v227 = vshra.s32 %v225, 4
        %v228 = vand.u32 %v224, 15
        %v229 = vand.u32 %v225, 15
        %v230 = vld [vmem:[%s222] sm:$0xff]
        %v231 = vld [vmem:[%s2 + $0x18] sm:$0xff]
        %v232 = vld [vmem:[%s2 + $0x20] sm:$0xff]
        %v233 = vld [vmem:[%s2 + $0x28] sm:$0xff]
        %v234 = vld [vmem:[%s2 + $0x50] sm:$0xff]
        %v235 = vld [vmem:[%s2 + $0x68] sm:$0xff]
        %v236 = vld [vmem:[%s2 + $0x80] sm:$0xff]
        %v237 = vld [vmem:[%s2 + $0x90] sm:$0xff]
        %v238 = vld [vmem:[%s2 + $0x98] sm:$0xff]
        %v239 = vld [vmem:[%s2 + $0xa0] sm:$0xff]
        %v240 = vld [vmem:[%s2 + $0xa8] sm:$0xff]
        %v241 = vld [vmem:[%s2 + $0xb0] sm:$0xff]
        %v242 = vld [vmem:[%s2 + $0xb8] sm:$0xff]
        %v243 = vld [vmem:[%s2 + $0xc0] sm:$0xff]
        %v244 = vld [vmem:[%s2 + $0xc8] sm:$0xff]
        %v245 = vld [vmem:[%s2 + $0xd0] sm:$0xff]
        %v246 = vld [vmem:[%s2 + $0xd8] sm:$0xff]
        %v247 = vld [vmem:[%s2 + $0xe0] sm:$0xff]
        %v248 = vld [vmem:[%s2 + $0xe8] sm:$0xff]
        %v249 = vld [vmem:[%s2 + $0xf0] sm:$0xff]
        %v250 = vld [vmem:[%s2 + $0xf8] sm:$0xff]
        %v251 = vld [vmem:[%s2 + $0x100] sm:$0xff]
        %v252 = vld [vmem:[%s2 + $0x108] sm:$0xff]
        %v253 = vld [vmem:[%s2 + $0x110] sm:$0xff]
        %v254 = vld [vmem:[%s2 + $0x118] sm:$0xff]
        %v255 = vld [vmem:[%s1] sm:$0xff]
        %v256 = vld [vmem:[%s1 + $0x8] sm:$0xff]
        %v257 = vld [vmem:[%s1 + $0x10] sm:$0xff]
        %v258 = vld [vmem:[%s1 + $0x18] sm:$0xff]
        %v259 = vld [vmem:[%s1 + $0x20] sm:$0xff]
        %v260 = vld [vmem:[%s1 + $0x28] sm:$0xff]
        %v261 = vld [vmem:[%s1 + $0x30] sm:$0xff]
        %v262 = vld [vmem:[%s1 + $0x38] sm:$0xff]
        %v263 = vld [vmem:[%s1 + $0x40] sm:$0xff]
        %v264 = vld [vmem:[%s3] sm:$0xff]
        %v265 = vld [vmem:[%s4] sm:$0xff]
        %v267 = vcombine.high %v230, %v230
        %269 = vrot.lane.b32.xlu0 %v230, 22
        %v270 = vpop.permute.xlu0 %269
        %271 = vrot.lane.b32.xlu0 %v267, 22
        %v272 = vpop.permute.xlu0 %271
        %vm273 = vcmp.lt.s32.totalorder %v224, 22
        %v274 = vsel %vm273, %v270, %v272
        %v275 = vsel %vm273, %v272, %v270
        %vm276 = vcmp.ge.s32.totalorder %v226, 1
        %vm277 = vcmp.ge.s32.totalorder %v227, 1
        %vm278 = vcmp.ge.s32.totalorder %v228, 6
        %vm279 = vcmp.ge.s32.totalorder %v229, 6
        %vm280 = vmand %vm276, %vm278
        %vm281 = vmand %vm277, %vm279
        %v282 = vsel %vm280, 1, 0
        %v283 = vsel %vm281, 1, 0
        %vm284 = vcmp.eq.s32.totalorder %v282, 1
        %vm285 = vcmp.eq.s32.totalorder %v283, 1
        %v286 = vsel %vm284, %v275, 0.0
        %v287 = vsel %vm285, %v274, 0.0
        %288 = vrot.lane.b32.xlu0 %v230, 16
        %v289 = vpop.permute.xlu0 %288
        %290 = vrot.lane.b32.xlu0 %v267, 16
        %v291 = vpop.permute.xlu0 %290
        %vm292 = vcmp.lt.s32.totalorder %v224, 16
        %v293 = vsel %vm292, %v289, %v291
        %v294 = vsel %vm292, %v291, %v289
        %v295 = vsel %vm276, 1, 0
        %v296 = vsel %vm277, 1, 0
        %vm297 = vcmp.eq.s32.totalorder %v295, 1
        %vm298 = vcmp.eq.s32.totalorder %v296, 1
        %v299 = vsel %vm297, %v294, 0.0
        %v300 = vsel %vm298, %v293, 0.0
        %vm301 = vcmask 31744
        %v303 = vsel %vm301, %v256, 0
        %vm305 = vcmask 1043456
        %v307 = vsel %vm305, %v299, 0
        %v310 = vsel %vm305, %v300, 0
        %312 = vmatprep.subr.mxu0 %v310
        %313 = vmatpush1.msra.mxu0 %v307
        %314 = vmatprep.subr.mxu0 0.0
        %315 = vmatpush1.msra.mxu0 0.0
        %316 = vmatprep.subr.mxu0 0.0
        %317 = vmatpush1.msra.mxu0 0.0
        %318 = vmatprep.subr.mxu0 0.0
        %319 = vmatpush1.msra.mxu0 0.0
        %320 = vmatprep.subr.mxu0 0.0
        %321 = vmatpush1.msra.mxu0 0.0
        %322 = vmatprep.subr.mxu0 0.0
        %323 = vmatpush1.msra.mxu0 0.0
        %324 = vmatprep.subr.mxu0 0.0
        %325 = vmatpush1.msra.mxu0 0.0
        %326 = vmatprep.subr.mxu0 0.0
        %327 = vmatpush1.msra.mxu0 0.0
        %328 = vmatprep.subr.mxu0 0.0
        %329 = vmatpush1.msra.mxu0 0.0
        %330 = vmatprep.subr.mxu0 0.0
        %331 = vmatpush1.msra.mxu0 0.0
        %332 = vmatprep.subr.mxu0 0.0
        %333 = vmatpush1.msra.mxu0 0.0
        %334 = vmatprep.subr.mxu0 0.0
        %335 = vmatpush1.msra.mxu0 0.0
        %336 = vmatprep.subr.mxu0 0.0
        %337 = vmatpush1.msra.mxu0 0.0
        %338 = vmatprep.subr.mxu0 0.0
        %339 = vmatpush1.msra.mxu0 0.0
        %340 = vmatprep.subr.mxu0 0.0
        %341 = vmatpush1.msra.mxu0 0.0
        %342 = vmatprep.subr.mxu0 0.0
        %343 = vmatpush1.msra.mxu0 0.0
        %344 = vmatprep.subr.mxu0 0.0
        %345 = vmatpush1.msra.mxu0 0.0
        %346 = vmatprep.subr.mxu0 0.0
        %347 = vmatpush1.msra.mxu0 0.0
        %348 = vmatprep.subr.mxu0 0.0
        %349 = vmatpush1.msra.mxu0 0.0
        %350 = vmatprep.subr.mxu0 0.0
        %351 = vmatpush1.msra.mxu0 0.0
        %352 = vmatprep.subr.mxu0 0.0
        %353 = vmatpush1.msra.mxu0 0.0
        %354 = vmatprep.subr.mxu0 0.0
        %355 = vmatpush1.msra.mxu0 0.0
        %356 = vmatprep.subr.mxu0 0.0
        %357 = vmatpush1.msra.mxu0 0.0
        %358 = vmatprep.subr.mxu0 0.0
        %359 = vmatpush1.msra.mxu0 0.0
        %360 = vmatprep.subr.mxu0 0.0
        %361 = vmatpush1.msra.mxu0 0.0
        %362 = vmatprep.subr.mxu0 0.0
        %363 = vmatpush1.msra.mxu0 0.0
        %364 = vmatprep.subr.mxu0 0.0
        %365 = vmatpush1.msra.mxu0 0.0
        %366 = vmatprep.subr.mxu0 0.0
        %367 = vmatpush1.msra.mxu0 0.0
        %368 = vmatprep.subr.mxu0 0.0
        %369 = vmatpush1.msra.mxu0 0.0
        %370 = vmatprep.subr.mxu0 0.0
        %371 = vmatpush1.msra.mxu0 0.0
        %372 = vmatprep.subr.mxu0 0.0
        %373 = vmatpush1.msra.mxu0 0.0
        %374 = vmatprep.subr.mxu0 0.0
        %375 = vmatpush1.msra.mxu0 0.0
        %376 = vmatprep.mubr.f32.mxu0 0.0
        %377 = vmatmul.mubr.f32.gmra.mrb[0].mxu0 %v303
        %v378 = vpop.f32.mrb[0].mxu0
        %v379 = vadd.f32 0.0, %v378
        %v380 = vpop.f32.mrb[0].mxu0
        %v381 = vadd.f32 0.0, %v380
        %382 = vdwg.mxu0
        %v384 = vsel %vm301, %v255, 0
        %v387 = vsel %vm305, %v286, 0
        %v390 = vsel %vm305, %v287, 0
        %392 = vmatprep.subr.mxu0 %v390
        %393 = vmatpush1.msra.mxu0 %v387
        %394 = vmatprep.subr.mxu0 0.0
        %395 = vmatpush1.msra.mxu0 0.0
        %396 = vmatprep.subr.mxu0 0.0
        %397 = vmatpush1.msra.mxu0 0.0
        %398 = vmatprep.subr.mxu0 0.0
        %399 = vmatpush1.msra.mxu0 0.0
        %400 = vmatprep.subr.mxu0 0.0
        %401 = vmatpush1.msra.mxu0 0.0
        %402 = vmatprep.subr.mxu0 0.0
        %403 = vmatpush1.msra.mxu0 0.0
        %404 = vmatprep.subr.mxu0 0.0
        %405 = vmatpush1.msra.mxu0 0.0
        %406 = vmatprep.subr.mxu0 0.0
        %407 = vmatpush1.msra.mxu0 0.0
        %408 = vmatprep.subr.mxu0 0.0
        %409 = vmatpush1.msra.mxu0 0.0
        %410 = vmatprep.subr.mxu0 0.0
        %411 = vmatpush1.msra.mxu0 0.0
        %412 = vmatprep.subr.mxu0 0.0
        %413 = vmatpush1.msra.mxu0 0.0
        %414 = vmatprep.subr.mxu0 0.0
        %415 = vmatpush1.msra.mxu0 0.0
        %416 = vmatprep.subr.mxu0 0.0
        %417 = vmatpush1.msra.mxu0 0.0
        %418 = vmatprep.subr.mxu0 0.0
        %419 = vmatpush1.msra.mxu0 0.0
        %420 = vmatprep.subr.mxu0 0.0
        %421 = vmatpush1.msra.mxu0 0.0
        %422 = vmatprep.subr.mxu0 0.0
        %423 = vmatpush1.msra.mxu0 0.0
        %424 = vmatprep.subr.mxu0 0.0
        %425 = vmatpush1.msra.mxu0 0.0
        %426 = vmatprep.subr.mxu0 0.0
        %427 = vmatpush1.msra.mxu0 0.0
        %428 = vmatprep.subr.mxu0 0.0
        %429 = vmatpush1.msra.mxu0 0.0
        %430 = vmatprep.subr.mxu0 0.0
        %431 = vmatpush1.msra.mxu0 0.0
        %432 = vmatprep.subr.mxu0 0.0
        %433 = vmatpush1.msra.mxu0 0.0
        %434 = vmatprep.subr.mxu0 0.0
        %435 = vmatpush1.msra.mxu0 0.0
        %436 = vmatprep.subr.mxu0 0.0
        %437 = vmatpush1.msra.mxu0 0.0
        %438 = vmatprep.subr.mxu0 0.0
        %439 = vmatpush1.msra.mxu0 0.0
        %440 = vmatprep.subr.mxu0 0.0
        %441 = vmatpush1.msra.mxu0 0.0
        %442 = vmatprep.subr.mxu0 0.0
        %443 = vmatpush1.msra.mxu0 0.0
        %444 = vmatprep.subr.mxu0 0.0
        %445 = vmatpush1.msra.mxu0 0.0
        %446 = vmatprep.subr.mxu0 0.0
        %447 = vmatpush1.msra.mxu0 0.0
        %448 = vmatprep.subr.mxu0 0.0
        %449 = vmatpush1.msra.mxu0 0.0
        %450 = vmatprep.subr.mxu0 0.0
        %451 = vmatpush1.msra.mxu0 0.0
        %452 = vmatprep.subr.mxu0 0.0
        %453 = vmatpush1.msra.mxu0 0.0
        %454 = vmatprep.subr.mxu0 0.0
        %455 = vmatpush1.msra.mxu0 0.0
        %456 = vmatprep.mubr.f32.mxu0 0.0
        %457 = vmatmul.mubr.f32.gmra.mrb[0].mxu0 %v384
        %v458 = vpop.f32.mrb[0].mxu0
        %v459 = vadd.f32 %v379, %v458
        %v460 = vpop.f32.mrb[0].mxu0
        %v461 = vadd.f32 %v381, %v460
        %462 = vdwg.mxu0
        %463 = vrot.lane.b32.xlu0 %v230, 10
        %v464 = vpop.permute.xlu0 %463
        %465 = vrot.lane.b32.xlu0 %v267, 10
        %v466 = vpop.permute.xlu0 %465
        %vm467 = vcmp.lt.s32.totalorder %v224, 10
        %v468 = vsel %vm467, %v464, %v466
        %v469 = vsel %vm467, %v466, %v464
        %vm470 = vcmp.lt.s32.totalorder %v228, 10
        %vm471 = vcmp.lt.s32.totalorder %v229, 10
        %vm472 = vmand %vm276, %vm470
        %vm473 = vmand %vm277, %vm471
        %v474 = vsel %vm472, 1, 0
        %v475 = vsel %vm473, 1, 0
        %vm476 = vcmp.eq.s32.totalorder %v474, 1
        %vm477 = vcmp.eq.s32.totalorder %v475, 1
        %v478 = vsel %vm476, %v469, 0.0
        %v479 = vsel %vm477, %v468, 0.0
        %v481 = vsel %vm301, %v257, 0
        %v484 = vsel %vm305, %v478, 0
        %v487 = vsel %vm305, %v479, 0
        %489 = vmatprep.subr.mxu0 %v487
        %490 = vmatpush1.msra.mxu0 %v484
        %491 = vmatprep.subr.mxu0 0.0
        %492 = vmatpush1.msra.mxu0 0.0
        %493 = vmatprep.subr.mxu0 0.0
        %494 = vmatpush1.msra.mxu0 0.0
        %495 = vmatprep.subr.mxu0 0.0
        %496 = vmatpush1.msra.mxu0 0.0
        %497 = vmatprep.subr.mxu0 0.0
        %498 = vmatpush1.msra.mxu0 0.0
        %499 = vmatprep.subr.mxu0 0.0
        %500 = vmatpush1.msra.mxu0 0.0
        %501 = vmatprep.subr.mxu0 0.0
        %502 = vmatpush1.msra.mxu0 0.0
        %503 = vmatprep.subr.mxu0 0.0
        %504 = vmatpush1.msra.mxu0 0.0
        %505 = vmatprep.subr.mxu0 0.0
        %506 = vmatpush1.msra.mxu0 0.0
        %507 = vmatprep.subr.mxu0 0.0
        %508 = vmatpush1.msra.mxu0 0.0
        %509 = vmatprep.subr.mxu0 0.0
        %510 = vmatpush1.msra.mxu0 0.0
        %511 = vmatprep.subr.mxu0 0.0
        %512 = vmatpush1.msra.mxu0 0.0
        %513 = vmatprep.subr.mxu0 0.0
        %514 = vmatpush1.msra.mxu0 0.0
        %515 = vmatprep.subr.mxu0 0.0
        %516 = vmatpush1.msra.mxu0 0.0
        %517 = vmatprep.subr.mxu0 0.0
        %518 = vmatpush1.msra.mxu0 0.0
        %519 = vmatprep.subr.mxu0 0.0
        %520 = vmatpush1.msra.mxu0 0.0
        %521 = vmatprep.subr.mxu0 0.0
        %522 = vmatpush1.msra.mxu0 0.0
        %523 = vmatprep.subr.mxu0 0.0
        %524 = vmatpush1.msra.mxu0 0.0
        %525 = vmatprep.subr.mxu0 0.0
        %526 = vmatpush1.msra.mxu0 0.0
        %527 = vmatprep.subr.mxu0 0.0
        %528 = vmatpush1.msra.mxu0 0.0
        %529 = vmatprep.subr.mxu0 0.0
        %530 = vmatpush1.msra.mxu0 0.0
        %531 = vmatprep.subr.mxu0 0.0
        %532 = vmatpush1.msra.mxu0 0.0
        %533 = vmatprep.subr.mxu0 0.0
        %534 = vmatpush1.msra.mxu0 0.0
        %535 = vmatprep.subr.mxu0 0.0
        %536 = vmatpush1.msra.mxu0 0.0
        %537 = vmatprep.subr.mxu0 0.0
        %538 = vmatpush1.msra.mxu0 0.0
        %539 = vmatprep.subr.mxu0 0.0
        %540 = vmatpush1.msra.mxu0 0.0
        %541 = vmatprep.subr.mxu0 0.0
        %542 = vmatpush1.msra.mxu0 0.0
        %543 = vmatprep.subr.mxu0 0.0
        %544 = vmatpush1.msra.mxu0 0.0
        %545 = vmatprep.subr.mxu0 0.0
        %546 = vmatpush1.msra.mxu0 0.0
        %547 = vmatprep.subr.mxu0 0.0
        %548 = vmatpush1.msra.mxu0 0.0
        %549 = vmatprep.subr.mxu0 0.0
        %550 = vmatpush1.msra.mxu0 0.0
        %551 = vmatprep.subr.mxu0 0.0
        %552 = vmatpush1.msra.mxu0 0.0
        %553 = vmatprep.mubr.f32.mxu0 0.0
        %554 = vmatmul.mubr.f32.gmra.mrb[0].mxu0 %v481
        %v555 = vpop.f32.mrb[0].mxu0
        %v556 = vadd.f32 0.0, %v555
        %v557 = vpop.f32.mrb[0].mxu0
        %v558 = vadd.f32 0.0, %v557
        %559 = vdwg.mxu0
        %v560 = vadd.f32 %v459, %v556
        %v561 = vadd.f32 %v461, %v558
        %562 = vrot.lane.b32.xlu0 %v230, 6
        %v563 = vpop.permute.xlu0 %562
        %564 = vrot.lane.b32.xlu0 %v267, 6
        %v565 = vpop.permute.xlu0 %564
        %vm566 = vcmp.lt.s32.totalorder %v224, 6
        %v567 = vsel %vm566, %v563, %v565
        %v568 = vsel %vm566, %v565, %v563
        %v569 = vsel %vm278, 1, 0
        %v570 = vsel %vm279, 1, 0
        %vm571 = vcmp.eq.s32.totalorder %v569, 1
        %vm572 = vcmp.eq.s32.totalorder %v570, 1
        %v573 = vsel %vm571, %v568, 0.0
        %v574 = vsel %vm572, %v567, 0.0
        %v576 = vsel %vm301, %v258, 0
        %v579 = vsel %vm305, %v573, 0
        %v582 = vsel %vm305, %v574, 0
        %584 = vmatprep.subr.mxu0 %v582
        %585 = vmatpush1.msra.mxu0 %v579
        %586 = vmatprep.subr.mxu0 0.0
        %587 = vmatpush1.msra.mxu0 0.0
        %588 = vmatprep.subr.mxu0 0.0
        %589 = vmatpush1.msra.mxu0 0.0
        %590 = vmatprep.subr.mxu0 0.0
        %591 = vmatpush1.msra.mxu0 0.0
        %592 = vmatprep.subr.mxu0 0.0
        %593 = vmatpush1.msra.mxu0 0.0
        %594 = vmatprep.subr.mxu0 0.0
        %595 = vmatpush1.msra.mxu0 0.0
        %596 = vmatprep.subr.mxu0 0.0
        %597 = vmatpush1.msra.mxu0 0.0
        %598 = vmatprep.subr.mxu0 0.0
        %599 = vmatpush1.msra.mxu0 0.0
        %600 = vmatprep.subr.mxu0 0.0
        %601 = vmatpush1.msra.mxu0 0.0
        %602 = vmatprep.subr.mxu0 0.0
        %603 = vmatpush1.msra.mxu0 0.0
        %604 = vmatprep.subr.mxu0 0.0
        %605 = vmatpush1.msra.mxu0 0.0
        %606 = vmatprep.subr.mxu0 0.0
        %607 = vmatpush1.msra.mxu0 0.0
        %608 = vmatprep.subr.mxu0 0.0
        %609 = vmatpush1.msra.mxu0 0.0
        %610 = vmatprep.subr.mxu0 0.0
        %611 = vmatpush1.msra.mxu0 0.0
        %612 = vmatprep.subr.mxu0 0.0
        %613 = vmatpush1.msra.mxu0 0.0
        %614 = vmatprep.subr.mxu0 0.0
        %615 = vmatpush1.msra.mxu0 0.0
        %616 = vmatprep.subr.mxu0 0.0
        %617 = vmatpush1.msra.mxu0 0.0
        %618 = vmatprep.subr.mxu0 0.0
        %619 = vmatpush1.msra.mxu0 0.0
        %620 = vmatprep.subr.mxu0 0.0
        %621 = vmatpush1.msra.mxu0 0.0
        %622 = vmatprep.subr.mxu0 0.0
        %623 = vmatpush1.msra.mxu0 0.0
        %624 = vmatprep.subr.mxu0 0.0
        %625 = vmatpush1.msra.mxu0 0.0
        %626 = vmatprep.subr.mxu0 0.0
        %627 = vmatpush1.msra.mxu0 0.0
        %628 = vmatprep.subr.mxu0 0.0
        %629 = vmatpush1.msra.mxu0 0.0
        %630 = vmatprep.subr.mxu0 0.0
        %631 = vmatpush1.msra.mxu0 0.0
        %632 = vmatprep.subr.mxu0 0.0
        %633 = vmatpush1.msra.mxu0 0.0
        %634 = vmatprep.subr.mxu0 0.0
        %635 = vmatpush1.msra.mxu0 0.0
        %636 = vmatprep.subr.mxu0 0.0
        %637 = vmatpush1.msra.mxu0 0.0
        %638 = vmatprep.subr.mxu0 0.0
        %639 = vmatpush1.msra.mxu0 0.0
        %640 = vmatprep.subr.mxu0 0.0
        %641 = vmatpush1.msra.mxu0 0.0
        %642 = vmatprep.subr.mxu0 0.0
        %643 = vmatpush1.msra.mxu0 0.0
        %644 = vmatprep.subr.mxu0 0.0
        %645 = vmatpush1.msra.mxu0 0.0
        %646 = vmatprep.subr.mxu0 0.0
        %647 = vmatpush1.msra.mxu0 0.0
        %648 = vmatprep.mubr.f32.mxu0 0.0
        %649 = vmatmul.mubr.f32.gmra.mrb[0].mxu0 %v576
        %v650 = vpop.f32.mrb[0].mxu0
        %v651 = vadd.f32 0.0, %v650
        %v652 = vpop.f32.mrb[0].mxu0
        %v653 = vadd.f32 0.0, %v652
        %654 = vdwg.mxu0
        %v655 = vadd.f32 %v560, %v651
        %v656 = vadd.f32 %v561, %v653
        %v658 = vsel %vm301, %v259, 0
        %v660 = vsel %vm305, %v230, 0
        %v662 = vsel %vm305, %v267, 0
        %664 = vmatprep.subr.mxu0 %v662
        %665 = vmatpush1.msra.mxu0 %v660
        %666 = vmatprep.subr.mxu0 0.0
        %667 = vmatpush1.msra.mxu0 0.0
        %668 = vmatprep.subr.mxu0 0.0
        %669 = vmatpush1.msra.mxu0 0.0
        %670 = vmatprep.subr.mxu0 0.0
        %671 = vmatpush1.msra.mxu0 0.0
        %672 = vmatprep.subr.mxu0 0.0
        %673 = vmatpush1.msra.mxu0 0.0
        %674 = vmatprep.subr.mxu0 0.0
        %675 = vmatpush1.msra.mxu0 0.0
        %676 = vmatprep.subr.mxu0 0.0
        %677 = vmatpush1.msra.mxu0 0.0
        %678 = vmatprep.subr.mxu0 0.0
        %679 = vmatpush1.msra.mxu0 0.0
        %680 = vmatprep.subr.mxu0 0.0
        %681 = vmatpush1.msra.mxu0 0.0
        %682 = vmatprep.subr.mxu0 0.0
        %683 = vmatpush1.msra.mxu0 0.0
        %684 = vmatprep.subr.mxu0 0.0
        %685 = vmatpush1.msra.mxu0 0.0
        %686 = vmatprep.subr.mxu0 0.0
        %687 = vmatpush1.msra.mxu0 0.0
        %688 = vmatprep.subr.mxu0 0.0
        %689 = vmatpush1.msra.mxu0 0.0
        %690 = vmatprep.subr.mxu0 0.0
        %691 = vmatpush1.msra.mxu0 0.0
        %692 = vmatprep.subr.mxu0 0.0
        %693 = vmatpush1.msra.mxu0 0.0
        %694 = vmatprep.subr.mxu0 0.0
        %695 = vmatpush1.msra.mxu0 0.0
        %696 = vmatprep.subr.mxu0 0.0
        %697 = vmatpush1.msra.mxu0 0.0
        %698 = vmatprep.subr.mxu0 0.0
        %699 = vmatpush1.msra.mxu0 0.0
        %700 = vmatprep.subr.mxu0 0.0
        %701 = vmatpush1.msra.mxu0 0.0
        %702 = vmatprep.subr.mxu0 0.0
        %703 = vmatpush1.msra.mxu0 0.0
        %704 = vmatprep.subr.mxu0 0.0
        %705 = vmatpush1.msra.mxu0 0.0
        %706 = vmatprep.subr.mxu0 0.0
        %707 = vmatpush1.msra.mxu0 0.0
        %708 = vmatprep.subr.mxu0 0.0
        %709 = vmatpush1.msra.mxu0 0.0
        %710 = vmatprep.subr.mxu0 0.0
        %711 = vmatpush1.msra.mxu0 0.0
        %712 = vmatprep.subr.mxu0 0.0
        %713 = vmatpush1.msra.mxu0 0.0
        %714 = vmatprep.subr.mxu0 0.0
        %715 = vmatpush1.msra.mxu0 0.0
        %716 = vmatprep.subr.mxu0 0.0
        %717 = vmatpush1.msra.mxu0 0.0
        %718 = vmatprep.subr.mxu0 0.0
        %719 = vmatpush1.msra.mxu0 0.0
        %720 = vmatprep.subr.mxu0 0.0
        %721 = vmatpush1.msra.mxu0 0.0
        %722 = vmatprep.subr.mxu0 0.0
        %723 = vmatpush1.msra.mxu0 0.0
        %724 = vmatprep.subr.mxu0 0.0
        %725 = vmatpush1.msra.mxu0 0.0
        %726 = vmatprep.subr.mxu0 0.0
        %727 = vmatpush1.msra.mxu0 0.0
        %728 = vmatprep.mubr.f32.mxu0 0.0
        %729 = vmatmul.mubr.f32.gmra.mrb[0].mxu0 %v658
        %v730 = vpop.f32.mrb[0].mxu0
        %v731 = vadd.f32 0.0, %v730
        %v732 = vpop.f32.mrb[0].mxu0
        %v733 = vadd.f32 0.0, %v732
        %734 = vdwg.mxu0
        %v735 = vadd.f32 %v655, %v731
        %v736 = vadd.f32 %v656, %v733
        %737 = vrot.lane.b32.xlu0 %v230, 122
        %v738 = vpop.permute.xlu0 %737
        %739 = vrot.lane.b32.xlu0 %v267, 122
        %v740 = vpop.permute.xlu0 %739
        %vm741 = vcmp.lt.s32.totalorder %v224, 122
        %v742 = vsel %vm741, %v738, %v740
        %v743 = vsel %vm741, %v740, %v738
        %v744 = vsel %vm470, 1, 0
        %v745 = vsel %vm471, 1, 0
        %vm746 = vcmp.eq.s32.totalorder %v744, 1
        %vm747 = vcmp.eq.s32.totalorder %v745, 1
        %v748 = vsel %vm746, %v742, 0.0
        %v749 = vsel %vm747, %v743, 0.0
        %v751 = vsel %vm301, %v260, 0
        %v754 = vsel %vm305, %v748, 0
        %v757 = vsel %vm305, %v749, 0
        %759 = vmatprep.subr.mxu0 %v757
        %760 = vmatpush1.msra.mxu0 %v754
        %761 = vmatprep.subr.mxu0 0.0
        %762 = vmatpush1.msra.mxu0 0.0
        %763 = vmatprep.subr.mxu0 0.0
        %764 = vmatpush1.msra.mxu0 0.0
        %765 = vmatprep.subr.mxu0 0.0
        %766 = vmatpush1.msra.mxu0 0.0
        %767 = vmatprep.subr.mxu0 0.0
        %768 = vmatpush1.msra.mxu0 0.0
        %769 = vmatprep.subr.mxu0 0.0
        %770 = vmatpush1.msra.mxu0 0.0
        %771 = vmatprep.subr.mxu0 0.0
        %772 = vmatpush1.msra.mxu0 0.0
        %773 = vmatprep.subr.mxu0 0.0
        %774 = vmatpush1.msra.mxu0 0.0
        %775 = vmatprep.subr.mxu0 0.0
        %776 = vmatpush1.msra.mxu0 0.0
        %777 = vmatprep.subr.mxu0 0.0
        %778 = vmatpush1.msra.mxu0 0.0
        %779 = vmatprep.subr.mxu0 0.0
        %780 = vmatpush1.msra.mxu0 0.0
        %781 = vmatprep.subr.mxu0 0.0
        %782 = vmatpush1.msra.mxu0 0.0
        %783 = vmatprep.subr.mxu0 0.0
        %784 = vmatpush1.msra.mxu0 0.0
        %785 = vmatprep.subr.mxu0 0.0
        %786 = vmatpush1.msra.mxu0 0.0
        %787 = vmatprep.subr.mxu0 0.0
        %788 = vmatpush1.msra.mxu0 0.0
        %789 = vmatprep.subr.mxu0 0.0
        %790 = vmatpush1.msra.mxu0 0.0
        %791 = vmatprep.subr.mxu0 0.0
        %792 = vmatpush1.msra.mxu0 0.0
        %793 = vmatprep.subr.mxu0 0.0
        %794 = vmatpush1.msra.mxu0 0.0
        %795 = vmatprep.subr.mxu0 0.0
        %796 = vmatpush1.msra.mxu0 0.0
        %797 = vmatprep.subr.mxu0 0.0
        %798 = vmatpush1.msra.mxu0 0.0
        %799 = vmatprep.subr.mxu0 0.0
        %800 = vmatpush1.msra.mxu0 0.0
        %801 = vmatprep.subr.mxu0 0.0
        %802 = vmatpush1.msra.mxu0 0.0
        %803 = vmatprep.subr.mxu0 0.0
        %804 = vmatpush1.msra.mxu0 0.0
        %805 = vmatprep.subr.mxu0 0.0
        %806 = vmatpush1.msra.mxu0 0.0
        %807 = vmatprep.subr.mxu0 0.0
        %808 = vmatpush1.msra.mxu0 0.0
        %809 = vmatprep.subr.mxu0 0.0
        %810 = vmatpush1.msra.mxu0 0.0
        %811 = vmatprep.subr.mxu0 0.0
        %812 = vmatpush1.msra.mxu0 0.0
        %813 = vmatprep.subr.mxu0 0.0
        %814 = vmatpush1.msra.mxu0 0.0
        %815 = vmatprep.subr.mxu0 0.0
        %816 = vmatpush1.msra.mxu0 0.0
        %817 = vmatprep.subr.mxu0 0.0
        %818 = vmatpush1.msra.mxu0 0.0
        %819 = vmatprep.subr.mxu0 0.0
        %820 = vmatpush1.msra.mxu0 0.0
        %821 = vmatprep.subr.mxu0 0.0
        %822 = vmatpush1.msra.mxu0 0.0
        %823 = vmatprep.mubr.f32.mxu0 0.0
        %824 = vmatmul.mubr.f32.gmra.mrb[0].mxu0 %v751
        %v825 = vpop.f32.mrb[0].mxu0
        %v826 = vadd.f32 0.0, %v825
        %v827 = vpop.f32.mrb[0].mxu0
        %v828 = vadd.f32 0.0, %v827
        %829 = vdwg.mxu0
        %v830 = vadd.f32 %v735, %v826
        %v831 = vadd.f32 %v736, %v828
        %832 = vrot.lane.b32.xlu0 %v230, 118
        %v833 = vpop.permute.xlu0 %832
        %834 = vrot.lane.b32.xlu0 %v267, 118
        %v835 = vpop.permute.xlu0 %834
        %vm836 = vcmp.lt.s32.totalorder %v224, 118
        %v837 = vsel %vm836, %v833, %v835
        %v838 = vsel %vm836, %v835, %v833
        %vm839 = vcmp.lt.s32.totalorder %v226, 15
        %vm840 = vcmp.lt.s32.totalorder %v227, 15
        %vm841 = vmand %vm839, %vm278
        %vm842 = vmand %vm840, %vm279
        %v843 = vsel %vm841, 1, 0
        %v844 = vsel %vm842, 1, 0
        %vm845 = vcmp.eq.s32.totalorder %v843, 1
        %vm846 = vcmp.eq.s32.totalorder %v844, 1
        %v847 = vsel %vm845, %v837, 0.0
        %v848 = vsel %vm846, %v838, 0.0
        %v850 = vsel %vm301, %v261, 0
        %v853 = vsel %vm305, %v847, 0
        %v856 = vsel %vm305, %v848, 0
        %858 = vmatprep.subr.mxu0 %v856
        %859 = vmatpush1.msra.mxu0 %v853
        %860 = vmatprep.subr.mxu0 0.0
        %861 = vmatpush1.msra.mxu0 0.0
        %862 = vmatprep.subr.mxu0 0.0
        %863 = vmatpush1.msra.mxu0 0.0
        %864 = vmatprep.subr.mxu0 0.0
        %865 = vmatpush1.msra.mxu0 0.0
        %866 = vmatprep.subr.mxu0 0.0
        %867 = vmatpush1.msra.mxu0 0.0
        %868 = vmatprep.subr.mxu0 0.0
        %869 = vmatpush1.msra.mxu0 0.0
        %870 = vmatprep.subr.mxu0 0.0
        %871 = vmatpush1.msra.mxu0 0.0
        %872 = vmatprep.subr.mxu0 0.0
        %873 = vmatpush1.msra.mxu0 0.0
        %874 = vmatprep.subr.mxu0 0.0
        %875 = vmatpush1.msra.mxu0 0.0
        %876 = vmatprep.subr.mxu0 0.0
        %877 = vmatpush1.msra.mxu0 0.0
        %878 = vmatprep.subr.mxu0 0.0
        %879 = vmatpush1.msra.mxu0 0.0
        %880 = vmatprep.subr.mxu0 0.0
        %881 = vmatpush1.msra.mxu0 0.0
        %882 = vmatprep.subr.mxu0 0.0
        %883 = vmatpush1.msra.mxu0 0.0
        %884 = vmatprep.subr.mxu0 0.0
        %885 = vmatpush1.msra.mxu0 0.0
        %886 = vmatprep.subr.mxu0 0.0
        %887 = vmatpush1.msra.mxu0 0.0
        %888 = vmatprep.subr.mxu0 0.0
        %889 = vmatpush1.msra.mxu0 0.0
        %890 = vmatprep.subr.mxu0 0.0
        %891 = vmatpush1.msra.mxu0 0.0
        %892 = vmatprep.subr.mxu0 0.0
        %893 = vmatpush1.msra.mxu0 0.0
        %894 = vmatprep.subr.mxu0 0.0
        %895 = vmatpush1.msra.mxu0 0.0
        %896 = vmatprep.subr.mxu0 0.0
        %897 = vmatpush1.msra.mxu0 0.0
        %898 = vmatprep.subr.mxu0 0.0
        %899 = vmatpush1.msra.mxu0 0.0
        %900 = vmatprep.subr.mxu0 0.0
        %901 = vmatpush1.msra.mxu0 0.0
        %902 = vmatprep.subr.mxu0 0.0
        %903 = vmatpush1.msra.mxu0 0.0
        %904 = vmatprep.subr.mxu0 0.0
        %905 = vmatpush1.msra.mxu0 0.0
        %906 = vmatprep.subr.mxu0 0.0
        %907 = vmatpush1.msra.mxu0 0.0
        %908 = vmatprep.subr.mxu0 0.0
        %909 = vmatpush1.msra.mxu0 0.0
        %910 = vmatprep.subr.mxu0 0.0
        %911 = vmatpush1.msra.mxu0 0.0
        %912 = vmatprep.subr.mxu0 0.0
        %913 = vmatpush1.msra.mxu0 0.0
        %914 = vmatprep.subr.mxu0 0.0
        %915 = vmatpush1.msra.mxu0 0.0
        %916 = vmatprep.subr.mxu0 0.0
        %917 = vmatpush1.msra.mxu0 0.0
        %918 = vmatprep.subr.mxu0 0.0
        %919 = vmatpush1.msra.mxu0 0.0
        %920 = vmatprep.subr.mxu0 0.0
        %921 = vmatpush1.msra.mxu0 0.0
        %922 = vmatprep.mubr.f32.mxu0 0.0
        %923 = vmatmul.mubr.f32.gmra.mrb[0].mxu0 %v850
        %v924 = vpop.f32.mrb[0].mxu0
        %v925 = vadd.f32 0.0, %v924
        %v926 = vpop.f32.mrb[0].mxu0
        %v927 = vadd.f32 0.0, %v926
        %928 = vdwg.mxu0
        %v929 = vadd.f32 %v830, %v925
        %v930 = vadd.f32 %v831, %v927
        %931 = vrot.lane.b32.xlu0 %v230, 112
        %v932 = vpop.permute.xlu0 %931
        %933 = vrot.lane.b32.xlu0 %v267, 112
        %v934 = vpop.permute.xlu0 %933
        %vm935 = vcmp.lt.s32.totalorder %v224, 112
        %v936 = vsel %vm935, %v932, %v934
        %v937 = vsel %vm935, %v934, %v932
        %v938 = vsel %vm839, 1, 0
        %v939 = vsel %vm840, 1, 0
        %vm940 = vcmp.eq.s32.totalorder %v938, 1
        %vm941 = vcmp.eq.s32.totalorder %v939, 1
        %v942 = vsel %vm940, %v936, 0.0
        %v943 = vsel %vm941, %v937, 0.0
        %v945 = vsel %vm301, %v262, 0
        %v948 = vsel %vm305, %v942, 0
        %v951 = vsel %vm305, %v943, 0
        %953 = vmatprep.subr.mxu0 %v951
        %954 = vmatpush1.msra.mxu0 %v948
        %955 = vmatprep.subr.mxu0 0.0
        %956 = vmatpush1.msra.mxu0 0.0
        %957 = vmatprep.subr.mxu0 0.0
        %958 = vmatpush1.msra.mxu0 0.0
        %959 = vmatprep.subr.mxu0 0.0
        %960 = vmatpush1.msra.mxu0 0.0
        %961 = vmatprep.subr.mxu0 0.0
        %962 = vmatpush1.msra.mxu0 0.0
        %963 = vmatprep.subr.mxu0 0.0
        %964 = vmatpush1.msra.mxu0 0.0
        %965 = vmatprep.subr.mxu0 0.0
        %966 = vmatpush1.msra.mxu0 0.0
        %967 = vmatprep.subr.mxu0 0.0
        %968 = vmatpush1.msra.mxu0 0.0
        %969 = vmatprep.subr.mxu0 0.0
        %970 = vmatpush1.msra.mxu0 0.0
        %971 = vmatprep.subr.mxu0 0.0
        %972 = vmatpush1.msra.mxu0 0.0
        %973 = vmatprep.subr.mxu0 0.0
        %974 = vmatpush1.msra.mxu0 0.0
        %975 = vmatprep.subr.mxu0 0.0
        %976 = vmatpush1.msra.mxu0 0.0
        %977 = vmatprep.subr.mxu0 0.0
        %978 = vmatpush1.msra.mxu0 0.0
        %979 = vmatprep.subr.mxu0 0.0
        %980 = vmatpush1.msra.mxu0 0.0
        %981 = vmatprep.subr.mxu0 0.0
        %982 = vmatpush1.msra.mxu0 0.0
        %983 = vmatprep.subr.mxu0 0.0
        %984 = vmatpush1.msra.mxu0 0.0
        %985 = vmatprep.subr.mxu0 0.0
        %986 = vmatpush1.msra.mxu0 0.0
        %987 = vmatprep.subr.mxu0 0.0
        %988 = vmatpush1.msra.mxu0 0.0
        %989 = vmatprep.subr.mxu0 0.0
        %990 = vmatpush1.msra.mxu0 0.0
        %991 = vmatprep.subr.mxu0 0.0
        %992 = vmatpush1.msra.mxu0 0.0
        %993 = vmatprep.subr.mxu0 0.0
        %994 = vmatpush1.msra.mxu0 0.0
        %995 = vmatprep.subr.mxu0 0.0
        %996 = vmatpush1.msra.mxu0 0.0
        %997 = vmatprep.subr.mxu0 0.0
        %998 = vmatpush1.msra.mxu0 0.0
        %999 = vmatprep.subr.mxu0 0.0
        %1000 = vmatpush1.msra.mxu0 0.0
        %1001 = vmatprep.subr.mxu0 0.0
        %1002 = vmatpush1.msra.mxu0 0.0
        %1003 = vmatprep.subr.mxu0 0.0
        %1004 = vmatpush1.msra.mxu0 0.0
        %1005 = vmatprep.subr.mxu0 0.0
        %1006 = vmatpush1.msra.mxu0 0.0
        %1007 = vmatprep.subr.mxu0 0.0
        %1008 = vmatpush1.msra.mxu0 0.0
        %1009 = vmatprep.subr.mxu0 0.0
        %1010 = vmatpush1.msra.mxu0 0.0
        %1011 = vmatprep.subr.mxu0 0.0
        %1012 = vmatpush1.msra.mxu0 0.0
        %1013 = vmatprep.subr.mxu0 0.0
        %1014 = vmatpush1.msra.mxu0 0.0
        %1015 = vmatprep.subr.mxu0 0.0
        %1016 = vmatpush1.msra.mxu0 0.0
        %1017 = vmatprep.mubr.f32.mxu0 0.0
        %1018 = vmatmul.mubr.f32.gmra.mrb[0].mxu0 %v945
        %v1019 = vpop.f32.mrb[0].mxu0
        %v1020 = vadd.f32 0.0, %v1019
        %v1021 = vpop.f32.mrb[0].mxu0
        %v1022 = vadd.f32 0.0, %v1021
        %1023 = vdwg.mxu0
        %v1024 = vadd.f32 %v929, %v1020
        %v1025 = vadd.f32 %v930, %v1022
        %1026 = vrot.lane.b32.xlu0 %v230, 106
        %v1027 = vpop.permute.xlu0 %1026
        %1028 = vrot.lane.b32.xlu0 %v267, 106
        %v1029 = vpop.permute.xlu0 %1028
        %vm1030 = vcmp.lt.s32.totalorder %v224, 106
        %v1031 = vsel %vm1030, %v1027, %v1029
        %v1032 = vsel %vm1030, %v1029, %v1027
        %vm1033 = vmand %vm839, %vm470
        %vm1034 = vmand %vm840, %vm471
        %v1035 = vsel %vm1033, 1, 0
        %v1036 = vsel %vm1034, 1, 0
        %vm1037 = vcmp.eq.s32.totalorder %v1035, 1
        %vm1038 = vcmp.eq.s32.totalorder %v1036, 1
        %v1039 = vsel %vm1037, %v1031, 0.0
        %v1040 = vsel %vm1038, %v1032, 0.0
        %v1042 = vsel %vm301, %v263, 0
        %v1045 = vsel %vm305, %v1039, 0
        %v1048 = vsel %vm305, %v1040, 0
        %1050 = vmatprep.subr.mxu0 %v1048
        %1051 = vmatpush1.msra.mxu0 %v1045
        %1052 = vmatprep.subr.mxu0 0.0
        %1053 = vmatpush1.msra.mxu0 0.0
        %1054 = vmatprep.subr.mxu0 0.0
        %1055 = vmatpush1.msra.mxu0 0.0
        %1056 = vmatprep.subr.mxu0 0.0
        %1057 = vmatpush1.msra.mxu0 0.0
        %1058 = vmatprep.subr.mxu0 0.0
        %1059 = vmatpush1.msra.mxu0 0.0
        %1060 = vmatprep.subr.mxu0 0.0
        %1061 = vmatpush1.msra.mxu0 0.0
        %1062 = vmatprep.subr.mxu0 0.0
        %1063 = vmatpush1.msra.mxu0 0.0
        %1064 = vmatprep.subr.mxu0 0.0
        %1065 = vmatpush1.msra.mxu0 0.0
        %1066 = vmatprep.subr.mxu0 0.0
        %1067 = vmatpush1.msra.mxu0 0.0
        %1068 = vmatprep.subr.mxu0 0.0
        %1069 = vmatpush1.msra.mxu0 0.0
        %1070 = vmatprep.subr.mxu0 0.0
        %1071 = vmatpush1.msra.mxu0 0.0
        %1072 = vmatprep.subr.mxu0 0.0
        %1073 = vmatpush1.msra.mxu0 0.0
        %1074 = vmatprep.subr.mxu0 0.0
        %1075 = vmatpush1.msra.mxu0 0.0
        %1076 = vmatprep.subr.mxu0 0.0
        %1077 = vmatpush1.msra.mxu0 0.0
        %1078 = vmatprep.subr.mxu0 0.0
        %1079 = vmatpush1.msra.mxu0 0.0
        %1080 = vmatprep.subr.mxu0 0.0
        %1081 = vmatpush1.msra.mxu0 0.0
        %1082 = vmatprep.subr.mxu0 0.0
        %1083 = vmatpush1.msra.mxu0 0.0
        %1084 = vmatprep.subr.mxu0 0.0
        %1085 = vmatpush1.msra.mxu0 0.0
        %1086 = vmatprep.subr.mxu0 0.0
        %1087 = vmatpush1.msra.mxu0 0.0
        %1088 = vmatprep.subr.mxu0 0.0
        %1089 = vmatpush1.msra.mxu0 0.0
        %1090 = vmatprep.subr.mxu0 0.0
        %1091 = vmatpush1.msra.mxu0 0.0
        %1092 = vmatprep.subr.mxu0 0.0
        %1093 = vmatpush1.msra.mxu0 0.0
        %1094 = vmatprep.subr.mxu0 0.0
        %1095 = vmatpush1.msra.mxu0 0.0
        %1096 = vmatprep.subr.mxu0 0.0
        %1097 = vmatpush1.msra.mxu0 0.0
        %1098 = vmatprep.subr.mxu0 0.0
        %1099 = vmatpush1.msra.mxu0 0.0
        %1100 = vmatprep.subr.mxu0 0.0
        %1101 = vmatpush1.msra.mxu0 0.0
        %1102 = vmatprep.subr.mxu0 0.0
        %1103 = vmatpush1.msra.mxu0 0.0
        %1104 = vmatprep.subr.mxu0 0.0
        %1105 = vmatpush1.msra.mxu0 0.0
        %1106 = vmatprep.subr.mxu0 0.0
        %1107 = vmatpush1.msra.mxu0 0.0
        %1108 = vmatprep.subr.mxu0 0.0
        %1109 = vmatpush1.msra.mxu0 0.0
        %1110 = vmatprep.subr.mxu0 0.0
        %1111 = vmatpush1.msra.mxu0 0.0
        %1112 = vmatprep.subr.mxu0 0.0
        %1113 = vmatpush1.msra.mxu0 0.0
        %1114 = vmatprep.mubr.f32.mxu0 0.0
        %1115 = vmatmul.mubr.f32.gmra.mrb[0].mxu0 %v1042
        %v1116 = vpop.f32.mrb[0].mxu0
        %v1117 = vadd.f32 0.0, %v1116
        %v1118 = vpop.f32.mrb[0].mxu0
        %v1119 = vadd.f32 0.0, %v1118
        %1120 = vdwg.mxu0
        %v1121 = vadd.f32 %v1024, %v1117
        %v1122 = vadd.f32 %v1025, %v1119
        %1124 = vset.pattern.permute.xlu0 0
        %1125 = vperm.xlu0 %1124, %v264
        %v1126 = vpop.permute.xlu0 %1125
        %v1128 = vmul.f32 %v1121, %v1126
        %v1129 = vmul.f32 %v1122, %v1126
        %1131 = vset.pattern.permute.xlu0 0
        %1132 = vperm.xlu0 %1131, %v265
        %v1133 = vpop.permute.xlu0 %1132
        %v1135 = vadd.f32 %v1128, %v1133
        %v1136 = vadd.f32 %v1129, %v1133
        %v1137 = vmax.f32 %v1135, 0.0
        %v1138 = vmax.f32 %v1136, 0.0
        %s1139 = scalar_lea.vmem %s3, 8
        %v1140 = vld [vmem:[%s1139] sm:$0xff]
        %s1141 = scalar_lea.vmem %s4, 8
        %v1142 = vld [vmem:[%s1141] sm:$0xff]
        %1143 = vrot.lane.b32.xlu0 %v1137, 15
        %v1144 = vpop.permute.xlu0 %1143
        %1145 = vrot.lane.b32.xlu0 %v1138, 15
        %v1146 = vpop.permute.xlu0 %1145
        %vm1147 = vcmp.lt.s32.totalorder %v224, 15
        %v1148 = vsel %vm1147, %v1144, %v1146
        %v1149 = vsel %vm1147, %v1146, %v1144
        %vm1150 = vcmp.ge.s32.totalorder %v228, 15
        %vm1151 = vcmp.ge.s32.totalorder %v229, 15
        %v1152 = vsel %vm1150, 1, 0
        %v1153 = vsel %vm1151, 1, 0
        %vm1154 = vcmp.eq.s32.totalorder %v1152, 1
        %vm1155 = vcmp.eq.s32.totalorder %v1153, 1
        %v1156 = vsel %vm1154, %v1149, 0.0
        %v1157 = vsel %vm1155, %v1148, 0.0
        %vm1158 = vcmask 64512
        %v1160 = vsel %vm1158, %v232, 0
        %1162 = vmatprep.subr.mxu0 %v1138
        %1163 = vmatpush1.msra.mxu0 %v1137
        %1164 = vmatprep.subr.mxu0 0.0
        %1165 = vmatpush1.msra.mxu0 0.0
        %1166 = vmatprep.subr.mxu0 0.0
        %1167 = vmatpush1.msra.mxu0 0.0
        %1168 = vmatprep.subr.mxu0 0.0
        %1169 = vmatpush1.msra.mxu0 0.0
        %1170 = vmatprep.subr.mxu0 0.0
        %1171 = vmatpush1.msra.mxu0 0.0
        %1172 = vmatprep.subr.mxu0 0.0
        %1173 = vmatpush1.msra.mxu0 0.0
        %1174 = vmatprep.subr.mxu0 0.0
        %1175 = vmatpush1.msra.mxu0 0.0
        %1176 = vmatprep.subr.mxu0 0.0
        %1177 = vmatpush1.msra.mxu0 0.0
        %1178 = vmatprep.subr.mxu0 0.0
        %1179 = vmatpush1.msra.mxu0 0.0
        %1180 = vmatprep.subr.mxu0 0.0
        %1181 = vmatpush1.msra.mxu0 0.0
        %1182 = vmatprep.subr.mxu0 0.0
        %1183 = vmatpush1.msra.mxu0 0.0
        %1184 = vmatprep.subr.mxu0 0.0
        %1185 = vmatpush1.msra.mxu0 0.0
        %1186 = vmatprep.subr.mxu0 0.0
        %1187 = vmatpush1.msra.mxu0 0.0
        %1188 = vmatprep.subr.mxu0 0.0
        %1189 = vmatpush1.msra.mxu0 0.0
        %1190 = vmatprep.subr.mxu0 0.0
        %1191 = vmatpush1.msra.mxu0 0.0
        %1192 = vmatprep.subr.mxu0 0.0
        %1193 = vmatpush1.msra.mxu0 0.0
        %1194 = vmatprep.subr.mxu0 0.0
        %1195 = vmatpush1.msra.mxu0 0.0
        %1196 = vmatprep.subr.mxu0 0.0
        %1197 = vmatpush1.msra.mxu0 0.0
        %1198 = vmatprep.subr.mxu0 0.0
        %1199 = vmatpush1.msra.mxu0 0.0
        %1200 = vmatprep.subr.mxu0 0.0
        %1201 = vmatpush1.msra.mxu0 0.0
        %1202 = vmatprep.subr.mxu0 0.0
        %1203 = vmatpush1.msra.mxu0 0.0
        %1204 = vmatprep.subr.mxu0 0.0
        %1205 = vmatpush1.msra.mxu0 0.0
        %1206 = vmatprep.subr.mxu0 0.0
        %1207 = vmatpush1.msra.mxu0 0.0
        %1208 = vmatprep.subr.mxu0 0.0
        %1209 = vmatpush1.msra.mxu0 0.0
        %1210 = vmatprep.subr.mxu0 0.0
        %1211 = vmatpush1.msra.mxu0 0.0
        %1212 = vmatprep.subr.mxu0 0.0
        %1213 = vmatpush1.msra.mxu0 0.0
        %1214 = vmatprep.subr.mxu0 0.0
        %1215 = vmatpush1.msra.mxu0 0.0
        %1216 = vmatprep.subr.mxu0 0.0
        %1217 = vmatpush1.msra.mxu0 0.0
        %1218 = vmatprep.subr.mxu0 0.0
        %1219 = vmatpush1.msra.mxu0 0.0
        %1220 = vmatprep.subr.mxu0 0.0
        %1221 = vmatpush1.msra.mxu0 0.0
        %1222 = vmatprep.subr.mxu0 0.0
        %1223 = vmatpush1.msra.mxu0 0.0
        %1224 = vmatprep.subr.mxu0 0.0
        %1225 = vmatpush1.msra.mxu0 0.0
        %1226 = vmatprep.mubr.f32.mxu0 0.0
        %1227 = vmatmul.mubr.f32.gmra.mrb[0].mxu0 %v1160
        %v1228 = vpop.f32.mrb[0].mxu0
        %v1229 = vadd.f32 0.0, %v1228
        %v1230 = vpop.f32.mrb[0].mxu0
        %v1231 = vadd.f32 0.0, %v1230
        %1232 = vdwg.mxu0
        %v1234 = vsel %vm1158, %v231, 0
        %1236 = vmatprep.subr.mxu0 %v1157
        %1237 = vmatpush1.msra.mxu0 %v1156
        %1238 = vmatprep.subr.mxu0 0.0
        %1239 = vmatpush1.msra.mxu0 0.0
        %1240 = vmatprep.subr.mxu0 0.0
        %1241 = vmatpush1.msra.mxu0 0.0
        %1242 = vmatprep.subr.mxu0 0.0
        %1243 = vmatpush1.msra.mxu0 0.0
        %1244 = vmatprep.subr.mxu0 0.0
        %1245 = vmatpush1.msra.mxu0 0.0
        %1246 = vmatprep.subr.mxu0 0.0
        %1247 = vmatpush1.msra.mxu0 0.0
        %1248 = vmatprep.subr.mxu0 0.0
        %1249 = vmatpush1.msra.mxu0 0.0
        %1250 = vmatprep.subr.mxu0 0.0
        %1251 = vmatpush1.msra.mxu0 0.0
        %1252 = vmatprep.subr.mxu0 0.0
        %1253 = vmatpush1.msra.mxu0 0.0
        %1254 = vmatprep.subr.mxu0 0.0
        %1255 = vmatpush1.msra.mxu0 0.0
        %1256 = vmatprep.subr.mxu0 0.0
        %1257 = vmatpush1.msra.mxu0 0.0
        %1258 = vmatprep.subr.mxu0 0.0
        %1259 = vmatpush1.msra.mxu0 0.0
        %1260 = vmatprep.subr.mxu0 0.0
        %1261 = vmatpush1.msra.mxu0 0.0
        %1262 = vmatprep.subr.mxu0 0.0
        %1263 = vmatpush1.msra.mxu0 0.0
        %1264 = vmatprep.subr.mxu0 0.0
        %1265 = vmatpush1.msra.mxu0 0.0
        %1266 = vmatprep.subr.mxu0 0.0
        %1267 = vmatpush1.msra.mxu0 0.0
        %1268 = vmatprep.subr.mxu0 0.0
        %1269 = vmatpush1.msra.mxu0 0.0
        %1270 = vmatprep.subr.mxu0 0.0
        %1271 = vmatpush1.msra.mxu0 0.0
        %1272 = vmatprep.subr.mxu0 0.0
        %1273 = vmatpush1.msra.mxu0 0.0
        %1274 = vmatprep.subr.mxu0 0.0
        %1275 = vmatpush1.msra.mxu0 0.0
        %1276 = vmatprep.subr.mxu0 0.0
        %1277 = vmatpush1.msra.mxu0 0.0
        %1278 = vmatprep.subr.mxu0 0.0
        %1279 = vmatpush1.msra.mxu0 0.0
        %1280 = vmatprep.subr.mxu0 0.0
        %1281 = vmatpush1.msra.mxu0 0.0
        %1282 = vmatprep.subr.mxu0 0.0
        %1283 = vmatpush1.msra.mxu0 0.0
        %1284 = vmatprep.subr.mxu0 0.0
        %1285 = vmatpush1.msra.mxu0 0.0
        %1286 = vmatprep.subr.mxu0 0.0
        %1287 = vmatpush1.msra.mxu0 0.0
        %1288 = vmatprep.subr.mxu0 0.0
        %1289 = vmatpush1.msra.mxu0 0.0
        %1290 = vmatprep.subr.mxu0 0.0
        %1291 = vmatpush1.msra.mxu0 0.0
        %1292 = vmatprep.subr.mxu0 0.0
        %1293 = vmatpush1.msra.mxu0 0.0
        %1294 = vmatprep.subr.mxu0 0.0
        %1295 = vmatpush1.msra.mxu0 0.0
        %1296 = vmatprep.subr.mxu0 0.0
        %1297 = vmatpush1.msra.mxu0 0.0
        %1298 = vmatprep.subr.mxu0 0.0
        %1299 = vmatpush1.msra.mxu0 0.0
        %1300 = vmatprep.mubr.f32.mxu0 0.0
        %1301 = vmatmul.mubr.f32.gmra.mrb[0].mxu0 %v1234
        %v1302 = vpop.f32.mrb[0].mxu0
        %v1303 = vadd.f32 %v1229, %v1302
        %v1304 = vpop.f32.mrb[0].mxu0
        %v1305 = vadd.f32 %v1231, %v1304
        %1306 = vdwg.mxu0
        %1307 = vrot.lane.b32.xlu0 %v1137, 113
        %v1308 = vpop.permute.xlu0 %1307
        %1309 = vrot.lane.b32.xlu0 %v1138, 113
        %v1310 = vpop.permute.xlu0 %1309
        %vm1311 = vcmp.lt.s32.totalorder %v224, 113
        %v1312 = vsel %vm1311, %v1308, %v1310
        %v1313 = vsel %vm1311, %v1310, %v1308
        %vm1314 = vcmp.lt.s32.totalorder %v228, 1
        %vm1315 = vcmp.lt.s32.totalorder %v229, 1
        %v1316 = vsel %vm1314, 1, 0
        %v1317 = vsel %vm1315, 1, 0
        %vm1318 = vcmp.eq.s32.totalorder %v1316, 1
        %vm1319 = vcmp.eq.s32.totalorder %v1317, 1
        %v1320 = vsel %vm1318, %v1312, 0.0
        %v1321 = vsel %vm1319, %v1313, 0.0
        %v1323 = vsel %vm1158, %v233, 0
        %1325 = vmatprep.subr.mxu0 %v1321
        %1326 = vmatpush1.msra.mxu0 %v1320
        %1327 = vmatprep.subr.mxu0 0.0
        %1328 = vmatpush1.msra.mxu0 0.0
        %1329 = vmatprep.subr.mxu0 0.0
        %1330 = vmatpush1.msra.mxu0 0.0
        %1331 = vmatprep.subr.mxu0 0.0
        %1332 = vmatpush1.msra.mxu0 0.0
        %1333 = vmatprep.subr.mxu0 0.0
        %1334 = vmatpush1.msra.mxu0 0.0
        %1335 = vmatprep.subr.mxu0 0.0
        %1336 = vmatpush1.msra.mxu0 0.0
        %1337 = vmatprep.subr.mxu0 0.0
        %1338 = vmatpush1.msra.mxu0 0.0
        %1339 = vmatprep.subr.mxu0 0.0
        %1340 = vmatpush1.msra.mxu0 0.0
        %1341 = vmatprep.subr.mxu0 0.0
        %1342 = vmatpush1.msra.mxu0 0.0
        %1343 = vmatprep.subr.mxu0 0.0
        %1344 = vmatpush1.msra.mxu0 0.0
        %1345 = vmatprep.subr.mxu0 0.0
        %1346 = vmatpush1.msra.mxu0 0.0
        %1347 = vmatprep.subr.mxu0 0.0
        %1348 = vmatpush1.msra.mxu0 0.0
        %1349 = vmatprep.subr.mxu0 0.0
        %1350 = vmatpush1.msra.mxu0 0.0
        %1351 = vmatprep.subr.mxu0 0.0
        %1352 = vmatpush1.msra.mxu0 0.0
        %1353 = vmatprep.subr.mxu0 0.0
        %1354 = vmatpush1.msra.mxu0 0.0
        %1355 = vmatprep.subr.mxu0 0.0
        %1356 = vmatpush1.msra.mxu0 0.0
        %1357 = vmatprep.subr.mxu0 0.0
        %1358 = vmatpush1.msra.mxu0 0.0
        %1359 = vmatprep.subr.mxu0 0.0
        %1360 = vmatpush1.msra.mxu0 0.0
        %1361 = vmatprep.subr.mxu0 0.0
        %1362 = vmatpush1.msra.mxu0 0.0
        %1363 = vmatprep.subr.mxu0 0.0
        %1364 = vmatpush1.msra.mxu0 0.0
        %1365 = vmatprep.subr.mxu0 0.0
        %1366 = vmatpush1.msra.mxu0 0.0
        %1367 = vmatprep.subr.mxu0 0.0
        %1368 = vmatpush1.msra.mxu0 0.0
        %1369 = vmatprep.subr.mxu0 0.0
        %1370 = vmatpush1.msra.mxu0 0.0
        %1371 = vmatprep.subr.mxu0 0.0
        %1372 = vmatpush1.msra.mxu0 0.0
        %1373 = vmatprep.subr.mxu0 0.0
        %1374 = vmatpush1.msra.mxu0 0.0
        %1375 = vmatprep.subr.mxu0 0.0
        %1376 = vmatpush1.msra.mxu0 0.0
        %1377 = vmatprep.subr.mxu0 0.0
        %1378 = vmatpush1.msra.mxu0 0.0
        %1379 = vmatprep.subr.mxu0 0.0
        %1380 = vmatpush1.msra.mxu0 0.0
        %1381 = vmatprep.subr.mxu0 0.0
        %1382 = vmatpush1.msra.mxu0 0.0
        %1383 = vmatprep.subr.mxu0 0.0
        %1384 = vmatpush1.msra.mxu0 0.0
        %1385 = vmatprep.subr.mxu0 0.0
        %1386 = vmatpush1.msra.mxu0 0.0
        %1387 = vmatprep.subr.mxu0 0.0
        %1388 = vmatpush1.msra.mxu0 0.0
        %1389 = vmatprep.mubr.f32.mxu0 0.0
        %1390 = vmatmul.mubr.f32.gmra.mrb[0].mxu0 %v1323
        %v1391 = vpop.f32.mrb[0].mxu0
        %v1392 = vadd.f32 0.0, %v1391
        %v1393 = vpop.f32.mrb[0].mxu0
        %v1394 = vadd.f32 0.0, %v1393
        %1395 = vdwg.mxu0
        %v1396 = vadd.f32 %v1303, %v1392
        %v1397 = vadd.f32 %v1305, %v1394
        %1399 = vset.pattern.permute.xlu0 0
        %1400 = vperm.xlu0 %1399, %v1140
        %v1401 = vpop.permute.xlu0 %1400
        %v1403 = vmul.f32 %v1396, %v1401
        %v1404 = vmul.f32 %v1397, %v1401
        %1406 = vset.pattern.permute.xlu0 0
        %1407 = vperm.xlu0 %1406, %v1142
        %v1408 = vpop.permute.xlu0 %1407
        %v1410 = vadd.f32 %v1403, %v1408
        %v1411 = vadd.f32 %v1404, %v1408
        %v1412 = vmax.f32 %v1410, 0.0
        %v1413 = vmax.f32 %v1411, 0.0
        %s1414 = scalar_lea.vmem %s3, 16
        %v1415 = vld [vmem:[%s1414] sm:$0xff]
        %s1416 = scalar_lea.vmem %s4, 16
        %v1417 = vld [vmem:[%s1416] sm:$0xff]
        %1418 = vrot.lane.b32.xlu0 %v1137, 96
        %v1419 = vpop.permute.xlu0 %1418
        %1420 = vrot.lane.b32.xlu0 %v1138, 96
        %v1421 = vpop.permute.xlu0 %1420
        %vm1422 = vcmp.lt.s32.totalorder %v224, 96
        %v1423 = vsel %vm1422, %v1419, %v1421
        %v1424 = vsel %vm1422, %v1421, %v1419
        %vm1425 = vcmp.ge.s32.totalorder %v226, 6
        %vm1426 = vcmp.ge.s32.totalorder %v227, 6
        %v1427 = vsel %vm1425, 1, 0
        %v1428 = vsel %vm1426, 1, 0
        %vm1429 = vcmp.eq.s32.totalorder %v1427, 1
        %vm1430 = vcmp.eq.s32.totalorder %v1428, 1
        %v1431 = vsel %vm1429, %v1424, 0.0
        %v1432 = vsel %vm1430, %v1423, 0.0
        %v1434 = vsel %vm1158, %v235, 0
        %1436 = vmatprep.subr.mxu0 %v1138
        %1437 = vmatpush1.msra.mxu0 %v1137
        %1438 = vmatprep.subr.mxu0 0.0
        %1439 = vmatpush1.msra.mxu0 0.0
        %1440 = vmatprep.subr.mxu0 0.0
        %1441 = vmatpush1.msra.mxu0 0.0
        %1442 = vmatprep.subr.mxu0 0.0
        %1443 = vmatpush1.msra.mxu0 0.0
        %1444 = vmatprep.subr.mxu0 0.0
        %1445 = vmatpush1.msra.mxu0 0.0
        %1446 = vmatprep.subr.mxu0 0.0
        %1447 = vmatpush1.msra.mxu0 0.0
        %1448 = vmatprep.subr.mxu0 0.0
        %1449 = vmatpush1.msra.mxu0 0.0
        %1450 = vmatprep.subr.mxu0 0.0
        %1451 = vmatpush1.msra.mxu0 0.0
        %1452 = vmatprep.subr.mxu0 0.0
        %1453 = vmatpush1.msra.mxu0 0.0
        %1454 = vmatprep.subr.mxu0 0.0
        %1455 = vmatpush1.msra.mxu0 0.0
        %1456 = vmatprep.subr.mxu0 0.0
        %1457 = vmatpush1.msra.mxu0 0.0
        %1458 = vmatprep.subr.mxu0 0.0
        %1459 = vmatpush1.msra.mxu0 0.0
        %1460 = vmatprep.subr.mxu0 0.0
        %1461 = vmatpush1.msra.mxu0 0.0
        %1462 = vmatprep.subr.mxu0 0.0
        %1463 = vmatpush1.msra.mxu0 0.0
        %1464 = vmatprep.subr.mxu0 0.0
        %1465 = vmatpush1.msra.mxu0 0.0
        %1466 = vmatprep.subr.mxu0 0.0
        %1467 = vmatpush1.msra.mxu0 0.0
        %1468 = vmatprep.subr.mxu0 0.0
        %1469 = vmatpush1.msra.mxu0 0.0
        %1470 = vmatprep.subr.mxu0 0.0
        %1471 = vmatpush1.msra.mxu0 0.0
        %1472 = vmatprep.subr.mxu0 0.0
        %1473 = vmatpush1.msra.mxu0 0.0
        %1474 = vmatprep.subr.mxu0 0.0
        %1475 = vmatpush1.msra.mxu0 0.0
        %1476 = vmatprep.subr.mxu0 0.0
        %1477 = vmatpush1.msra.mxu0 0.0
        %1478 = vmatprep.subr.mxu0 0.0
        %1479 = vmatpush1.msra.mxu0 0.0
        %1480 = vmatprep.subr.mxu0 0.0
        %1481 = vmatpush1.msra.mxu0 0.0
        %1482 = vmatprep.subr.mxu0 0.0
        %1483 = vmatpush1.msra.mxu0 0.0
        %1484 = vmatprep.subr.mxu0 0.0
        %1485 = vmatpush1.msra.mxu0 0.0
        %1486 = vmatprep.subr.mxu0 0.0
        %1487 = vmatpush1.msra.mxu0 0.0
        %1488 = vmatprep.subr.mxu0 0.0
        %1489 = vmatpush1.msra.mxu0 0.0
        %1490 = vmatprep.subr.mxu0 0.0
        %1491 = vmatpush1.msra.mxu0 0.0
        %1492 = vmatprep.subr.mxu0 0.0
        %1493 = vmatpush1.msra.mxu0 0.0
        %1494 = vmatprep.subr.mxu0 0.0
        %1495 = vmatpush1.msra.mxu0 0.0
        %1496 = vmatprep.subr.mxu0 0.0
        %1497 = vmatpush1.msra.mxu0 0.0
        %1498 = vmatprep.subr.mxu0 0.0
        %1499 = vmatpush1.msra.mxu0 0.0
        %1500 = vmatprep.mubr.f32.mxu0 0.0
        %1501 = vmatmul.mubr.f32.gmra.mrb[0].mxu0 %v1434
        %v1502 = vpop.f32.mrb[0].mxu0
        %v1503 = vadd.f32 0.0, %v1502
        %v1504 = vpop.f32.mrb[0].mxu0
        %v1505 = vadd.f32 0.0, %v1504
        %1506 = vdwg.mxu0
        %v1508 = vsel %vm1158, %v234, 0
        %1510 = vmatprep.subr.mxu0 %v1432
        %1511 = vmatpush1.msra.mxu0 %v1431
        %1512 = vmatprep.subr.mxu0 0.0
        %1513 = vmatpush1.msra.mxu0 0.0
        %1514 = vmatprep.subr.mxu0 0.0
        %1515 = vmatpush1.msra.mxu0 0.0
        %1516 = vmatprep.subr.mxu0 0.0
        %1517 = vmatpush1.msra.mxu0 0.0
        %1518 = vmatprep.subr.mxu0 0.0
        %1519 = vmatpush1.msra.mxu0 0.0
        %1520 = vmatprep.subr.mxu0 0.0
        %1521 = vmatpush1.msra.mxu0 0.0
        %1522 = vmatprep.subr.mxu0 0.0
        %1523 = vmatpush1.msra.mxu0 0.0
        %1524 = vmatprep.subr.mxu0 0.0
        %1525 = vmatpush1.msra.mxu0 0.0
        %1526 = vmatprep.subr.mxu0 0.0
        %1527 = vmatpush1.msra.mxu0 0.0
        %1528 = vmatprep.subr.mxu0 0.0
        %1529 = vmatpush1.msra.mxu0 0.0
        %1530 = vmatprep.subr.mxu0 0.0
        %1531 = vmatpush1.msra.mxu0 0.0
        %1532 = vmatprep.subr.mxu0 0.0
        %1533 = vmatpush1.msra.mxu0 0.0
        %1534 = vmatprep.subr.mxu0 0.0
        %1535 = vmatpush1.msra.mxu0 0.0
        %1536 = vmatprep.subr.mxu0 0.0
        %1537 = vmatpush1.msra.mxu0 0.0
        %1538 = vmatprep.subr.mxu0 0.0
        %1539 = vmatpush1.msra.mxu0 0.0
        %1540 = vmatprep.subr.mxu0 0.0
        %1541 = vmatpush1.msra.mxu0 0.0
        %1542 = vmatprep.subr.mxu0 0.0
        %1543 = vmatpush1.msra.mxu0 0.0
        %1544 = vmatprep.subr.mxu0 0.0
        %1545 = vmatpush1.msra.mxu0 0.0
        %1546 = vmatprep.subr.mxu0 0.0
        %1547 = vmatpush1.msra.mxu0 0.0
        %1548 = vmatprep.subr.mxu0 0.0
        %1549 = vmatpush1.msra.mxu0 0.0
        %1550 = vmatprep.subr.mxu0 0.0
        %1551 = vmatpush1.msra.mxu0 0.0
        %1552 = vmatprep.subr.mxu0 0.0
        %1553 = vmatpush1.msra.mxu0 0.0
        %1554 = vmatprep.subr.mxu0 0.0
        %1555 = vmatpush1.msra.mxu0 0.0
        %1556 = vmatprep.subr.mxu0 0.0
        %1557 = vmatpush1.msra.mxu0 0.0
        %1558 = vmatprep.subr.mxu0 0.0
        %1559 = vmatpush1.msra.mxu0 0.0
        %1560 = vmatprep.subr.mxu0 0.0
        %1561 = vmatpush1.msra.mxu0 0.0
        %1562 = vmatprep.subr.mxu0 0.0
        %1563 = vmatpush1.msra.mxu0 0.0
        %1564 = vmatprep.subr.mxu0 0.0
        %1565 = vmatpush1.msra.mxu0 0.0
        %1566 = vmatprep.subr.mxu0 0.0
        %1567 = vmatpush1.msra.mxu0 0.0
        %1568 = vmatprep.subr.mxu0 0.0
        %1569 = vmatpush1.msra.mxu0 0.0
        %1570 = vmatprep.subr.mxu0 0.0
        %1571 = vmatpush1.msra.mxu0 0.0
        %1572 = vmatprep.subr.mxu0 0.0
        %1573 = vmatpush1.msra.mxu0 0.0
        %1574 = vmatprep.mubr.f32.mxu0 0.0
        %1575 = vmatmul.mubr.f32.gmra.mrb[0].mxu0 %v1508
        %v1576 = vpop.f32.mrb[0].mxu0
        %v1577 = vadd.f32 %v1503, %v1576
        %v1578 = vpop.f32.mrb[0].mxu0
        %v1579 = vadd.f32 %v1505, %v1578
        %1580 = vdwg.mxu0
        %1581 = vrot.lane.b32.xlu0 %v1137, 32
        %v1582 = vpop.permute.xlu0 %1581
        %1583 = vrot.lane.b32.xlu0 %v1138, 32
        %v1584 = vpop.permute.xlu0 %1583
        %vm1585 = vcmp.lt.s32.totalorder %v224, 32
        %v1586 = vsel %vm1585, %v1582, %v1584
        %v1587 = vsel %vm1585, %v1584, %v1582
        %vm1588 = vcmp.lt.s32.totalorder %v226, 10
        %vm1589 = vcmp.lt.s32.totalorder %v227, 10
        %v1590 = vsel %vm1588, 1, 0
        %v1591 = vsel %vm1589, 1, 0
        %vm1592 = vcmp.eq.s32.totalorder %v1590, 1
        %vm1593 = vcmp.eq.s32.totalorder %v1591, 1
        %v1594 = vsel %vm1592, %v1586, 0.0
        %v1595 = vsel %vm1593, %v1587, 0.0
        %v1597 = vsel %vm1158, %v236, 0
        %1599 = vmatprep.subr.mxu0 %v1595
        %1600 = vmatpush1.msra.mxu0 %v1594
        %1601 = vmatprep.subr.mxu0 0.0
        %1602 = vmatpush1.msra.mxu0 0.0
        %1603 = vmatprep.subr.mxu0 0.0
        %1604 = vmatpush1.msra.mxu0 0.0
        %1605 = vmatprep.subr.mxu0 0.0
        %1606 = vmatpush1.msra.mxu0 0.0
        %1607 = vmatprep.subr.mxu0 0.0
        %1608 = vmatpush1.msra.mxu0 0.0
        %1609 = vmatprep.subr.mxu0 0.0
        %1610 = vmatpush1.msra.mxu0 0.0
        %1611 = vmatprep.subr.mxu0 0.0
        %1612 = vmatpush1.msra.mxu0 0.0
        %1613 = vmatprep.subr.mxu0 0.0
        %1614 = vmatpush1.msra.mxu0 0.0
        %1615 = vmatprep.subr.mxu0 0.0
        %1616 = vmatpush1.msra.mxu0 0.0
        %1617 = vmatprep.subr.mxu0 0.0
        %1618 = vmatpush1.msra.mxu0 0.0
        %1619 = vmatprep.subr.mxu0 0.0
        %1620 = vmatpush1.msra.mxu0 0.0
        %1621 = vmatprep.subr.mxu0 0.0
        %1622 = vmatpush1.msra.mxu0 0.0
        %1623 = vmatprep.subr.mxu0 0.0
        %1624 = vmatpush1.msra.mxu0 0.0
        %1625 = vmatprep.subr.mxu0 0.0
        %1626 = vmatpush1.msra.mxu0 0.0
        %1627 = vmatprep.subr.mxu0 0.0
        %1628 = vmatpush1.msra.mxu0 0.0
        %1629 = vmatprep.subr.mxu0 0.0
        %1630 = vmatpush1.msra.mxu0 0.0
        %1631 = vmatprep.subr.mxu0 0.0
        %1632 = vmatpush1.msra.mxu0 0.0
        %1633 = vmatprep.subr.mxu0 0.0
        %1634 = vmatpush1.msra.mxu0 0.0
        %1635 = vmatprep.subr.mxu0 0.0
        %1636 = vmatpush1.msra.mxu0 0.0
        %1637 = vmatprep.subr.mxu0 0.0
        %1638 = vmatpush1.msra.mxu0 0.0
        %1639 = vmatprep.subr.mxu0 0.0
        %1640 = vmatpush1.msra.mxu0 0.0
        %1641 = vmatprep.subr.mxu0 0.0
        %1642 = vmatpush1.msra.mxu0 0.0
        %1643 = vmatprep.subr.mxu0 0.0
        %1644 = vmatpush1.msra.mxu0 0.0
        %1645 = vmatprep.subr.mxu0 0.0
        %1646 = vmatpush1.msra.mxu0 0.0
        %1647 = vmatprep.subr.mxu0 0.0
        %1648 = vmatpush1.msra.mxu0 0.0
        %1649 = vmatprep.subr.mxu0 0.0
        %1650 = vmatpush1.msra.mxu0 0.0
        %1651 = vmatprep.subr.mxu0 0.0
        %1652 = vmatpush1.msra.mxu0 0.0
        %1653 = vmatprep.subr.mxu0 0.0
        %1654 = vmatpush1.msra.mxu0 0.0
        %1655 = vmatprep.subr.mxu0 0.0
        %1656 = vmatpush1.msra.mxu0 0.0
        %1657 = vmatprep.subr.mxu0 0.0
        %1658 = vmatpush1.msra.mxu0 0.0
        %1659 = vmatprep.subr.mxu0 0.0
        %1660 = vmatpush1.msra.mxu0 0.0
        %1661 = vmatprep.subr.mxu0 0.0
        %1662 = vmatpush1.msra.mxu0 0.0
        %1663 = vmatprep.mubr.f32.mxu0 0.0
        %1664 = vmatmul.mubr.f32.gmra.mrb[0].mxu0 %v1597
        %v1665 = vpop.f32.mrb[0].mxu0
        %v1666 = vadd.f32 0.0, %v1665
        %v1667 = vpop.f32.mrb[0].mxu0
        %v1668 = vadd.f32 0.0, %v1667
        %1669 = vdwg.mxu0
        %v1670 = vadd.f32 %v1577, %v1666
        %v1671 = vadd.f32 %v1579, %v1668
        %1673 = vset.pattern.permute.xlu0 0
        %1674 = vperm.xlu0 %1673, %v1415
        %v1675 = vpop.permute.xlu0 %1674
        %v1677 = vmul.f32 %v1670, %v1675
        %v1678 = vmul.f32 %v1671, %v1675
        %1680 = vset.pattern.permute.xlu0 0
        %1681 = vperm.xlu0 %1680, %v1417
        %v1682 = vpop.permute.xlu0 %1681
        %v1684 = vadd.f32 %v1677, %v1682
        %v1685 = vadd.f32 %v1678, %v1682
        %v1686 = vmax.f32 %v1684, 0.0
        %v1687 = vmax.f32 %v1685, 0.0
        %s1688 = scalar_lea.vmem %s3, 24
        %v1689 = vld [vmem:[%s1688] sm:$0xff]
        %s1690 = scalar_lea.vmem %s4, 24
        %v1691 = vld [vmem:[%s1690] sm:$0xff]
        %1692 = vrot.lane.b32.xlu0 %v1137, 17
        %v1693 = vpop.permute.xlu0 %1692
        %1694 = vrot.lane.b32.xlu0 %v1138, 17
        %v1695 = vpop.permute.xlu0 %1694
        %vm1696 = vcmp.lt.s32.totalorder %v224, 17
        %v1697 = vsel %vm1696, %v1693, %v1695
        %v1698 = vsel %vm1696, %v1695, %v1693
        %vm1699 = vcmp.ge.s32.totalorder %v228, 1
        %vm1700 = vcmp.ge.s32.totalorder %v229, 1
        %vm1701 = vmand %vm276, %vm1699
        %vm1702 = vmand %vm277, %vm1700
        %v1703 = vsel %vm1701, 1, 0
        %v1704 = vsel %vm1702, 1, 0
        %vm1705 = vcmp.eq.s32.totalorder %v1703, 1
        %vm1706 = vcmp.eq.s32.totalorder %v1704, 1
        %v1707 = vsel %vm1705, %v1698, 0.0
        %v1708 = vsel %vm1706, %v1697, 0.0
        %1709 = vrot.lane.b32.xlu0 %v1137, 16
        %v1710 = vpop.permute.xlu0 %1709
        %1711 = vrot.lane.b32.xlu0 %v1138, 16
        %v1712 = vpop.permute.xlu0 %1711
        %v1713 = vsel %vm292, %v1710, %v1712
        %v1714 = vsel %vm292, %v1712, %v1710
        %v1715 = vsel %vm297, %v1714, 0.0
        %v1716 = vsel %vm298, %v1713, 0.0
        %v1718 = vsel %vm1158, %v238, 0
        %1720 = vmatprep.subr.mxu0 %v1716
        %1721 = vmatpush1.msra.mxu0 %v1715
        %1722 = vmatprep.subr.mxu0 0.0
        %1723 = vmatpush1.msra.mxu0 0.0
        %1724 = vmatprep.subr.mxu0 0.0
        %1725 = vmatpush1.msra.mxu0 0.0
        %1726 = vmatprep.subr.mxu0 0.0
        %1727 = vmatpush1.msra.mxu0 0.0
        %1728 = vmatprep.subr.mxu0 0.0
        %1729 = vmatpush1.msra.mxu0 0.0
        %1730 = vmatprep.subr.mxu0 0.0
        %1731 = vmatpush1.msra.mxu0 0.0
        %1732 = vmatprep.subr.mxu0 0.0
        %1733 = vmatpush1.msra.mxu0 0.0
        %1734 = vmatprep.subr.mxu0 0.0
        %1735 = vmatpush1.msra.mxu0 0.0
        %1736 = vmatprep.subr.mxu0 0.0
        %1737 = vmatpush1.msra.mxu0 0.0
        %1738 = vmatprep.subr.mxu0 0.0
        %1739 = vmatpush1.msra.mxu0 0.0
        %1740 = vmatprep.subr.mxu0 0.0
        %1741 = vmatpush1.msra.mxu0 0.0
        %1742 = vmatprep.subr.mxu0 0.0
        %1743 = vmatpush1.msra.mxu0 0.0
        %1744 = vmatprep.subr.mxu0 0.0
        %1745 = vmatpush1.msra.mxu0 0.0
        %1746 = vmatprep.subr.mxu0 0.0
        %1747 = vmatpush1.msra.mxu0 0.0
        %1748 = vmatprep.subr.mxu0 0.0
        %1749 = vmatpush1.msra.mxu0 0.0
        %1750 = vmatprep.subr.mxu0 0.0
        %1751 = vmatpush1.msra.mxu0 0.0
        %1752 = vmatprep.subr.mxu0 0.0
        %1753 = vmatpush1.msra.mxu0 0.0
        %1754 = vmatprep.subr.mxu0 0.0
        %1755 = vmatpush1.msra.mxu0 0.0
        %1756 = vmatprep.subr.mxu0 0.0
        %1757 = vmatpush1.msra.mxu0 0.0
        %1758 = vmatprep.subr.mxu0 0.0
        %1759 = vmatpush1.msra.mxu0 0.0
        %1760 = vmatprep.subr.mxu0 0.0
        %1761 = vmatpush1.msra.mxu0 0.0
        %1762 = vmatprep.subr.mxu0 0.0
        %1763 = vmatpush1.msra.mxu0 0.0
        %1764 = vmatprep.subr.mxu0 0.0
        %1765 = vmatpush1.msra.mxu0 0.0
        %1766 = vmatprep.subr.mxu0 0.0
        %1767 = vmatpush1.msra.mxu0 0.0
        %1768 = vmatprep.subr.mxu0 0.0
        %1769 = vmatpush1.msra.mxu0 0.0
        %1770 = vmatprep.subr.mxu0 0.0
        %1771 = vmatpush1.msra.mxu0 0.0
        %1772 = vmatprep.subr.mxu0 0.0
        %1773 = vmatpush1.msra.mxu0 0.0
        %1774 = vmatprep.subr.mxu0 0.0
        %1775 = vmatpush1.msra.mxu0 0.0
        %1776 = vmatprep.subr.mxu0 0.0
        %1777 = vmatpush1.msra.mxu0 0.0
        %1778 = vmatprep.subr.mxu0 0.0
        %1779 = vmatpush1.msra.mxu0 0.0
        %1780 = vmatprep.subr.mxu0 0.0
        %1781 = vmatpush1.msra.mxu0 0.0
        %1782 = vmatprep.subr.mxu0 0.0
        %1783 = vmatpush1.msra.mxu0 0.0
        %1784 = vmatprep.mubr.f32.mxu0 0.0
        %1785 = vmatmul.mubr.f32.gmra.mrb[0].mxu0 %v1718
        %v1786 = vpop.f32.mrb[0].mxu0
        %v1787 = vadd.f32 0.0, %v1786
        %v1788 = vpop.f32.mrb[0].mxu0
        %v1789 = vadd.f32 0.0, %v1788
        %1790 = vdwg.mxu0
        %v1792 = vsel %vm1158, %v237, 0
        %1794 = vmatprep.subr.mxu0 %v1708
        %1795 = vmatpush1.msra.mxu0 %v1707
        %1796 = vmatprep.subr.mxu0 0.0
        %1797 = vmatpush1.msra.mxu0 0.0
        %1798 = vmatprep.subr.mxu0 0.0
        %1799 = vmatpush1.msra.mxu0 0.0
        %1800 = vmatprep.subr.mxu0 0.0
        %1801 = vmatpush1.msra.mxu0 0.0
        %1802 = vmatprep.subr.mxu0 0.0
        %1803 = vmatpush1.msra.mxu0 0.0
        %1804 = vmatprep.subr.mxu0 0.0
        %1805 = vmatpush1.msra.mxu0 0.0
        %1806 = vmatprep.subr.mxu0 0.0
        %1807 = vmatpush1.msra.mxu0 0.0
        %1808 = vmatprep.subr.mxu0 0.0
        %1809 = vmatpush1.msra.mxu0 0.0
        %1810 = vmatprep.subr.mxu0 0.0
        %1811 = vmatpush1.msra.mxu0 0.0
        %1812 = vmatprep.subr.mxu0 0.0
        %1813 = vmatpush1.msra.mxu0 0.0
        %1814 = vmatprep.subr.mxu0 0.0
        %1815 = vmatpush1.msra.mxu0 0.0
        %1816 = vmatprep.subr.mxu0 0.0
        %1817 = vmatpush1.msra.mxu0 0.0
        %1818 = vmatprep.subr.mxu0 0.0
        %1819 = vmatpush1.msra.mxu0 0.0
        %1820 = vmatprep.subr.mxu0 0.0
        %1821 = vmatpush1.msra.mxu0 0.0
        %1822 = vmatprep.subr.mxu0 0.0
        %1823 = vmatpush1.msra.mxu0 0.0
        %1824 = vmatprep.subr.mxu0 0.0
        %1825 = vmatpush1.msra.mxu0 0.0
        %1826 = vmatprep.subr.mxu0 0.0
        %1827 = vmatpush1.msra.mxu0 0.0
        %1828 = vmatprep.subr.mxu0 0.0
        %1829 = vmatpush1.msra.mxu0 0.0
        %1830 = vmatprep.subr.mxu0 0.0
        %1831 = vmatpush1.msra.mxu0 0.0
        %1832 = vmatprep.subr.mxu0 0.0
        %1833 = vmatpush1.msra.mxu0 0.0
        %1834 = vmatprep.subr.mxu0 0.0
        %1835 = vmatpush1.msra.mxu0 0.0
        %1836 = vmatprep.subr.mxu0 0.0
        %1837 = vmatpush1.msra.mxu0 0.0
        %1838 = vmatprep.subr.mxu0 0.0
        %1839 = vmatpush1.msra.mxu0 0.0
        %1840 = vmatprep.subr.mxu0 0.0
        %1841 = vmatpush1.msra.mxu0 0.0
        %1842 = vmatprep.subr.mxu0 0.0
        %1843 = vmatpush1.msra.mxu0 0.0
        %1844 = vmatprep.subr.mxu0 0.0
        %1845 = vmatpush1.msra.mxu0 0.0
        %1846 = vmatprep.subr.mxu0 0.0
        %1847 = vmatpush1.msra.mxu0 0.0
        %1848 = vmatprep.subr.mxu0 0.0
        %1849 = vmatpush1.msra.mxu0 0.0
        %1850 = vmatprep.subr.mxu0 0.0
        %1851 = vmatpush1.msra.mxu0 0.0
        %1852 = vmatprep.subr.mxu0 0.0
        %1853 = vmatpush1.msra.mxu0 0.0
        %1854 = vmatprep.subr.mxu0 0.0
        %1855 = vmatpush1.msra.mxu0 0.0
        %1856 = vmatprep.subr.mxu0 0.0
        %1857 = vmatpush1.msra.mxu0 0.0
        %1858 = vmatprep.mubr.f32.mxu0 0.0
        %1859 = vmatmul.mubr.f32.gmra.mrb[0].mxu0 %v1792
        %v1860 = vpop.f32.mrb[0].mxu0
        %v1861 = vadd.f32 %v1787, %v1860
        %v1862 = vpop.f32.mrb[0].mxu0
        %v1863 = vadd.f32 %v1789, %v1862
        %1864 = vdwg.mxu0
        %vm1865 = vcmp.lt.s32.totalorder %v228, 15
        %vm1866 = vcmp.lt.s32.totalorder %v229, 15
        %vm1867 = vmand %vm276, %vm1865
        %vm1868 = vmand %vm277, %vm1866
        %v1869 = vsel %vm1867, 1, 0
        %v1870 = vsel %vm1868, 1, 0
        %vm1871 = vcmp.eq.s32.totalorder %v1869, 1
        %vm1872 = vcmp.eq.s32.totalorder %v1870, 1
        %v1873 = vsel %vm1871, %v1149, 0.0
        %v1874 = vsel %vm1872, %v1148, 0.0
        %v1876 = vsel %vm1158, %v239, 0
        %1878 = vmatprep.subr.mxu0 %v1874
        %1879 = vmatpush1.msra.mxu0 %v1873
        %1880 = vmatprep.subr.mxu0 0.0
        %1881 = vmatpush1.msra.mxu0 0.0
        %1882 = vmatprep.subr.mxu0 0.0
        %1883 = vmatpush1.msra.mxu0 0.0
        %1884 = vmatprep.subr.mxu0 0.0
        %1885 = vmatpush1.msra.mxu0 0.0
        %1886 = vmatprep.subr.mxu0 0.0
        %1887 = vmatpush1.msra.mxu0 0.0
        %1888 = vmatprep.subr.mxu0 0.0
        %1889 = vmatpush1.msra.mxu0 0.0
        %1890 = vmatprep.subr.mxu0 0.0
        %1891 = vmatpush1.msra.mxu0 0.0
        %1892 = vmatprep.subr.mxu0 0.0
        %1893 = vmatpush1.msra.mxu0 0.0
        %1894 = vmatprep.subr.mxu0 0.0
        %1895 = vmatpush1.msra.mxu0 0.0
        %1896 = vmatprep.subr.mxu0 0.0
        %1897 = vmatpush1.msra.mxu0 0.0
        %1898 = vmatprep.subr.mxu0 0.0
        %1899 = vmatpush1.msra.mxu0 0.0
        %1900 = vmatprep.subr.mxu0 0.0
        %1901 = vmatpush1.msra.mxu0 0.0
        %1902 = vmatprep.subr.mxu0 0.0
        %1903 = vmatpush1.msra.mxu0 0.0
        %1904 = vmatprep.subr.mxu0 0.0
        %1905 = vmatpush1.msra.mxu0 0.0
        %1906 = vmatprep.subr.mxu0 0.0
        %1907 = vmatpush1.msra.mxu0 0.0
        %1908 = vmatprep.subr.mxu0 0.0
        %1909 = vmatpush1.msra.mxu0 0.0
        %1910 = vmatprep.subr.mxu0 0.0
        %1911 = vmatpush1.msra.mxu0 0.0
        %1912 = vmatprep.subr.mxu0 0.0
        %1913 = vmatpush1.msra.mxu0 0.0
        %1914 = vmatprep.subr.mxu0 0.0
        %1915 = vmatpush1.msra.mxu0 0.0
        %1916 = vmatprep.subr.mxu0 0.0
        %1917 = vmatpush1.msra.mxu0 0.0
        %1918 = vmatprep.subr.mxu0 0.0
        %1919 = vmatpush1.msra.mxu0 0.0
        %1920 = vmatprep.subr.mxu0 0.0
        %1921 = vmatpush1.msra.mxu0 0.0
        %1922 = vmatprep.subr.mxu0 0.0
        %1923 = vmatpush1.msra.mxu0 0.0
        %1924 = vmatprep.subr.mxu0 0.0
        %1925 = vmatpush1.msra.mxu0 0.0
        %1926 = vmatprep.subr.mxu0 0.0
        %1927 = vmatpush1.msra.mxu0 0.0
        %1928 = vmatprep.subr.mxu0 0.0
        %1929 = vmatpush1.msra.mxu0 0.0
        %1930 = vmatprep.subr.mxu0 0.0
        %1931 = vmatpush1.msra.mxu0 0.0
        %1932 = vmatprep.subr.mxu0 0.0
        %1933 = vmatpush1.msra.mxu0 0.0
        %1934 = vmatprep.subr.mxu0 0.0
        %1935 = vmatpush1.msra.mxu0 0.0
        %1936 = vmatprep.subr.mxu0 0.0
        %1937 = vmatpush1.msra.mxu0 0.0
        %1938 = vmatprep.subr.mxu0 0.0
        %1939 = vmatpush1.msra.mxu0 0.0
        %1940 = vmatprep.subr.mxu0 0.0
        %1941 = vmatpush1.msra.mxu0 0.0
        %1942 = vmatprep.mubr.f32.mxu0 0.0
        %1943 = vmatmul.mubr.f32.gmra.mrb[0].mxu0 %v1876
        %v1944 = vpop.f32.mrb[0].mxu0
        %v1945 = vadd.f32 0.0, %v1944
        %v1946 = vpop.f32.mrb[0].mxu0
        %v1947 = vadd.f32 0.0, %v1946
        %1948 = vdwg.mxu0
        %v1949 = vadd.f32 %v1861, %v1945
        %v1950 = vadd.f32 %v1863, %v1947
        %1951 = vrot.lane.b32.xlu0 %v1137, 1
        %v1952 = vpop.permute.xlu0 %1951
        %1953 = vrot.lane.b32.xlu0 %v1138, 1
        %v1954 = vpop.permute.xlu0 %1953
        %vm1955 = vcmp.lt.s32.totalorder %v224, 1
        %v1956 = vsel %vm1955, %v1952, %v1954
        %v1957 = vsel %vm1955, %v1954, %v1952
        %v1958 = vsel %vm1699, 1, 0
        %v1959 = vsel %vm1700, 1, 0
        %vm1960 = vcmp.eq.s32.totalorder %v1958, 1
        %vm1961 = vcmp.eq.s32.totalorder %v1959, 1
        %v1962 = vsel %vm1960, %v1957, 0.0
        %v1963 = vsel %vm1961, %v1956, 0.0
        %v1965 = vsel %vm1158, %v240, 0
        %1967 = vmatprep.subr.mxu0 %v1963
        %1968 = vmatpush1.msra.mxu0 %v1962
        %1969 = vmatprep.subr.mxu0 0.0
        %1970 = vmatpush1.msra.mxu0 0.0
        %1971 = vmatprep.subr.mxu0 0.0
        %1972 = vmatpush1.msra.mxu0 0.0
        %1973 = vmatprep.subr.mxu0 0.0
        %1974 = vmatpush1.msra.mxu0 0.0
        %1975 = vmatprep.subr.mxu0 0.0
        %1976 = vmatpush1.msra.mxu0 0.0
        %1977 = vmatprep.subr.mxu0 0.0
        %1978 = vmatpush1.msra.mxu0 0.0
        %1979 = vmatprep.subr.mxu0 0.0
        %1980 = vmatpush1.msra.mxu0 0.0
        %1981 = vmatprep.subr.mxu0 0.0
        %1982 = vmatpush1.msra.mxu0 0.0
        %1983 = vmatprep.subr.mxu0 0.0
        %1984 = vmatpush1.msra.mxu0 0.0
        %1985 = vmatprep.subr.mxu0 0.0
        %1986 = vmatpush1.msra.mxu0 0.0
        %1987 = vmatprep.subr.mxu0 0.0
        %1988 = vmatpush1.msra.mxu0 0.0
        %1989 = vmatprep.subr.mxu0 0.0
        %1990 = vmatpush1.msra.mxu0 0.0
        %1991 = vmatprep.subr.mxu0 0.0
        %1992 = vmatpush1.msra.mxu0 0.0
        %1993 = vmatprep.subr.mxu0 0.0
        %1994 = vmatpush1.msra.mxu0 0.0
        %1995 = vmatprep.subr.mxu0 0.0
        %1996 = vmatpush1.msra.mxu0 0.0
        %1997 = vmatprep.subr.mxu0 0.0
        %1998 = vmatpush1.msra.mxu0 0.0
        %1999 = vmatprep.subr.mxu0 0.0
        %2000 = vmatpush1.msra.mxu0 0.0
        %2001 = vmatprep.subr.mxu0 0.0
        %2002 = vmatpush1.msra.mxu0 0.0
        %2003 = vmatprep.subr.mxu0 0.0
        %2004 = vmatpush1.msra.mxu0 0.0
        %2005 = vmatprep.subr.mxu0 0.0
        %2006 = vmatpush1.msra.mxu0 0.0
        %2007 = vmatprep.subr.mxu0 0.0
        %2008 = vmatpush1.msra.mxu0 0.0
        %2009 = vmatprep.subr.mxu0 0.0
        %2010 = vmatpush1.msra.mxu0 0.0
        %2011 = vmatprep.subr.mxu0 0.0
        %2012 = vmatpush1.msra.mxu0 0.0
        %2013 = vmatprep.subr.mxu0 0.0
        %2014 = vmatpush1.msra.mxu0 0.0
        %2015 = vmatprep.subr.mxu0 0.0
        %2016 = vmatpush1.msra.mxu0 0.0
        %2017 = vmatprep.subr.mxu0 0.0
        %2018 = vmatpush1.msra.mxu0 0.0
        %2019 = vmatprep.subr.mxu0 0.0
        %2020 = vmatpush1.msra.mxu0 0.0
        %2021 = vmatprep.subr.mxu0 0.0
        %2022 = vmatpush1.msra.mxu0 0.0
        %2023 = vmatprep.subr.mxu0 0.0
        %2024 = vmatpush1.msra.mxu0 0.0
        %2025 = vmatprep.subr.mxu0 0.0
        %2026 = vmatpush1.msra.mxu0 0.0
        %2027 = vmatprep.subr.mxu0 0.0
        %2028 = vmatpush1.msra.mxu0 0.0
        %2029 = vmatprep.subr.mxu0 0.0
        %2030 = vmatpush1.msra.mxu0 0.0
        %2031 = vmatprep.mubr.f32.mxu0 0.0
        %2032 = vmatmul.mubr.f32.gmra.mrb[0].mxu0 %v1965
        %v2033 = vpop.f32.mrb[0].mxu0
        %v2034 = vadd.f32 0.0, %v2033
        %v2035 = vpop.f32.mrb[0].mxu0
        %v2036 = vadd.f32 0.0, %v2035
        %2037 = vdwg.mxu0
        %v2038 = vadd.f32 %v1949, %v2034
        %v2039 = vadd.f32 %v1950, %v2036
        %v2041 = vsel %vm1158, %v241, 0
        %2043 = vmatprep.subr.mxu0 %v1138
        %2044 = vmatpush1.msra.mxu0 %v1137
        %2045 = vmatprep.subr.mxu0 0.0
        %2046 = vmatpush1.msra.mxu0 0.0
        %2047 = vmatprep.subr.mxu0 0.0
        %2048 = vmatpush1.msra.mxu0 0.0
        %2049 = vmatprep.subr.mxu0 0.0
        %2050 = vmatpush1.msra.mxu0 0.0
        %2051 = vmatprep.subr.mxu0 0.0
        %2052 = vmatpush1.msra.mxu0 0.0
        %2053 = vmatprep.subr.mxu0 0.0
        %2054 = vmatpush1.msra.mxu0 0.0
        %2055 = vmatprep.subr.mxu0 0.0
        %2056 = vmatpush1.msra.mxu0 0.0
        %2057 = vmatprep.subr.mxu0 0.0
        %2058 = vmatpush1.msra.mxu0 0.0
        %2059 = vmatprep.subr.mxu0 0.0
        %2060 = vmatpush1.msra.mxu0 0.0
        %2061 = vmatprep.subr.mxu0 0.0
        %2062 = vmatpush1.msra.mxu0 0.0
        %2063 = vmatprep.subr.mxu0 0.0
        %2064 = vmatpush1.msra.mxu0 0.0
        %2065 = vmatprep.subr.mxu0 0.0
        %2066 = vmatpush1.msra.mxu0 0.0
        %2067 = vmatprep.subr.mxu0 0.0
        %2068 = vmatpush1.msra.mxu0 0.0
        %2069 = vmatprep.subr.mxu0 0.0
        %2070 = vmatpush1.msra.mxu0 0.0
        %2071 = vmatprep.subr.mxu0 0.0
        %2072 = vmatpush1.msra.mxu0 0.0
        %2073 = vmatprep.subr.mxu0 0.0
        %2074 = vmatpush1.msra.mxu0 0.0
        %2075 = vmatprep.subr.mxu0 0.0
        %2076 = vmatpush1.msra.mxu0 0.0
        %2077 = vmatprep.subr.mxu0 0.0
        %2078 = vmatpush1.msra.mxu0 0.0
        %2079 = vmatprep.subr.mxu0 0.0
        %2080 = vmatpush1.msra.mxu0 0.0
        %2081 = vmatprep.subr.mxu0 0.0
        %2082 = vmatpush1.msra.mxu0 0.0
        %2083 = vmatprep.subr.mxu0 0.0
        %2084 = vmatpush1.msra.mxu0 0.0
        %2085 = vmatprep.subr.mxu0 0.0
        %2086 = vmatpush1.msra.mxu0 0.0
        %2087 = vmatprep.subr.mxu0 0.0
        %2088 = vmatpush1.msra.mxu0 0.0
        %2089 = vmatprep.subr.mxu0 0.0
        %2090 = vmatpush1.msra.mxu0 0.0
        %2091 = vmatprep.subr.mxu0 0.0
        %2092 = vmatpush1.msra.mxu0 0.0
        %2093 = vmatprep.subr.mxu0 0.0
        %2094 = vmatpush1.msra.mxu0 0.0
        %2095 = vmatprep.subr.mxu0 0.0
        %2096 = vmatpush1.msra.mxu0 0.0
        %2097 = vmatprep.subr.mxu0 0.0
        %2098 = vmatpush1.msra.mxu0 0.0
        %2099 = vmatprep.subr.mxu0 0.0
        %2100 = vmatpush1.msra.mxu0 0.0
        %2101 = vmatprep.subr.mxu0 0.0
        %2102 = vmatpush1.msra.mxu0 0.0
        %2103 = vmatprep.subr.mxu0 0.0
        %2104 = vmatpush1.msra.mxu0 0.0
        %2105 = vmatprep.subr.mxu0 0.0
        %2106 = vmatpush1.msra.mxu0 0.0
        %2107 = vmatprep.mubr.f32.mxu0 0.0
        %2108 = vmatmul.mubr.f32.gmra.mrb[0].mxu0 %v2041
        %v2109 = vpop.f32.mrb[0].mxu0
        %v2110 = vadd.f32 0.0, %v2109
        %v2111 = vpop.f32.mrb[0].mxu0
        %v2112 = vadd.f32 0.0, %v2111
        %2113 = vdwg.mxu0
        %v2114 = vadd.f32 %v2038, %v2110
        %v2115 = vadd.f32 %v2039, %v2112
        %2116 = vrot.lane.b32.xlu0 %v1137, 127
        %v2117 = vpop.permute.xlu0 %2116
        %2118 = vrot.lane.b32.xlu0 %v1138, 127
        %v2119 = vpop.permute.xlu0 %2118
        %vm2120 = vcmp.lt.s32.totalorder %v224, 127
        %v2121 = vsel %vm2120, %v2117, %v2119
        %v2122 = vsel %vm2120, %v2119, %v2117
        %v2123 = vsel %vm1865, 1, 0
        %v2124 = vsel %vm1866, 1, 0
        %vm2125 = vcmp.eq.s32.totalorder %v2123, 1
        %vm2126 = vcmp.eq.s32.totalorder %v2124, 1
        %v2127 = vsel %vm2125, %v2121, 0.0
        %v2128 = vsel %vm2126, %v2122, 0.0
        %v2130 = vsel %vm1158, %v242, 0
        %2132 = vmatprep.subr.mxu0 %v2128
        %2133 = vmatpush1.msra.mxu0 %v2127
        %2134 = vmatprep.subr.mxu0 0.0
        %2135 = vmatpush1.msra.mxu0 0.0
        %2136 = vmatprep.subr.mxu0 0.0
        %2137 = vmatpush1.msra.mxu0 0.0
        %2138 = vmatprep.subr.mxu0 0.0
        %2139 = vmatpush1.msra.mxu0 0.0
        %2140 = vmatprep.subr.mxu0 0.0
        %2141 = vmatpush1.msra.mxu0 0.0
        %2142 = vmatprep.subr.mxu0 0.0
        %2143 = vmatpush1.msra.mxu0 0.0
        %2144 = vmatprep.subr.mxu0 0.0
        %2145 = vmatpush1.msra.mxu0 0.0
        %2146 = vmatprep.subr.mxu0 0.0
        %2147 = vmatpush1.msra.mxu0 0.0
        %2148 = vmatprep.subr.mxu0 0.0
        %2149 = vmatpush1.msra.mxu0 0.0
        %2150 = vmatprep.subr.mxu0 0.0
        %2151 = vmatpush1.msra.mxu0 0.0
        %2152 = vmatprep.subr.mxu0 0.0
        %2153 = vmatpush1.msra.mxu0 0.0
        %2154 = vmatprep.subr.mxu0 0.0
        %2155 = vmatpush1.msra.mxu0 0.0
        %2156 = vmatprep.subr.mxu0 0.0
        %2157 = vmatpush1.msra.mxu0 0.0
        %2158 = vmatprep.subr.mxu0 0.0
        %2159 = vmatpush1.msra.mxu0 0.0
        %2160 = vmatprep.subr.mxu0 0.0
        %2161 = vmatpush1.msra.mxu0 0.0
        %2162 = vmatprep.subr.mxu0 0.0
        %2163 = vmatpush1.msra.mxu0 0.0
        %2164 = vmatprep.subr.mxu0 0.0
        %2165 = vmatpush1.msra.mxu0 0.0
        %2166 = vmatprep.subr.mxu0 0.0
        %2167 = vmatpush1.msra.mxu0 0.0
        %2168 = vmatprep.subr.mxu0 0.0
        %2169 = vmatpush1.msra.mxu0 0.0
        %2170 = vmatprep.subr.mxu0 0.0
        %2171 = vmatpush1.msra.mxu0 0.0
        %2172 = vmatprep.subr.mxu0 0.0
        %2173 = vmatpush1.msra.mxu0 0.0
        %2174 = vmatprep.subr.mxu0 0.0
        %2175 = vmatpush1.msra.mxu0 0.0
        %2176 = vmatprep.subr.mxu0 0.0
        %2177 = vmatpush1.msra.mxu0 0.0
        %2178 = vmatprep.subr.mxu0 0.0
        %2179 = vmatpush1.msra.mxu0 0.0
        %2180 = vmatprep.subr.mxu0 0.0
        %2181 = vmatpush1.msra.mxu0 0.0
        %2182 = vmatprep.subr.mxu0 0.0
        %2183 = vmatpush1.msra.mxu0 0.0
        %2184 = vmatprep.subr.mxu0 0.0
        %2185 = vmatpush1.msra.mxu0 0.0
        %2186 = vmatprep.subr.mxu0 0.0
        %2187 = vmatpush1.msra.mxu0 0.0
        %2188 = vmatprep.subr.mxu0 0.0
        %2189 = vmatpush1.msra.mxu0 0.0
        %2190 = vmatprep.subr.mxu0 0.0
        %2191 = vmatpush1.msra.mxu0 0.0
        %2192 = vmatprep.subr.mxu0 0.0
        %2193 = vmatpush1.msra.mxu0 0.0
        %2194 = vmatprep.subr.mxu0 0.0
        %2195 = vmatpush1.msra.mxu0 0.0
        %2196 = vmatprep.mubr.f32.mxu0 0.0
        %2197 = vmatmul.mubr.f32.gmra.mrb[0].mxu0 %v2130
        %v2198 = vpop.f32.mrb[0].mxu0
        %v2199 = vadd.f32 0.0, %v2198
        %v2200 = vpop.f32.mrb[0].mxu0
        %v2201 = vadd.f32 0.0, %v2200
        %2202 = vdwg.mxu0
        %v2203 = vadd.f32 %v2114, %v2199
        %v2204 = vadd.f32 %v2115, %v2201
        %vm2205 = vmand %vm839, %vm1699
        %vm2206 = vmand %vm840, %vm1700
        %v2207 = vsel %vm2205, 1, 0
        %v2208 = vsel %vm2206, 1, 0
        %vm2209 = vcmp.eq.s32.totalorder %v2207, 1
        %vm2210 = vcmp.eq.s32.totalorder %v2208, 1
        %v2211 = vsel %vm2209, %v1312, 0.0
        %v2212 = vsel %vm2210, %v1313, 0.0
        %v2214 = vsel %vm1158, %v243, 0
        %2216 = vmatprep.subr.mxu0 %v2212
        %2217 = vmatpush1.msra.mxu0 %v2211
        %2218 = vmatprep.subr.mxu0 0.0
        %2219 = vmatpush1.msra.mxu0 0.0
        %2220 = vmatprep.subr.mxu0 0.0
        %2221 = vmatpush1.msra.mxu0 0.0
        %2222 = vmatprep.subr.mxu0 0.0
        %2223 = vmatpush1.msra.mxu0 0.0
        %2224 = vmatprep.subr.mxu0 0.0
        %2225 = vmatpush1.msra.mxu0 0.0
        %2226 = vmatprep.subr.mxu0 0.0
        %2227 = vmatpush1.msra.mxu0 0.0
        %2228 = vmatprep.subr.mxu0 0.0
        %2229 = vmatpush1.msra.mxu0 0.0
        %2230 = vmatprep.subr.mxu0 0.0
        %2231 = vmatpush1.msra.mxu0 0.0
        %2232 = vmatprep.subr.mxu0 0.0
        %2233 = vmatpush1.msra.mxu0 0.0
        %2234 = vmatprep.subr.mxu0 0.0
        %2235 = vmatpush1.msra.mxu0 0.0
        %2236 = vmatprep.subr.mxu0 0.0
        %2237 = vmatpush1.msra.mxu0 0.0
        %2238 = vmatprep.subr.mxu0 0.0
        %2239 = vmatpush1.msra.mxu0 0.0
        %2240 = vmatprep.subr.mxu0 0.0
        %2241 = vmatpush1.msra.mxu0 0.0
        %2242 = vmatprep.subr.mxu0 0.0
        %2243 = vmatpush1.msra.mxu0 0.0
        %2244 = vmatprep.subr.mxu0 0.0
        %2245 = vmatpush1.msra.mxu0 0.0
        %2246 = vmatprep.subr.mxu0 0.0
        %2247 = vmatpush1.msra.mxu0 0.0
        %2248 = vmatprep.subr.mxu0 0.0
        %2249 = vmatpush1.msra.mxu0 0.0
        %2250 = vmatprep.subr.mxu0 0.0
        %2251 = vmatpush1.msra.mxu0 0.0
        %2252 = vmatprep.subr.mxu0 0.0
        %2253 = vmatpush1.msra.mxu0 0.0
        %2254 = vmatprep.subr.mxu0 0.0
        %2255 = vmatpush1.msra.mxu0 0.0
        %2256 = vmatprep.subr.mxu0 0.0
        %2257 = vmatpush1.msra.mxu0 0.0
        %2258 = vmatprep.subr.mxu0 0.0
        %2259 = vmatpush1.msra.mxu0 0.0
        %2260 = vmatprep.subr.mxu0 0.0
        %2261 = vmatpush1.msra.mxu0 0.0
        %2262 = vmatprep.subr.mxu0 0.0
        %2263 = vmatpush1.msra.mxu0 0.0
        %2264 = vmatprep.subr.mxu0 0.0
        %2265 = vmatpush1.msra.mxu0 0.0
        %2266 = vmatprep.subr.mxu0 0.0
        %2267 = vmatpush1.msra.mxu0 0.0
        %2268 = vmatprep.subr.mxu0 0.0
        %2269 = vmatpush1.msra.mxu0 0.0
        %2270 = vmatprep.subr.mxu0 0.0
        %2271 = vmatpush1.msra.mxu0 0.0
        %2272 = vmatprep.subr.mxu0 0.0
        %2273 = vmatpush1.msra.mxu0 0.0
        %2274 = vmatprep.subr.mxu0 0.0
        %2275 = vmatpush1.msra.mxu0 0.0
        %2276 = vmatprep.subr.mxu0 0.0
        %2277 = vmatpush1.msra.mxu0 0.0
        %2278 = vmatprep.subr.mxu0 0.0
        %2279 = vmatpush1.msra.mxu0 0.0
        %2280 = vmatprep.mubr.f32.mxu0 0.0
        %2281 = vmatmul.mubr.f32.gmra.mrb[0].mxu0 %v2214
        %v2282 = vpop.f32.mrb[0].mxu0
        %v2283 = vadd.f32 0.0, %v2282
        %v2284 = vpop.f32.mrb[0].mxu0
        %v2285 = vadd.f32 0.0, %v2284
        %2286 = vdwg.mxu0
        %v2287 = vadd.f32 %v2203, %v2283
        %v2288 = vadd.f32 %v2204, %v2285
        %2289 = vrot.lane.b32.xlu0 %v1137, 112
        %v2290 = vpop.permute.xlu0 %2289
        %2291 = vrot.lane.b32.xlu0 %v1138, 112
        %v2292 = vpop.permute.xlu0 %2291
        %v2293 = vsel %vm935, %v2290, %v2292
        %v2294 = vsel %vm935, %v2292, %v2290
        %v2295 = vsel %vm940, %v2293, 0.0
        %v2296 = vsel %vm941, %v2294, 0.0
        %v2298 = vsel %vm1158, %v244, 0
        %2300 = vmatprep.subr.mxu0 %v2296
        %2301 = vmatpush1.msra.mxu0 %v2295
        %2302 = vmatprep.subr.mxu0 0.0
        %2303 = vmatpush1.msra.mxu0 0.0
        %2304 = vmatprep.subr.mxu0 0.0
        %2305 = vmatpush1.msra.mxu0 0.0
        %2306 = vmatprep.subr.mxu0 0.0
        %2307 = vmatpush1.msra.mxu0 0.0
        %2308 = vmatprep.subr.mxu0 0.0
        %2309 = vmatpush1.msra.mxu0 0.0
        %2310 = vmatprep.subr.mxu0 0.0
        %2311 = vmatpush1.msra.mxu0 0.0
        %2312 = vmatprep.subr.mxu0 0.0
        %2313 = vmatpush1.msra.mxu0 0.0
        %2314 = vmatprep.subr.mxu0 0.0
        %2315 = vmatpush1.msra.mxu0 0.0
        %2316 = vmatprep.subr.mxu0 0.0
        %2317 = vmatpush1.msra.mxu0 0.0
        %2318 = vmatprep.subr.mxu0 0.0
        %2319 = vmatpush1.msra.mxu0 0.0
        %2320 = vmatprep.subr.mxu0 0.0
        %2321 = vmatpush1.msra.mxu0 0.0
        %2322 = vmatprep.subr.mxu0 0.0
        %2323 = vmatpush1.msra.mxu0 0.0
        %2324 = vmatprep.subr.mxu0 0.0
        %2325 = vmatpush1.msra.mxu0 0.0
        %2326 = vmatprep.subr.mxu0 0.0
        %2327 = vmatpush1.msra.mxu0 0.0
        %2328 = vmatprep.subr.mxu0 0.0
        %2329 = vmatpush1.msra.mxu0 0.0
        %2330 = vmatprep.subr.mxu0 0.0
        %2331 = vmatpush1.msra.mxu0 0.0
        %2332 = vmatprep.subr.mxu0 0.0
        %2333 = vmatpush1.msra.mxu0 0.0
        %2334 = vmatprep.subr.mxu0 0.0
        %2335 = vmatpush1.msra.mxu0 0.0
        %2336 = vmatprep.subr.mxu0 0.0
        %2337 = vmatpush1.msra.mxu0 0.0
        %2338 = vmatprep.subr.mxu0 0.0
        %2339 = vmatpush1.msra.mxu0 0.0
        %2340 = vmatprep.subr.mxu0 0.0
        %2341 = vmatpush1.msra.mxu0 0.0
        %2342 = vmatprep.subr.mxu0 0.0
        %2343 = vmatpush1.msra.mxu0 0.0
        %2344 = vmatprep.subr.mxu0 0.0
        %2345 = vmatpush1.msra.mxu0 0.0
        %2346 = vmatprep.subr.mxu0 0.0
        %2347 = vmatpush1.msra.mxu0 0.0
        %2348 = vmatprep.subr.mxu0 0.0
        %2349 = vmatpush1.msra.mxu0 0.0
        %2350 = vmatprep.subr.mxu0 0.0
        %2351 = vmatpush1.msra.mxu0 0.0
        %2352 = vmatprep.subr.mxu0 0.0
        %2353 = vmatpush1.msra.mxu0 0.0
        %2354 = vmatprep.subr.mxu0 0.0
        %2355 = vmatpush1.msra.mxu0 0.0
        %2356 = vmatprep.subr.mxu0 0.0
        %2357 = vmatpush1.msra.mxu0 0.0
        %2358 = vmatprep.subr.mxu0 0.0
        %2359 = vmatpush1.msra.mxu0 0.0
        %2360 = vmatprep.subr.mxu0 0.0
        %2361 = vmatpush1.msra.mxu0 0.0
        %2362 = vmatprep.subr.mxu0 0.0
        %2363 = vmatpush1.msra.mxu0 0.0
        %2364 = vmatprep.mubr.f32.mxu0 0.0
        %2365 = vmatmul.mubr.f32.gmra.mrb[0].mxu0 %v2298
        %v2366 = vpop.f32.mrb[0].mxu0
        %v2367 = vadd.f32 0.0, %v2366
        %v2368 = vpop.f32.mrb[0].mxu0
        %v2369 = vadd.f32 0.0, %v2368
        %2370 = vdwg.mxu0
        %v2371 = vadd.f32 %v2287, %v2367
        %v2372 = vadd.f32 %v2288, %v2369
        %2373 = vrot.lane.b32.xlu0 %v1137, 111
        %v2374 = vpop.permute.xlu0 %2373
        %2375 = vrot.lane.b32.xlu0 %v1138, 111
        %v2376 = vpop.permute.xlu0 %2375
        %vm2377 = vcmp.lt.s32.totalorder %v224, 111
        %v2378 = vsel %vm2377, %v2374, %v2376
        %v2379 = vsel %vm2377, %v2376, %v2374
        %vm2380 = vmand %vm839, %vm1865
        %vm2381 = vmand %vm840, %vm1866
        %v2382 = vsel %vm2380, 1, 0
        %v2383 = vsel %vm2381, 1, 0
        %vm2384 = vcmp.eq.s32.totalorder %v2382, 1
        %vm2385 = vcmp.eq.s32.totalorder %v2383, 1
        %v2386 = vsel %vm2384, %v2378, 0.0
        %v2387 = vsel %vm2385, %v2379, 0.0
        %v2389 = vsel %vm1158, %v245, 0
        %2391 = vmatprep.subr.mxu0 %v2387
        %2392 = vmatpush1.msra.mxu0 %v2386
        %2393 = vmatprep.subr.mxu0 0.0
        %2394 = vmatpush1.msra.mxu0 0.0
        %2395 = vmatprep.subr.mxu0 0.0
        %2396 = vmatpush1.msra.mxu0 0.0
        %2397 = vmatprep.subr.mxu0 0.0
        %2398 = vmatpush1.msra.mxu0 0.0
        %2399 = vmatprep.subr.mxu0 0.0
        %2400 = vmatpush1.msra.mxu0 0.0
        %2401 = vmatprep.subr.mxu0 0.0
        %2402 = vmatpush1.msra.mxu0 0.0
        %2403 = vmatprep.subr.mxu0 0.0
        %2404 = vmatpush1.msra.mxu0 0.0
        %2405 = vmatprep.subr.mxu0 0.0
        %2406 = vmatpush1.msra.mxu0 0.0
        %2407 = vmatprep.subr.mxu0 0.0
        %2408 = vmatpush1.msra.mxu0 0.0
        %2409 = vmatprep.subr.mxu0 0.0
        %2410 = vmatpush1.msra.mxu0 0.0
        %2411 = vmatprep.subr.mxu0 0.0
        %2412 = vmatpush1.msra.mxu0 0.0
        %2413 = vmatprep.subr.mxu0 0.0
        %2414 = vmatpush1.msra.mxu0 0.0
        %2415 = vmatprep.subr.mxu0 0.0
        %2416 = vmatpush1.msra.mxu0 0.0
        %2417 = vmatprep.subr.mxu0 0.0
        %2418 = vmatpush1.msra.mxu0 0.0
        %2419 = vmatprep.subr.mxu0 0.0
        %2420 = vmatpush1.msra.mxu0 0.0
        %2421 = vmatprep.subr.mxu0 0.0
        %2422 = vmatpush1.msra.mxu0 0.0
        %2423 = vmatprep.subr.mxu0 0.0
        %2424 = vmatpush1.msra.mxu0 0.0
        %2425 = vmatprep.subr.mxu0 0.0
        %2426 = vmatpush1.msra.mxu0 0.0
        %2427 = vmatprep.subr.mxu0 0.0
        %2428 = vmatpush1.msra.mxu0 0.0
        %2429 = vmatprep.subr.mxu0 0.0
        %2430 = vmatpush1.msra.mxu0 0.0
        %2431 = vmatprep.subr.mxu0 0.0
        %2432 = vmatpush1.msra.mxu0 0.0
        %2433 = vmatprep.subr.mxu0 0.0
        %2434 = vmatpush1.msra.mxu0 0.0
        %2435 = vmatprep.subr.mxu0 0.0
        %2436 = vmatpush1.msra.mxu0 0.0
        %2437 = vmatprep.subr.mxu0 0.0
        %2438 = vmatpush1.msra.mxu0 0.0
        %2439 = vmatprep.subr.mxu0 0.0
        %2440 = vmatpush1.msra.mxu0 0.0
        %2441 = vmatprep.subr.mxu0 0.0
        %2442 = vmatpush1.msra.mxu0 0.0
        %2443 = vmatprep.subr.mxu0 0.0
        %2444 = vmatpush1.msra.mxu0 0.0
        %2445 = vmatprep.subr.mxu0 0.0
        %2446 = vmatpush1.msra.mxu0 0.0
        %2447 = vmatprep.subr.mxu0 0.0
        %2448 = vmatpush1.msra.mxu0 0.0
        %2449 = vmatprep.subr.mxu0 0.0
        %2450 = vmatpush1.msra.mxu0 0.0
        %2451 = vmatprep.subr.mxu0 0.0
        %2452 = vmatpush1.msra.mxu0 0.0
        %2453 = vmatprep.subr.mxu0 0.0
        %2454 = vmatpush1.msra.mxu0 0.0
        %2455 = vmatprep.mubr.f32.mxu0 0.0
        %2456 = vmatmul.mubr.f32.gmra.mrb[0].mxu0 %v2389
        %v2457 = vpop.f32.mrb[0].mxu0
        %v2458 = vadd.f32 0.0, %v2457
        %v2459 = vpop.f32.mrb[0].mxu0
        %v2460 = vadd.f32 0.0, %v2459
        %2461 = vdwg.mxu0
        %v2462 = vadd.f32 %v2371, %v2458
        %v2463 = vadd.f32 %v2372, %v2460
        %2465 = vset.pattern.permute.xlu0 0
        %2466 = vperm.xlu0 %2465, %v1689
        %v2467 = vpop.permute.xlu0 %2466
        %v2469 = vmul.f32 %v2462, %v2467
        %v2470 = vmul.f32 %v2463, %v2467
        %2472 = vset.pattern.permute.xlu0 0
        %2473 = vperm.xlu0 %2472, %v1691
        %v2474 = vpop.permute.xlu0 %2473
        %v2476 = vadd.f32 %v2469, %v2474
        %v2477 = vadd.f32 %v2470, %v2474
        %v2478 = vmax.f32 %v2476, 0.0
        %v2479 = vmax.f32 %v2477, 0.0
        %s2480 = scalar_lea.vmem %s3, 32
        %v2481 = vld [vmem:[%s2480] sm:$0xff]
        %s2482 = scalar_lea.vmem %s4, 32
        %v2483 = vld [vmem:[%s2482] sm:$0xff]
        %2484 = vrot.lane.b32.xlu0 %v1412, 99
        %v2485 = vpop.permute.xlu0 %2484
        %2486 = vrot.lane.b32.xlu0 %v1413, 99
        %v2487 = vpop.permute.xlu0 %2486
        %vm2488 = vcmp.lt.s32.totalorder %v224, 99
        %v2489 = vsel %vm2488, %v2485, %v2487
        %v2490 = vsel %vm2488, %v2487, %v2485
        %vm2491 = vcmp.ge.s32.totalorder %v228, 3
        %vm2492 = vcmp.ge.s32.totalorder %v229, 3
        %vm2493 = vmand %vm1425, %vm2491
        %vm2494 = vmand %vm1426, %vm2492
        %v2495 = vsel %vm2493, 1, 0
        %v2496 = vsel %vm2494, 1, 0
        %vm2497 = vcmp.eq.s32.totalorder %v2495, 1
        %vm2498 = vcmp.eq.s32.totalorder %v2496, 1
        %v2499 = vsel %vm2497, %v2490, 0.0
        %v2500 = vsel %vm2498, %v2489, 0.0
        %2501 = vrot.lane.b32.xlu0 %v1412, 96
        %v2502 = vpop.permute.xlu0 %2501
        %2503 = vrot.lane.b32.xlu0 %v1413, 96
        %v2504 = vpop.permute.xlu0 %2503
        %v2505 = vsel %vm1422, %v2502, %v2504
        %v2506 = vsel %vm1422, %v2504, %v2502
        %v2507 = vsel %vm1429, %v2506, 0.0
        %v2508 = vsel %vm1430, %v2505, 0.0
        %v2510 = vsel %vm1158, %v247, 0
        %2512 = vmatprep.subr.mxu0 %v2508
        %2513 = vmatpush1.msra.mxu0 %v2507
        %2514 = vmatprep.subr.mxu0 0.0
        %2515 = vmatpush1.msra.mxu0 0.0
        %2516 = vmatprep.subr.mxu0 0.0
        %2517 = vmatpush1.msra.mxu0 0.0
        %2518 = vmatprep.subr.mxu0 0.0
        %2519 = vmatpush1.msra.mxu0 0.0
        %2520 = vmatprep.subr.mxu0 0.0
        %2521 = vmatpush1.msra.mxu0 0.0
        %2522 = vmatprep.subr.mxu0 0.0
        %2523 = vmatpush1.msra.mxu0 0.0
        %2524 = vmatprep.subr.mxu0 0.0
        %2525 = vmatpush1.msra.mxu0 0.0
        %2526 = vmatprep.subr.mxu0 0.0
        %2527 = vmatpush1.msra.mxu0 0.0
        %2528 = vmatprep.subr.mxu0 0.0
        %2529 = vmatpush1.msra.mxu0 0.0
        %2530 = vmatprep.subr.mxu0 0.0
        %2531 = vmatpush1.msra.mxu0 0.0
        %2532 = vmatprep.subr.mxu0 0.0
        %2533 = vmatpush1.msra.mxu0 0.0
        %2534 = vmatprep.subr.mxu0 0.0
        %2535 = vmatpush1.msra.mxu0 0.0
        %2536 = vmatprep.subr.mxu0 0.0
        %2537 = vmatpush1.msra.mxu0 0.0
        %2538 = vmatprep.subr.mxu0 0.0
        %2539 = vmatpush1.msra.mxu0 0.0
        %2540 = vmatprep.subr.mxu0 0.0
        %2541 = vmatpush1.msra.mxu0 0.0
        %2542 = vmatprep.subr.mxu0 0.0
        %2543 = vmatpush1.msra.mxu0 0.0
        %2544 = vmatprep.subr.mxu0 0.0
        %2545 = vmatpush1.msra.mxu0 0.0
        %2546 = vmatprep.subr.mxu0 0.0
        %2547 = vmatpush1.msra.mxu0 0.0
        %2548 = vmatprep.subr.mxu0 0.0
        %2549 = vmatpush1.msra.mxu0 0.0
        %2550 = vmatprep.subr.mxu0 0.0
        %2551 = vmatpush1.msra.mxu0 0.0
        %2552 = vmatprep.subr.mxu0 0.0
        %2553 = vmatpush1.msra.mxu0 0.0
        %2554 = vmatprep.subr.mxu0 0.0
        %2555 = vmatpush1.msra.mxu0 0.0
        %2556 = vmatprep.subr.mxu0 0.0
        %2557 = vmatpush1.msra.mxu0 0.0
        %2558 = vmatprep.subr.mxu0 0.0
        %2559 = vmatpush1.msra.mxu0 0.0
        %2560 = vmatprep.subr.mxu0 0.0
        %2561 = vmatpush1.msra.mxu0 0.0
        %2562 = vmatprep.subr.mxu0 0.0
        %2563 = vmatpush1.msra.mxu0 0.0
        %2564 = vmatprep.subr.mxu0 0.0
        %2565 = vmatpush1.msra.mxu0 0.0
        %2566 = vmatprep.subr.mxu0 0.0
        %2567 = vmatpush1.msra.mxu0 0.0
        %2568 = vmatprep.subr.mxu0 0.0
        %2569 = vmatpush1.msra.mxu0 0.0
        %2570 = vmatprep.subr.mxu0 0.0
        %2571 = vmatpush1.msra.mxu0 0.0
        %2572 = vmatprep.subr.mxu0 0.0
        %2573 = vmatpush1.msra.mxu0 0.0
        %2574 = vmatprep.subr.mxu0 0.0
        %2575 = vmatpush1.msra.mxu0 0.0
        %2576 = vmatprep.mubr.f32.mxu0 0.0
        %2577 = vmatmul.mubr.f32.gmra.mrb[0].mxu0 %v2510
        %v2578 = vpop.f32.mrb[0].mxu0
        %v2579 = vadd.f32 0.0, %v2578
        %v2580 = vpop.f32.mrb[0].mxu0
        %v2581 = vadd.f32 0.0, %v2580
        %2582 = vdwg.mxu0
        %v2584 = vsel %vm1158, %v246, 0
        %2586 = vmatprep.subr.mxu0 %v2500
        %2587 = vmatpush1.msra.mxu0 %v2499
        %2588 = vmatprep.subr.mxu0 0.0
        %2589 = vmatpush1.msra.mxu0 0.0
        %2590 = vmatprep.subr.mxu0 0.0
        %2591 = vmatpush1.msra.mxu0 0.0
        %2592 = vmatprep.subr.mxu0 0.0
        %2593 = vmatpush1.msra.mxu0 0.0
        %2594 = vmatprep.subr.mxu0 0.0
        %2595 = vmatpush1.msra.mxu0 0.0
        %2596 = vmatprep.subr.mxu0 0.0
        %2597 = vmatpush1.msra.mxu0 0.0
        %2598 = vmatprep.subr.mxu0 0.0
        %2599 = vmatpush1.msra.mxu0 0.0
        %2600 = vmatprep.subr.mxu0 0.0
        %2601 = vmatpush1.msra.mxu0 0.0
        %2602 = vmatprep.subr.mxu0 0.0
        %2603 = vmatpush1.msra.mxu0 0.0
        %2604 = vmatprep.subr.mxu0 0.0
        %2605 = vmatpush1.msra.mxu0 0.0
        %2606 = vmatprep.subr.mxu0 0.0
        %2607 = vmatpush1.msra.mxu0 0.0
        %2608 = vmatprep.subr.mxu0 0.0
        %2609 = vmatpush1.msra.mxu0 0.0
        %2610 = vmatprep.subr.mxu0 0.0
        %2611 = vmatpush1.msra.mxu0 0.0
        %2612 = vmatprep.subr.mxu0 0.0
        %2613 = vmatpush1.msra.mxu0 0.0
        %2614 = vmatprep.subr.mxu0 0.0
        %2615 = vmatpush1.msra.mxu0 0.0
        %2616 = vmatprep.subr.mxu0 0.0
        %2617 = vmatpush1.msra.mxu0 0.0
        %2618 = vmatprep.subr.mxu0 0.0
        %2619 = vmatpush1.msra.mxu0 0.0
        %2620 = vmatprep.subr.mxu0 0.0
        %2621 = vmatpush1.msra.mxu0 0.0
        %2622 = vmatprep.subr.mxu0 0.0
        %2623 = vmatpush1.msra.mxu0 0.0
        %2624 = vmatprep.subr.mxu0 0.0
        %2625 = vmatpush1.msra.mxu0 0.0
        %2626 = vmatprep.subr.mxu0 0.0
        %2627 = vmatpush1.msra.mxu0 0.0
        %2628 = vmatprep.subr.mxu0 0.0
        %2629 = vmatpush1.msra.mxu0 0.0
        %2630 = vmatprep.subr.mxu0 0.0
        %2631 = vmatpush1.msra.mxu0 0.0
        %2632 = vmatprep.subr.mxu0 0.0
        %2633 = vmatpush1.msra.mxu0 0.0
        %2634 = vmatprep.subr.mxu0 0.0
        %2635 = vmatpush1.msra.mxu0 0.0
        %2636 = vmatprep.subr.mxu0 0.0
        %2637 = vmatpush1.msra.mxu0 0.0
        %2638 = vmatprep.subr.mxu0 0.0
        %2639 = vmatpush1.msra.mxu0 0.0
        %2640 = vmatprep.subr.mxu0 0.0
        %2641 = vmatpush1.msra.mxu0 0.0
        %2642 = vmatprep.subr.mxu0 0.0
        %2643 = vmatpush1.msra.mxu0 0.0
        %2644 = vmatprep.subr.mxu0 0.0
        %2645 = vmatpush1.msra.mxu0 0.0
        %2646 = vmatprep.subr.mxu0 0.0
        %2647 = vmatpush1.msra.mxu0 0.0
        %2648 = vmatprep.subr.mxu0 0.0
        %2649 = vmatpush1.msra.mxu0 0.0
        %2650 = vmatprep.mubr.f32.mxu0 0.0
        %2651 = vmatmul.mubr.f32.gmra.mrb[0].mxu0 %v2584
        %v2652 = vpop.f32.mrb[0].mxu0
        %v2653 = vadd.f32 %v2579, %v2652
        %v2654 = vpop.f32.mrb[0].mxu0
        %v2655 = vadd.f32 %v2581, %v2654
        %2656 = vdwg.mxu0
        %2657 = vrot.lane.b32.xlu0 %v1412, 93
        %v2658 = vpop.permute.xlu0 %2657
        %2659 = vrot.lane.b32.xlu0 %v1413, 93
        %v2660 = vpop.permute.xlu0 %2659
        %vm2661 = vcmp.lt.s32.totalorder %v224, 93
        %v2662 = vsel %vm2661, %v2658, %v2660
        %v2663 = vsel %vm2661, %v2660, %v2658
        %vm2664 = vcmp.lt.s32.totalorder %v228, 13
        %vm2665 = vcmp.lt.s32.totalorder %v229, 13
        %vm2666 = vmand %vm1425, %vm2664
        %vm2667 = vmand %vm1426, %vm2665
        %v2668 = vsel %vm2666, 1, 0
        %v2669 = vsel %vm2667, 1, 0
        %vm2670 = vcmp.eq.s32.totalorder %v2668, 1
        %vm2671 = vcmp.eq.s32.totalorder %v2669, 1
        %v2672 = vsel %vm2670, %v2663, 0.0
        %v2673 = vsel %vm2671, %v2662, 0.0
        %v2675 = vsel %vm1158, %v248, 0
        %2677 = vmatprep.subr.mxu0 %v2673
        %2678 = vmatpush1.msra.mxu0 %v2672
        %2679 = vmatprep.subr.mxu0 0.0
        %2680 = vmatpush1.msra.mxu0 0.0
        %2681 = vmatprep.subr.mxu0 0.0
        %2682 = vmatpush1.msra.mxu0 0.0
        %2683 = vmatprep.subr.mxu0 0.0
        %2684 = vmatpush1.msra.mxu0 0.0
        %2685 = vmatprep.subr.mxu0 0.0
        %2686 = vmatpush1.msra.mxu0 0.0
        %2687 = vmatprep.subr.mxu0 0.0
        %2688 = vmatpush1.msra.mxu0 0.0
        %2689 = vmatprep.subr.mxu0 0.0
        %2690 = vmatpush1.msra.mxu0 0.0
        %2691 = vmatprep.subr.mxu0 0.0
        %2692 = vmatpush1.msra.mxu0 0.0
        %2693 = vmatprep.subr.mxu0 0.0
        %2694 = vmatpush1.msra.mxu0 0.0
        %2695 = vmatprep.subr.mxu0 0.0
        %2696 = vmatpush1.msra.mxu0 0.0
        %2697 = vmatprep.subr.mxu0 0.0
        %2698 = vmatpush1.msra.mxu0 0.0
        %2699 = vmatprep.subr.mxu0 0.0
        %2700 = vmatpush1.msra.mxu0 0.0
        %2701 = vmatprep.subr.mxu0 0.0
        %2702 = vmatpush1.msra.mxu0 0.0
        %2703 = vmatprep.subr.mxu0 0.0
        %2704 = vmatpush1.msra.mxu0 0.0
        %2705 = vmatprep.subr.mxu0 0.0
        %2706 = vmatpush1.msra.mxu0 0.0
        %2707 = vmatprep.subr.mxu0 0.0
        %2708 = vmatpush1.msra.mxu0 0.0
        %2709 = vmatprep.subr.mxu0 0.0
        %2710 = vmatpush1.msra.mxu0 0.0
        %2711 = vmatprep.subr.mxu0 0.0
        %2712 = vmatpush1.msra.mxu0 0.0
        %2713 = vmatprep.subr.mxu0 0.0
        %2714 = vmatpush1.msra.mxu0 0.0
        %2715 = vmatprep.subr.mxu0 0.0
        %2716 = vmatpush1.msra.mxu0 0.0
        %2717 = vmatprep.subr.mxu0 0.0
        %2718 = vmatpush1.msra.mxu0 0.0
        %2719 = vmatprep.subr.mxu0 0.0
        %2720 = vmatpush1.msra.mxu0 0.0
        %2721 = vmatprep.subr.mxu0 0.0
        %2722 = vmatpush1.msra.mxu0 0.0
        %2723 = vmatprep.subr.mxu0 0.0
        %2724 = vmatpush1.msra.mxu0 0.0
        %2725 = vmatprep.subr.mxu0 0.0
        %2726 = vmatpush1.msra.mxu0 0.0
        %2727 = vmatprep.subr.mxu0 0.0
        %2728 = vmatpush1.msra.mxu0 0.0
        %2729 = vmatprep.subr.mxu0 0.0
        %2730 = vmatpush1.msra.mxu0 0.0
        %2731 = vmatprep.subr.mxu0 0.0
        %2732 = vmatpush1.msra.mxu0 0.0
        %2733 = vmatprep.subr.mxu0 0.0
        %2734 = vmatpush1.msra.mxu0 0.0
        %2735 = vmatprep.subr.mxu0 0.0
        %2736 = vmatpush1.msra.mxu0 0.0
        %2737 = vmatprep.subr.mxu0 0.0
        %2738 = vmatpush1.msra.mxu0 0.0
        %2739 = vmatprep.subr.mxu0 0.0
        %2740 = vmatpush1.msra.mxu0 0.0
        %2741 = vmatprep.mubr.f32.mxu0 0.0
        %2742 = vmatmul.mubr.f32.gmra.mrb[0].mxu0 %v2675
        %v2743 = vpop.f32.mrb[0].mxu0
        %v2744 = vadd.f32 0.0, %v2743
        %v2745 = vpop.f32.mrb[0].mxu0
        %v2746 = vadd.f32 0.0, %v2745
        %2747 = vdwg.mxu0
        %v2748 = vadd.f32 %v2653, %v2744
        %v2749 = vadd.f32 %v2655, %v2746
        %2750 = vrot.lane.b32.xlu0 %v1412, 3
        %v2751 = vpop.permute.xlu0 %2750
        %2752 = vrot.lane.b32.xlu0 %v1413, 3
        %v2753 = vpop.permute.xlu0 %2752
        %vm2754 = vcmp.lt.s32.totalorder %v224, 3
        %v2755 = vsel %vm2754, %v2751, %v2753
        %v2756 = vsel %vm2754, %v2753, %v2751
        %v2757 = vsel %vm2491, 1, 0
        %v2758 = vsel %vm2492, 1, 0
        %vm2759 = vcmp.eq.s32.totalorder %v2757, 1
        %vm2760 = vcmp.eq.s32.totalorder %v2758, 1
        %v2761 = vsel %vm2759, %v2756, 0.0
        %v2762 = vsel %vm2760, %v2755, 0.0
        %v2764 = vsel %vm1158, %v249, 0
        %2766 = vmatprep.subr.mxu0 %v2762
        %2767 = vmatpush1.msra.mxu0 %v2761
        %2768 = vmatprep.subr.mxu0 0.0
        %2769 = vmatpush1.msra.mxu0 0.0
        %2770 = vmatprep.subr.mxu0 0.0
        %2771 = vmatpush1.msra.mxu0 0.0
        %2772 = vmatprep.subr.mxu0 0.0
        %2773 = vmatpush1.msra.mxu0 0.0
        %2774 = vmatprep.subr.mxu0 0.0
        %2775 = vmatpush1.msra.mxu0 0.0
        %2776 = vmatprep.subr.mxu0 0.0
        %2777 = vmatpush1.msra.mxu0 0.0
        %2778 = vmatprep.subr.mxu0 0.0
        %2779 = vmatpush1.msra.mxu0 0.0
        %2780 = vmatprep.subr.mxu0 0.0
        %2781 = vmatpush1.msra.mxu0 0.0
        %2782 = vmatprep.subr.mxu0 0.0
        %2783 = vmatpush1.msra.mxu0 0.0
        %2784 = vmatprep.subr.mxu0 0.0
        %2785 = vmatpush1.msra.mxu0 0.0
        %2786 = vmatprep.subr.mxu0 0.0
        %2787 = vmatpush1.msra.mxu0 0.0
        %2788 = vmatprep.subr.mxu0 0.0
        %2789 = vmatpush1.msra.mxu0 0.0
        %2790 = vmatprep.subr.mxu0 0.0
        %2791 = vmatpush1.msra.mxu0 0.0
        %2792 = vmatprep.subr.mxu0 0.0
        %2793 = vmatpush1.msra.mxu0 0.0
        %2794 = vmatprep.subr.mxu0 0.0
        %2795 = vmatpush1.msra.mxu0 0.0
        %2796 = vmatprep.subr.mxu0 0.0
        %2797 = vmatpush1.msra.mxu0 0.0
        %2798 = vmatprep.subr.mxu0 0.0
        %2799 = vmatpush1.msra.mxu0 0.0
        %2800 = vmatprep.subr.mxu0 0.0
        %2801 = vmatpush1.msra.mxu0 0.0
        %2802 = vmatprep.subr.mxu0 0.0
        %2803 = vmatpush1.msra.mxu0 0.0
        %2804 = vmatprep.subr.mxu0 0.0
        %2805 = vmatpush1.msra.mxu0 0.0
        %2806 = vmatprep.subr.mxu0 0.0
        %2807 = vmatpush1.msra.mxu0 0.0
        %2808 = vmatprep.subr.mxu0 0.0
        %2809 = vmatpush1.msra.mxu0 0.0
        %2810 = vmatprep.subr.mxu0 0.0
        %2811 = vmatpush1.msra.mxu0 0.0
        %2812 = vmatprep.subr.mxu0 0.0
        %2813 = vmatpush1.msra.mxu0 0.0
        %2814 = vmatprep.subr.mxu0 0.0
        %2815 = vmatpush1.msra.mxu0 0.0
        %2816 = vmatprep.subr.mxu0 0.0
        %2817 = vmatpush1.msra.mxu0 0.0
        %2818 = vmatprep.subr.mxu0 0.0
        %2819 = vmatpush1.msra.mxu0 0.0
        %2820 = vmatprep.subr.mxu0 0.0
        %2821 = vmatpush1.msra.mxu0 0.0
        %2822 = vmatprep.subr.mxu0 0.0
        %2823 = vmatpush1.msra.mxu0 0.0
        %2824 = vmatprep.subr.mxu0 0.0
        %2825 = vmatpush1.msra.mxu0 0.0
        %2826 = vmatprep.subr.mxu0 0.0
        %2827 = vmatpush1.msra.mxu0 0.0
        %2828 = vmatprep.subr.mxu0 0.0
        %2829 = vmatpush1.msra.mxu0 0.0
        %2830 = vmatprep.mubr.f32.mxu0 0.0
        %2831 = vmatmul.mubr.f32.gmra.mrb[0].mxu0 %v2764
        %v2832 = vpop.f32.mrb[0].mxu0
        %v2833 = vadd.f32 0.0, %v2832
        %v2834 = vpop.f32.mrb[0].mxu0
        %v2835 = vadd.f32 0.0, %v2834
        %2836 = vdwg.mxu0
        %v2837 = vadd.f32 %v2748, %v2833
        %v2838 = vadd.f32 %v2749, %v2835
        %v2840 = vsel %vm1158, %v250, 0
        %2842 = vmatprep.subr.mxu0 %v1413
        %2843 = vmatpush1.msra.mxu0 %v1412
        %2844 = vmatprep.subr.mxu0 0.0
        %2845 = vmatpush1.msra.mxu0 0.0
        %2846 = vmatprep.subr.mxu0 0.0
        %2847 = vmatpush1.msra.mxu0 0.0
        %2848 = vmatprep.subr.mxu0 0.0
        %2849 = vmatpush1.msra.mxu0 0.0
        %2850 = vmatprep.subr.mxu0 0.0
        %2851 = vmatpush1.msra.mxu0 0.0
        %2852 = vmatprep.subr.mxu0 0.0
        %2853 = vmatpush1.msra.mxu0 0.0
        %2854 = vmatprep.subr.mxu0 0.0
        %2855 = vmatpush1.msra.mxu0 0.0
        %2856 = vmatprep.subr.mxu0 0.0
        %2857 = vmatpush1.msra.mxu0 0.0
        %2858 = vmatprep.subr.mxu0 0.0
        %2859 = vmatpush1.msra.mxu0 0.0
        %2860 = vmatprep.subr.mxu0 0.0
        %2861 = vmatpush1.msra.mxu0 0.0
        %2862 = vmatprep.subr.mxu0 0.0
        %2863 = vmatpush1.msra.mxu0 0.0
        %2864 = vmatprep.subr.mxu0 0.0
        %2865 = vmatpush1.msra.mxu0 0.0
        %2866 = vmatprep.subr.mxu0 0.0
        %2867 = vmatpush1.msra.mxu0 0.0
        %2868 = vmatprep.subr.mxu0 0.0
        %2869 = vmatpush1.msra.mxu0 0.0
        %2870 = vmatprep.subr.mxu0 0.0
        %2871 = vmatpush1.msra.mxu0 0.0
        %2872 = vmatprep.subr.mxu0 0.0
        %2873 = vmatpush1.msra.mxu0 0.0
        %2874 = vmatprep.subr.mxu0 0.0
        %2875 = vmatpush1.msra.mxu0 0.0
        %2876 = vmatprep.subr.mxu0 0.0
        %2877 = vmatpush1.msra.mxu0 0.0
        %2878 = vmatprep.subr.mxu0 0.0
        %2879 = vmatpush1.msra.mxu0 0.0
        %2880 = vmatprep.subr.mxu0 0.0
        %2881 = vmatpush1.msra.mxu0 0.0
        %2882 = vmatprep.subr.mxu0 0.0
        %2883 = vmatpush1.msra.mxu0 0.0
        %2884 = vmatprep.subr.mxu0 0.0
        %2885 = vmatpush1.msra.mxu0 0.0
        %2886 = vmatprep.subr.mxu0 0.0
        %2887 = vmatpush1.msra.mxu0 0.0
        %2888 = vmatprep.subr.mxu0 0.0
        %2889 = vmatpush1.msra.mxu0 0.0
        %2890 = vmatprep.subr.mxu0 0.0
        %2891 = vmatpush1.msra.mxu0 0.0
        %2892 = vmatprep.subr.mxu0 0.0
        %2893 = vmatpush1.msra.mxu0 0.0
        %2894 = vmatprep.subr.mxu0 0.0
        %2895 = vmatpush1.msra.mxu0 0.0
        %2896 = vmatprep.subr.mxu0 0.0
        %2897 = vmatpush1.msra.mxu0 0.0
        %2898 = vmatprep.subr.mxu0 0.0
        %2899 = vmatpush1.msra.mxu0 0.0
        %2900 = vmatprep.subr.mxu0 0.0
        %2901 = vmatpush1.msra.mxu0 0.0
        %2902 = vmatprep.subr.mxu0 0.0
        %2903 = vmatpush1.msra.mxu0 0.0
        %2904 = vmatprep.subr.mxu0 0.0
        %2905 = vmatpush1.msra.mxu0 0.0
        %2906 = vmatprep.mubr.f32.mxu0 0.0
        %2907 = vmatmul.mubr.f32.gmra.mrb[0].mxu0 %v2840
        %v2908 = vpop.f32.mrb[0].mxu0
        %v2909 = vadd.f32 0.0, %v2908
        %v2910 = vpop.f32.mrb[0].mxu0
        %v2911 = vadd.f32 0.0, %v2910
        %2912 = vdwg.mxu0
        %v2913 = vadd.f32 %v2837, %v2909
        %v2914 = vadd.f32 %v2838, %v2911
        %2915 = vrot.lane.b32.xlu0 %v1412, 125
        %v2916 = vpop.permute.xlu0 %2915
        %2917 = vrot.lane.b32.xlu0 %v1413, 125
        %v2918 = vpop.permute.xlu0 %2917
        %vm2919 = vcmp.lt.s32.totalorder %v224, 125
        %v2920 = vsel %vm2919, %v2916, %v2918
        %v2921 = vsel %vm2919, %v2918, %v2916
        %v2922 = vsel %vm2664, 1, 0
        %v2923 = vsel %vm2665, 1, 0
        %vm2924 = vcmp.eq.s32.totalorder %v2922, 1
        %vm2925 = vcmp.eq.s32.totalorder %v2923, 1
        %v2926 = vsel %vm2924, %v2920, 0.0
        %v2927 = vsel %vm2925, %v2921, 0.0
        %v2929 = vsel %vm1158, %v251, 0
        %2931 = vmatprep.subr.mxu0 %v2927
        %2932 = vmatpush1.msra.mxu0 %v2926
        %2933 = vmatprep.subr.mxu0 0.0
        %2934 = vmatpush1.msra.mxu0 0.0
        %2935 = vmatprep.subr.mxu0 0.0
        %2936 = vmatpush1.msra.mxu0 0.0
        %2937 = vmatprep.subr.mxu0 0.0
        %2938 = vmatpush1.msra.mxu0 0.0
        %2939 = vmatprep.subr.mxu0 0.0
        %2940 = vmatpush1.msra.mxu0 0.0
        %2941 = vmatprep.subr.mxu0 0.0
        %2942 = vmatpush1.msra.mxu0 0.0
        %2943 = vmatprep.subr.mxu0 0.0
        %2944 = vmatpush1.msra.mxu0 0.0
        %2945 = vmatprep.subr.mxu0 0.0
        %2946 = vmatpush1.msra.mxu0 0.0
        %2947 = vmatprep.subr.mxu0 0.0
        %2948 = vmatpush1.msra.mxu0 0.0
        %2949 = vmatprep.subr.mxu0 0.0
        %2950 = vmatpush1.msra.mxu0 0.0
        %2951 = vmatprep.subr.mxu0 0.0
        %2952 = vmatpush1.msra.mxu0 0.0
        %2953 = vmatprep.subr.mxu0 0.0
        %2954 = vmatpush1.msra.mxu0 0.0
        %2955 = vmatprep.subr.mxu0 0.0
        %2956 = vmatpush1.msra.mxu0 0.0
        %2957 = vmatprep.subr.mxu0 0.0
        %2958 = vmatpush1.msra.mxu0 0.0
        %2959 = vmatprep.subr.mxu0 0.0
        %2960 = vmatpush1.msra.mxu0 0.0
        %2961 = vmatprep.subr.mxu0 0.0
        %2962 = vmatpush1.msra.mxu0 0.0
        %2963 = vmatprep.subr.mxu0 0.0
        %2964 = vmatpush1.msra.mxu0 0.0
        %2965 = vmatprep.subr.mxu0 0.0
        %2966 = vmatpush1.msra.mxu0 0.0
        %2967 = vmatprep.subr.mxu0 0.0
        %2968 = vmatpush1.msra.mxu0 0.0
        %2969 = vmatprep.subr.mxu0 0.0
        %2970 = vmatpush1.msra.mxu0 0.0
        %2971 = vmatprep.subr.mxu0 0.0
        %2972 = vmatpush1.msra.mxu0 0.0
        %2973 = vmatprep.subr.mxu0 0.0
        %2974 = vmatpush1.msra.mxu0 0.0
        %2975 = vmatprep.subr.mxu0 0.0
        %2976 = vmatpush1.msra.mxu0 0.0
        %2977 = vmatprep.subr.mxu0 0.0
        %2978 = vmatpush1.msra.mxu0 0.0
        %2979 = vmatprep.subr.mxu0 0.0
        %2980 = vmatpush1.msra.mxu0 0.0
        %2981 = vmatprep.subr.mxu0 0.0
        %2982 = vmatpush1.msra.mxu0 0.0
        %2983 = vmatprep.subr.mxu0 0.0
        %2984 = vmatpush1.msra.mxu0 0.0
        %2985 = vmatprep.subr.mxu0 0.0
        %2986 = vmatpush1.msra.mxu0 0.0
        %2987 = vmatprep.subr.mxu0 0.0
        %2988 = vmatpush1.msra.mxu0 0.0
        %2989 = vmatprep.subr.mxu0 0.0
        %2990 = vmatpush1.msra.mxu0 0.0
        %2991 = vmatprep.subr.mxu0 0.0
        %2992 = vmatpush1.msra.mxu0 0.0
        %2993 = vmatprep.subr.mxu0 0.0
        %2994 = vmatpush1.msra.mxu0 0.0
        %2995 = vmatprep.mubr.f32.mxu0 0.0
        %2996 = vmatmul.mubr.f32.gmra.mrb[0].mxu0 %v2929
        %v2997 = vpop.f32.mrb[0].mxu0
        %v2998 = vadd.f32 0.0, %v2997
        %v2999 = vpop.f32.mrb[0].mxu0
        %v3000 = vadd.f32 0.0, %v2999
        %3001 = vdwg.mxu0
        %v3002 = vadd.f32 %v2913, %v2998
        %v3003 = vadd.f32 %v2914, %v3000
        %3004 = vrot.lane.b32.xlu0 %v1412, 35
        %v3005 = vpop.permute.xlu0 %3004
        %3006 = vrot.lane.b32.xlu0 %v1413, 35
        %v3007 = vpop.permute.xlu0 %3006
        %vm3008 = vcmp.lt.s32.totalorder %v224, 35
        %v3009 = vsel %vm3008, %v3005, %v3007
        %v3010 = vsel %vm3008, %v3007, %v3005
        %vm3011 = vmand %vm1588, %vm2491
        %vm3012 = vmand %vm1589, %vm2492
        %v3013 = vsel %vm3011, 1, 0
        %v3014 = vsel %vm3012, 1, 0
        %vm3015 = vcmp.eq.s32.totalorder %v3013, 1
        %vm3016 = vcmp.eq.s32.totalorder %v3014, 1
        %v3017 = vsel %vm3015, %v3009, 0.0
        %v3018 = vsel %vm3016, %v3010, 0.0
        %v3020 = vsel %vm1158, %v252, 0
        %3022 = vmatprep.subr.mxu0 %v3018
        %3023 = vmatpush1.msra.mxu0 %v3017
        %3024 = vmatprep.subr.mxu0 0.0
        %3025 = vmatpush1.msra.mxu0 0.0
        %3026 = vmatprep.subr.mxu0 0.0
        %3027 = vmatpush1.msra.mxu0 0.0
        %3028 = vmatprep.subr.mxu0 0.0
        %3029 = vmatpush1.msra.mxu0 0.0
        %3030 = vmatprep.subr.mxu0 0.0
        %3031 = vmatpush1.msra.mxu0 0.0
        %3032 = vmatprep.subr.mxu0 0.0
        %3033 = vmatpush1.msra.mxu0 0.0
        %3034 = vmatprep.subr.mxu0 0.0
        %3035 = vmatpush1.msra.mxu0 0.0
        %3036 = vmatprep.subr.mxu0 0.0
        %3037 = vmatpush1.msra.mxu0 0.0
        %3038 = vmatprep.subr.mxu0 0.0
        %3039 = vmatpush1.msra.mxu0 0.0
        %3040 = vmatprep.subr.mxu0 0.0
        %3041 = vmatpush1.msra.mxu0 0.0
        %3042 = vmatprep.subr.mxu0 0.0
        %3043 = vmatpush1.msra.mxu0 0.0
        %3044 = vmatprep.subr.mxu0 0.0
        %3045 = vmatpush1.msra.mxu0 0.0
        %3046 = vmatprep.subr.mxu0 0.0
        %3047 = vmatpush1.msra.mxu0 0.0
        %3048 = vmatprep.subr.mxu0 0.0
        %3049 = vmatpush1.msra.mxu0 0.0
        %3050 = vmatprep.subr.mxu0 0.0
        %3051 = vmatpush1.msra.mxu0 0.0
        %3052 = vmatprep.subr.mxu0 0.0
        %3053 = vmatpush1.msra.mxu0 0.0
        %3054 = vmatprep.subr.mxu0 0.0
        %3055 = vmatpush1.msra.mxu0 0.0
        %3056 = vmatprep.subr.mxu0 0.0
        %3057 = vmatpush1.msra.mxu0 0.0
        %3058 = vmatprep.subr.mxu0 0.0
        %3059 = vmatpush1.msra.mxu0 0.0
        %3060 = vmatprep.subr.mxu0 0.0
        %3061 = vmatpush1.msra.mxu0 0.0
        %3062 = vmatprep.subr.mxu0 0.0
        %3063 = vmatpush1.msra.mxu0 0.0
        %3064 = vmatprep.subr.mxu0 0.0
        %3065 = vmatpush1.msra.mxu0 0.0
        %3066 = vmatprep.subr.mxu0 0.0
        %3067 = vmatpush1.msra.mxu0 0.0
        %3068 = vmatprep.subr.mxu0 0.0
        %3069 = vmatpush1.msra.mxu0 0.0
        %3070 = vmatprep.subr.mxu0 0.0
        %3071 = vmatpush1.msra.mxu0 0.0
        %3072 = vmatprep.subr.mxu0 0.0
        %3073 = vmatpush1.msra.mxu0 0.0
        %3074 = vmatprep.subr.mxu0 0.0
        %3075 = vmatpush1.msra.mxu0 0.0
        %3076 = vmatprep.subr.mxu0 0.0
        %3077 = vmatpush1.msra.mxu0 0.0
        %3078 = vmatprep.subr.mxu0 0.0
        %3079 = vmatpush1.msra.mxu0 0.0
        %3080 = vmatprep.subr.mxu0 0.0
        %3081 = vmatpush1.msra.mxu0 0.0
        %3082 = vmatprep.subr.mxu0 0.0
        %3083 = vmatpush1.msra.mxu0 0.0
        %3084 = vmatprep.subr.mxu0 0.0
        %3085 = vmatpush1.msra.mxu0 0.0
        %3086 = vmatprep.mubr.f32.mxu0 0.0
        %3087 = vmatmul.mubr.f32.gmra.mrb[0].mxu0 %v3020
        %v3088 = vpop.f32.mrb[0].mxu0
        %v3089 = vadd.f32 0.0, %v3088
        %v3090 = vpop.f32.mrb[0].mxu0
        %v3091 = vadd.f32 0.0, %v3090
        %3092 = vdwg.mxu0
        %v3093 = vadd.f32 %v3002, %v3089
        %v3094 = vadd.f32 %v3003, %v3091
        %3095 = vrot.lane.b32.xlu0 %v1412, 32
        %v3096 = vpop.permute.xlu0 %3095
        %3097 = vrot.lane.b32.xlu0 %v1413, 32
        %v3098 = vpop.permute.xlu0 %3097
        %v3099 = vsel %vm1585, %v3096, %v3098
        %v3100 = vsel %vm1585, %v3098, %v3096
        %v3101 = vsel %vm1592, %v3099, 0.0
        %v3102 = vsel %vm1593, %v3100, 0.0
        %v3104 = vsel %vm1158, %v253, 0
        %3106 = vmatprep.subr.mxu0 %v3102
        %3107 = vmatpush1.msra.mxu0 %v3101
        %3108 = vmatprep.subr.mxu0 0.0
        %3109 = vmatpush1.msra.mxu0 0.0
        %3110 = vmatprep.subr.mxu0 0.0
        %3111 = vmatpush1.msra.mxu0 0.0
        %3112 = vmatprep.subr.mxu0 0.0
        %3113 = vmatpush1.msra.mxu0 0.0
        %3114 = vmatprep.subr.mxu0 0.0
        %3115 = vmatpush1.msra.mxu0 0.0
        %3116 = vmatprep.subr.mxu0 0.0
        %3117 = vmatpush1.msra.mxu0 0.0
        %3118 = vmatprep.subr.mxu0 0.0
        %3119 = vmatpush1.msra.mxu0 0.0
        %3120 = vmatprep.subr.mxu0 0.0
        %3121 = vmatpush1.msra.mxu0 0.0
        %3122 = vmatprep.subr.mxu0 0.0
        %3123 = vmatpush1.msra.mxu0 0.0
        %3124 = vmatprep.subr.mxu0 0.0
        %3125 = vmatpush1.msra.mxu0 0.0
        %3126 = vmatprep.subr.mxu0 0.0
        %3127 = vmatpush1.msra.mxu0 0.0
        %3128 = vmatprep.subr.mxu0 0.0
        %3129 = vmatpush1.msra.mxu0 0.0
        %3130 = vmatprep.subr.mxu0 0.0
        %3131 = vmatpush1.msra.mxu0 0.0
        %3132 = vmatprep.subr.mxu0 0.0
        %3133 = vmatpush1.msra.mxu0 0.0
        %3134 = vmatprep.subr.mxu0 0.0
        %3135 = vmatpush1.msra.mxu0 0.0
        %3136 = vmatprep.subr.mxu0 0.0
        %3137 = vmatpush1.msra.mxu0 0.0
        %3138 = vmatprep.subr.mxu0 0.0
        %3139 = vmatpush1.msra.mxu0 0.0
        %3140 = vmatprep.subr.mxu0 0.0
        %3141 = vmatpush1.msra.mxu0 0.0
        %3142 = vmatprep.subr.mxu0 0.0
        %3143 = vmatpush1.msra.mxu0 0.0
        %3144 = vmatprep.subr.mxu0 0.0
        %3145 = vmatpush1.msra.mxu0 0.0
        %3146 = vmatprep.subr.mxu0 0.0
        %3147 = vmatpush1.msra.mxu0 0.0
        %3148 = vmatprep.subr.mxu0 0.0
        %3149 = vmatpush1.msra.mxu0 0.0
        %3150 = vmatprep.subr.mxu0 0.0
        %3151 = vmatpush1.msra.mxu0 0.0
        %3152 = vmatprep.subr.mxu0 0.0
        %3153 = vmatpush1.msra.mxu0 0.0
        %3154 = vmatprep.subr.mxu0 0.0
        %3155 = vmatpush1.msra.mxu0 0.0
        %3156 = vmatprep.subr.mxu0 0.0
        %3157 = vmatpush1.msra.mxu0 0.0
        %3158 = vmatprep.subr.mxu0 0.0
        %3159 = vmatpush1.msra.mxu0 0.0
        %3160 = vmatprep.subr.mxu0 0.0
        %3161 = vmatpush1.msra.mxu0 0.0
        %3162 = vmatprep.subr.mxu0 0.0
        %3163 = vmatpush1.msra.mxu0 0.0
        %3164 = vmatprep.subr.mxu0 0.0
        %3165 = vmatpush1.msra.mxu0 0.0
        %3166 = vmatprep.subr.mxu0 0.0
        %3167 = vmatpush1.msra.mxu0 0.0
        %3168 = vmatprep.subr.mxu0 0.0
        %3169 = vmatpush1.msra.mxu0 0.0
        %3170 = vmatprep.mubr.f32.mxu0 0.0
        %3171 = vmatmul.mubr.f32.gmra.mrb[0].mxu0 %v3104
        %v3172 = vpop.f32.mrb[0].mxu0
        %v3173 = vadd.f32 0.0, %v3172
        %v3174 = vpop.f32.mrb[0].mxu0
        %v3175 = vadd.f32 0.0, %v3174
        %3176 = vdwg.mxu0
        %v3177 = vadd.f32 %v3093, %v3173
        %v3178 = vadd.f32 %v3094, %v3175
        %3179 = vrot.lane.b32.xlu0 %v1412, 29
        %v3180 = vpop.permute.xlu0 %3179
        %3181 = vrot.lane.b32.xlu0 %v1413, 29
        %v3182 = vpop.permute.xlu0 %3181
        %vm3183 = vcmp.lt.s32.totalorder %v224, 29
        %v3184 = vsel %vm3183, %v3180, %v3182
        %v3185 = vsel %vm3183, %v3182, %v3180
        %vm3186 = vmand %vm1588, %vm2664
        %vm3187 = vmand %vm1589, %vm2665
        %v3188 = vsel %vm3186, 1, 0
        %v3189 = vsel %vm3187, 1, 0
        %vm3190 = vcmp.eq.s32.totalorder %v3188, 1
        %vm3191 = vcmp.eq.s32.totalorder %v3189, 1
        %v3192 = vsel %vm3190, %v3184, 0.0
        %v3193 = vsel %vm3191, %v3185, 0.0
        %v3195 = vsel %vm1158, %v254, 0
        %3197 = vmatprep.subr.mxu0 %v3193
        %3198 = vmatpush1.msra.mxu0 %v3192
        %3199 = vmatprep.subr.mxu0 0.0
        %3200 = vmatpush1.msra.mxu0 0.0
        %3201 = vmatprep.subr.mxu0 0.0
        %3202 = vmatpush1.msra.mxu0 0.0
        %3203 = vmatprep.subr.mxu0 0.0
        %3204 = vmatpush1.msra.mxu0 0.0
        %3205 = vmatprep.subr.mxu0 0.0
        %3206 = vmatpush1.msra.mxu0 0.0
        %3207 = vmatprep.subr.mxu0 0.0
        %3208 = vmatpush1.msra.mxu0 0.0
        %3209 = vmatprep.subr.mxu0 0.0
        %3210 = vmatpush1.msra.mxu0 0.0
        %3211 = vmatprep.subr.mxu0 0.0
        %3212 = vmatpush1.msra.mxu0 0.0
        %3213 = vmatprep.subr.mxu0 0.0
        %3214 = vmatpush1.msra.mxu0 0.0
        %3215 = vmatprep.subr.mxu0 0.0
        %3216 = vmatpush1.msra.mxu0 0.0
        %3217 = vmatprep.subr.mxu0 0.0
        %3218 = vmatpush1.msra.mxu0 0.0
        %3219 = vmatprep.subr.mxu0 0.0
        %3220 = vmatpush1.msra.mxu0 0.0
        %3221 = vmatprep.subr.mxu0 0.0
        %3222 = vmatpush1.msra.mxu0 0.0
        %3223 = vmatprep.subr.mxu0 0.0
        %3224 = vmatpush1.msra.mxu0 0.0
        %3225 = vmatprep.subr.mxu0 0.0
        %3226 = vmatpush1.msra.mxu0 0.0
        %3227 = vmatprep.subr.mxu0 0.0
        %3228 = vmatpush1.msra.mxu0 0.0
        %3229 = vmatprep.subr.mxu0 0.0
        %3230 = vmatpush1.msra.mxu0 0.0
        %3231 = vmatprep.subr.mxu0 0.0
        %3232 = vmatpush1.msra.mxu0 0.0
        %3233 = vmatprep.subr.mxu0 0.0
        %3234 = vmatpush1.msra.mxu0 0.0
        %3235 = vmatprep.subr.mxu0 0.0
        %3236 = vmatpush1.msra.mxu0 0.0
        %3237 = vmatprep.subr.mxu0 0.0
        %3238 = vmatpush1.msra.mxu0 0.0
        %3239 = vmatprep.subr.mxu0 0.0
        %3240 = vmatpush1.msra.mxu0 0.0
        %3241 = vmatprep.subr.mxu0 0.0
        %3242 = vmatpush1.msra.mxu0 0.0
        %3243 = vmatprep.subr.mxu0 0.0
        %3244 = vmatpush1.msra.mxu0 0.0
        %3245 = vmatprep.subr.mxu0 0.0
        %3246 = vmatpush1.msra.mxu0 0.0
        %3247 = vmatprep.subr.mxu0 0.0
        %3248 = vmatpush1.msra.mxu0 0.0
        %3249 = vmatprep.subr.mxu0 0.0
        %3250 = vmatpush1.msra.mxu0 0.0
        %3251 = vmatprep.subr.mxu0 0.0
        %3252 = vmatpush1.msra.mxu0 0.0
        %3253 = vmatprep.subr.mxu0 0.0
        %3254 = vmatpush1.msra.mxu0 0.0
        %3255 = vmatprep.subr.mxu0 0.0
        %3256 = vmatpush1.msra.mxu0 0.0
        %3257 = vmatprep.subr.mxu0 0.0
        %3258 = vmatpush1.msra.mxu0 0.0
        %3259 = vmatprep.subr.mxu0 0.0
        %3260 = vmatpush1.msra.mxu0 0.0
        %3261 = vmatprep.mubr.f32.mxu0 0.0
        %3262 = vmatmul.mubr.f32.gmra.mrb[0].mxu0 %v3195
        %v3263 = vpop.f32.mrb[0].mxu0
        %v3264 = vadd.f32 0.0, %v3263
        %v3265 = vpop.f32.mrb[0].mxu0
        %v3266 = vadd.f32 0.0, %v3265
        %3267 = vdwg.mxu0
        %v3268 = vadd.f32 %v3177, %v3264
        %v3269 = vadd.f32 %v3178, %v3266
        %3271 = vset.pattern.permute.xlu0 0
        %3272 = vperm.xlu0 %3271, %v2481
        %v3273 = vpop.permute.xlu0 %3272
        %v3275 = vmul.f32 %v3268, %v3273
        %v3276 = vmul.f32 %v3269, %v3273
        %3278 = vset.pattern.permute.xlu0 0
        %3279 = vperm.xlu0 %3278, %v2483
        %v3280 = vpop.permute.xlu0 %3279
        %v3282 = vadd.f32 %v3275, %v3280
        %v3283 = vadd.f32 %v3276, %v3280
        %v3284 = vmax.f32 %v3282, 0.0
        %v3285 = vmax.f32 %v3283, 0.0
        %3286 = vst [vmem:[%s217] sm:$0xff] %v1137
        %3287 = vst [vmem:[%s217 + $0x8] sm:$0xff] %v1138
        %3288 = vst [vmem:[%s217 + $0x10] sm:$0xff] %v1412
        %3289 = vst [vmem:[%s217 + $0x18] sm:$0xff] %v1413
        %3290 = vst [vmem:[%s217 + $0x20] sm:$0xff] %v1686
        %3291 = vst [vmem:[%s217 + $0x28] sm:$0xff] %v1687
        %3292 = vst [vmem:[%s217 + $0x30] sm:$0xff] %v2478
        %3293 = vst [vmem:[%s217 + $0x38] sm:$0xff] %v2479
        %3294 = vst [vmem:[%s217 + $0x40] sm:$0xff] %v3284
        %3295 = vst [vmem:[%s217 + $0x48] sm:$0xff] %v3285
        %s3296 = sand.u32 %s137, 1
        %s3297 = scalar_lea.sflag [#allocation3], %s3296
        %s3298 = sand.u32 %s137, 1
        %s3299 = smul.addr %s3298, 80
        %s3300 = scalar_lea.vmem [#allocation2], %s3299
        // Predicated region
        $region41: #{tpu_custom_call.1} parent=39 // pred_check
          %p3301 = pneg %p147
        $region42: #{tpu_custom_call.1} parent=39 // pred_check_branch
          %3303 = sbr.rel (%p3301) target = $region44
        $region43: #{tpu_custom_call.1} parent=39 // pred_region
          %s3305 = ssub.s32 1280, 1280
          %3306 = vsyncadd %s3297, %s3305
          %s3307 = smul.addr %s19, 10
          %s3308 = smul.addr %s3307, 128
          %s3309 = scalar_lea.hbm %s5, %s3308
          %s3310 = sshll.u32 %s3300, 4
          %s3311 = int_to_ptr.vmem [resolvable:$true] %s3310
          %3316 = dma.vmem_to_hbm [thread:$0]  %s3311, 1280, %s3309, %s3297, 256, 256, 16
        $region44: #{tpu_custom_call.1} parent=39 // pred_fallthru
          _
      $region40: #{tpu_custom_call.1} parent=5 // pred_fallthru
        _
      %p3317 = scmp.le.s32.totalorder 2, %s14
      // Predicated region
      $region45: #{tpu_custom_call.1} parent=5 // pred_check
        %p3318 = pneg %p3317
      $region46: #{tpu_custom_call.1} parent=5 // pred_check_branch
        %3320 = sbr.rel (%p3318) target = $region48
      $region47: #{tpu_custom_call.1} parent=5 // pred_region
        %s3321 = ssub.s32 %s14, 2
        // Predicated region
        $region49: #{tpu_custom_call.1} parent=47 // pred_check
          %p3322 = pneg %p153
        $region50: #{tpu_custom_call.1} parent=47 // pred_check_branch
          %3324 = sbr.rel (%p3322) target = $region52
        $region51: #{tpu_custom_call.1} parent=47 // pred_region
          %s3325 = sand.u32 %s138, 1
          %s3326 = scalar_lea.sflag [#allocation3], %s3325
          %s3327 = sand.u32 %s138, 1
          %s3328 = smul.addr %s3327, 80
          %s3329 = scalar_lea.vmem [#allocation2], %s3328
          %3330 = dma.done %s3326, 1280
        $region52: #{tpu_custom_call.1} parent=47 // pred_fallthru
          _
      $region48: #{tpu_custom_call.1} parent=5 // pred_fallthru
        _
    $region6: #{tpu_custom_call.1} parent=1 // loop_footer
      %s18 = sadd.s32 1, %s14
    $region7: #{tpu_custom_call.1} parent=1 // loop_footer_branch
      %13 = sbr.rel target = $region3
    $region8: #{tpu_custom_call.1} parent=1 // loop_exit
      _
    %3331 = vsyncpa [#allocation3], 1
    %s3332 = scalar_lea.sflag [#allocation3], 1
    %3333 = vsyncpa %s3332, 1

</llo_original>
